<compile_context>
chip_gen: v7x
topology: tpu7x:2x2x1
jax: 0.10.0
libtpu: 0.0.40
codegen_flags: <defaults>
</compile_context>

<pallas_src>
from functools import partial

import jax
import jax.numpy as jnp
from jax import lax
from jax.experimental import pallas as pl
from jax.experimental.pallas import tpu as pltpu


def _round_up(x, m):
    return ((x + m - 1) // m) * m


# ----------------------------------------------------------------------------
# In-kernel helpers
# ----------------------------------------------------------------------------
def _squash(x):
    """squash along the capsule-feature (lane) axis, single fused scale."""
    ns = jnp.sum(x * x, axis=-1, keepdims=True)
    scale = ns * pl.reciprocal(1.0 + ns, approx=True) * lax.rsqrt(ns + 1e-16)
    return x * scale


def _mlp(x, w1_ref, b1_ref, w2_ref, b2_ref, w3_ref, b3_ref):
    """Projector MLP: Linear, ReLU, Linear, ReLU, Linear (all f32)."""
    h = jnp.dot(x, w1_ref[...], preferred_element_type=jnp.float32) + b1_ref[...]
    h = jnp.maximum(h, 0.0)
    h = jnp.dot(h, w2_ref[...], preferred_element_type=jnp.float32) + b2_ref[...]
    h = jnp.maximum(h, 0.0)
    return jnp.dot(h, w3_ref[...], preferred_element_type=jnp.float32) + b3_ref[...]


# ----------------------------------------------------------------------------
# Single fused ResidualBlock kernel (3x ConvSov, NO == 1)
# ----------------------------------------------------------------------------
def _resblock_kernel(x_ref,
                     w11_ref, b11_ref, w12_ref, b12_ref, w13_ref, b13_ref,
                     w21_ref, b21_ref, w22_ref, b22_ref, w23_ref, b23_ref,
                     w31_ref, b31_ref, w32_ref, b32_ref, w33_ref, b33_ref,
                     o_ref):
    TR = o_ref.shape[0]
    M = x_ref.shape[0]           # M = NC * TR (NC flattened into matmul M-dim)
    nc = M // TR

    x = x_ref[...]               # (NC*TR, in_dim) f32

    # ---- ConvSov 1: projector layers 1-2 over all NC*TR rows ----------------
    h = jnp.dot(x, w11_ref[...], preferred_element_type=jnp.float32) + b11_ref[...]
    h = jnp.maximum(h, 0.0)
    h = jnp.dot(h, w12_ref[...], preferred_element_type=jnp.float32) + b12_ref[...]
    h = jnp.maximum(h, 0.0)      # (NC*TR, 128)

    # Collapsed dynamic routing (NO == 1): softmax over one output capsule is
    # identically 1, so s_j is just the sum over input capsules.  The final
    # Linear is affine, so the NC reduction commutes with it -> reduce first,
    # then one small matmul with M = TR (bias contributes NC times).
    h_sum = h[0:TR]
    for k in range(1, nc):       # static, sublane-aligned slices; pure VPU adds
        h_sum = h_sum + h[k * TR:(k + 1) * TR]
    s1 = (jnp.dot(h_sum, w13_ref[...], preferred_element_type=jnp.float32)
          + float(nc) * b13_ref[...])
    v1 = _squash(s1)             # (TR, out_dim)  == conv_capsule1 output rows

    # ---- ConvSov 2 (kernel=1, stride=1, NC=1): tokens are exactly v1 rows ---
    v2 = _squash(_mlp(v1, w21_ref, b21_ref, w22_ref, b22_ref, w23_ref, b23_ref))

    # ---- ConvSov 3 + ResidualBlock epilogue (add v1, squash) ----------------
    v3 = _squash(_mlp(v2, w31_ref, b31_ref, w32_ref, b32_ref, w33_ref, b33_ref))
    o_ref[...] = _squash(v3 + v1)


def fused_residual_block_rows(tokens, params, row_budget=2048):
    """tokens: (NC, R, in_dim) f32 (conv1 patches).  Returns (R, out_dim) rows
    of the full ResidualBlock output = squash(conv3(conv2(conv1)) + conv1)."""
    p1, p2, p3 = params
    NC, R, in_dim = tokens.shape
    out_dim = p1[2][0].shape[1]

    # ---- row-tile selection --------------------------------------------------
    R8 = _round_up(R, 8)                                  # aligned sublane stores
    tr_cap = max(8, ((row_budget // max(NC, 1)) // 8) * 8)  # keep (NC*TR,128) f32 modest in VMEM
    if R8 <= tr_cap:
        # enough rows -> >= 2 grid steps so v7x's second TensorCore gets work
        TR = _round_up((R8 + 1) // 2, 8) if R8 >= 1024 else R8
    else:
        TR = tr_cap
    R_pad = _round_up(R8, TR)
    num_tiles = R_pad // TR

    # ---- lay tokens out so one grid step reads one contiguous (NC*TR, in_dim)
    # slab: HBM order is (tile, nc, row-in-tile, feature).  All of this (pad,
    # cast, relayout) fuses into the same XLA computation as patch extraction.
    x = tokens.astype(jnp.float32)
    if R_pad != R:
        x = jnp.pad(x, ((0, 0), (0, R_pad - R), (0, 0)))
    x = (x.reshape(NC, num_tiles, TR, in_dim)
          .transpose(1, 0, 2, 3)
          .reshape(num_tiles * NC * TR, in_dim))

    flat = []
    for (w1, b1), (w2, b2), (w3, b3) in (p1, p2, p3):
        flat += [w1, b1, w2, b2, w3, b3]
    flat = [a.astype(jnp.float32) for a in flat]

    x_spec = pl.BlockSpec((NC * TR, in_dim), lambda i: (i, 0))
    w_specs = [pl.BlockSpec(a.shape, lambda i: (0, 0)) for a in flat]

    out = pl.pallas_call(
        _resblock_kernel,
        out_shape=jax.ShapeDtypeStruct((R_pad, out_dim), jnp.float32),
        grid_spec=pltpu.PrefetchScalarGridSpec(
            num_scalar_prefetch=0,
            grid=(num_tiles,),
            in_specs=[x_spec] + w_specs,
            out_specs=pl.BlockSpec((TR, out_dim), lambda i: (i, 0)),
        ),
        compiler_params=pltpu.CompilerParams(dimension_semantics=("parallel",)),
    )(x, *flat)
    return out[:R] if R_pad != R else out


# ----------------------------------------------------------------------------
# Glue (patch extraction, parameter setup) -- plain JAX, fuses under jit
# ----------------------------------------------------------------------------
def extract_tokens(x, kernel_size, stride):
    """(B, N, H, W, D) -> tokens (NC, R, D) with NC = N*k*k, R = B*oH*oW.

    Same index arithmetic as ConvSov.create_patches (same index list for H and
    W), built from static strided slices instead of a double gather."""
    B, N, H, W, D = x.shape
    assert H == W, "ConvSov.create_patches uses the same index list for H and W"
    oH = (H - kernel_size) // stride + 1
    oW = (W - kernel_size) // stride + 1
    if kernel_size == 1 and stride == 1:
        tokens = jnp.transpose(x, (1, 0, 2, 3, 4)).reshape(N, B * H * W, D)
        return tokens, oH, oW
    slabs = []
    for kh in range(kernel_size):
        for kw in range(kernel_size):
            sl = x[:, :,
                   kh:kh + stride * (oH - 1) + 1:stride,
                   kw:kw + stride * (oW - 1) + 1:stride, :]      # (B, N, oH, oW, D)
            slabs.append(sl)
    p = jnp.stack(slabs, axis=0)                  # (k*k, B, N, oH, oW, D)
    p = jnp.transpose(p, (2, 0, 1, 3, 4, 5))      # (N, k*k, B, oH, oW, D)
    tokens = p.reshape(N * kernel_size * kernel_size, B * oH * oW, D)
    return tokens, oH, oW


@partial(jax.jit, static_argnums=(2, 3, 4))
def residual_block_forward(x, params, num_out_capsules, out_dim, stride=2):
    # NO == 1 is the only configuration the projector's layer shapes permit
    # (Linear(out_dim, 128) follows Linear(in_dim, out_dim * NO)).
    assert num_out_capsules == 1
    B = x.shape[0]
    tokens, oH, oW = extract_tokens(x, 3, stride)              # conv_capsule1 patches
    rows = fused_residual_block_rows(tokens, params)           # whole block, 1 kernel
    out = rows.reshape(B, num_out_capsules, oH, oW, out_dim)
    # TODO(synk): `unif_act_wt_entropy` is not defined in the provided source.
    # With NO == 1 the routing coefficients are identically 1 (softmax over a
    # single class), so any entropy of c_ij is exactly 0 for every ConvSov.
    c_ij = jnp.zeros((), jnp.float32)
    return out, c_ij


def init_linear(key, fan_in, fan_out):
    # PyTorch nn.Linear default init; weight stored pre-transposed as (in, out).
    kw, kb = jax.random.split(key)
    bound = 1.0 / (fan_in ** 0.5)
    W = jax.random.uniform(kw, (fan_in, fan_out), jnp.float32, -bound, bound)
    b = jax.random.uniform(kb, (1, fan_out), jnp.float32, -bound, bound)
    return W, b


def init_projector(key, in_dim, out_dim, num_out_capsules):
    # Sequential(Linear(in_dim, out_dim*NO), ReLU, Linear(out_dim, 128), ReLU,
    # Linear(128, out_dim*NO)) only type-checks when num_out_capsules == 1.
    assert num_out_capsules == 1
    k1, k2, k3 = jax.random.split(key, 3)
    return (
        init_linear(k1, in_dim, out_dim * num_out_capsules),
        init_linear(k2, out_dim, 128),
        init_linear(k3, 128, out_dim * num_out_capsules),
    )


if __name__ == "__main__":
    key = jax.random.PRNGKey(0)
    kx, kp = jax.random.split(key)

    # small shapes consistent with the module: (B, num_in_capsules, H, W, in_dim)
    B, N_in, H, W = 2, 4, 8, 8
    in_dim, out_dim, N_out, stride = 8, 8, 1, 2

    x = jax.random.normal(kx, (B, N_in, H, W, in_dim), jnp.float32)

    kp1, kp2, kp3 = jax.random.split(kp, 3)
    params = (
        init_projector(kp1, in_dim, out_dim, N_out),
        init_projector(kp2, out_dim, out_dim, N_out),
        init_projector(kp3, out_dim, out_dim, N_out),
    )

    out_capsule, out_c_ij = residual_block_forward(x, params, N_out, out_dim, stride)
    jax.block_until_ready((out_capsule, out_c_ij))
    assert out_capsule.shape == (B, N_out, 3, 3, out_dim)
    assert out_c_ij.shape == ()
    assert bool(jnp.all(jnp.isfinite(out_capsule)))
    print("KERNEL_OK")
</pallas_src>

<mosaic_0001>
module attributes {stable_mosaic.version = 11 : i64} {
  func.func @_resblock_kernel(%arg0: i32, %arg1: memref<864x8xf32, #tpu.memory_space<vmem>>, %arg2: memref<8x8xf32, #tpu.memory_space<vmem>>, %arg3: memref<1x8xf32, #tpu.memory_space<vmem>>, %arg4: memref<8x128xf32, #tpu.memory_space<vmem>>, %arg5: memref<1x128xf32, #tpu.memory_space<vmem>>, %arg6: memref<128x8xf32, #tpu.memory_space<vmem>>, %arg7: memref<1x8xf32, #tpu.memory_space<vmem>>, %arg8: memref<8x8xf32, #tpu.memory_space<vmem>>, %arg9: memref<1x8xf32, #tpu.memory_space<vmem>>, %arg10: memref<8x128xf32, #tpu.memory_space<vmem>>, %arg11: memref<1x128xf32, #tpu.memory_space<vmem>>, %arg12: memref<128x8xf32, #tpu.memory_space<vmem>>, %arg13: memref<1x8xf32, #tpu.memory_space<vmem>>, %arg14: memref<8x8xf32, #tpu.memory_space<vmem>>, %arg15: memref<1x8xf32, #tpu.memory_space<vmem>>, %arg16: memref<8x128xf32, #tpu.memory_space<vmem>>, %arg17: memref<1x128xf32, #tpu.memory_space<vmem>>, %arg18: memref<128x8xf32, #tpu.memory_space<vmem>>, %arg19: memref<1x8xf32, #tpu.memory_space<vmem>>, %arg20: memref<24x8xf32, #tpu.memory_space<vmem>>) attributes {dimension_semantics = [#tpu.dimension_semantics<parallel>], iteration_bounds = array<i64: 1>, scalar_prefetch = 0 : i64, scratch_operands = 0 : i64, tpu.core_type = #tpu.core_type<tc>, window_params = [{transform_indices = @transform_0, window_bounds = array<i64: 864, 8>}, {pipeline_mode = #tpu.pipeline_mode<synchronous>, transform_indices = @transform_1, window_bounds = array<i64: 8, 8>}, {pipeline_mode = #tpu.pipeline_mode<synchronous>, transform_indices = @transform_2, window_bounds = array<i64: 1, 8>}, {pipeline_mode = #tpu.pipeline_mode<synchronous>, transform_indices = @transform_3, window_bounds = array<i64: 8, 128>}, {pipeline_mode = #tpu.pipeline_mode<synchronous>, transform_indices = @transform_4, window_bounds = array<i64: 1, 128>}, {pipeline_mode = #tpu.pipeline_mode<synchronous>, transform_indices = @transform_5, window_bounds = array<i64: 128, 8>}, {pipeline_mode = #tpu.pipeline_mode<synchronous>, transform_indices = @transform_6, window_bounds = array<i64: 1, 8>}, {pipeline_mode = #tpu.pipeline_mode<synchronous>, transform_indices = @transform_7, window_bounds = array<i64: 8, 8>}, {pipeline_mode = #tpu.pipeline_mode<synchronous>, transform_indices = @transform_8, window_bounds = array<i64: 1, 8>}, {pipeline_mode = #tpu.pipeline_mode<synchronous>, transform_indices = @transform_9, window_bounds = array<i64: 8, 128>}, {pipeline_mode = #tpu.pipeline_mode<synchronous>, transform_indices = @transform_10, window_bounds = array<i64: 1, 128>}, {pipeline_mode = #tpu.pipeline_mode<synchronous>, transform_indices = @transform_11, window_bounds = array<i64: 128, 8>}, {pipeline_mode = #tpu.pipeline_mode<synchronous>, transform_indices = @transform_12, window_bounds = array<i64: 1, 8>}, {pipeline_mode = #tpu.pipeline_mode<synchronous>, transform_indices = @transform_13, window_bounds = array<i64: 8, 8>}, {pipeline_mode = #tpu.pipeline_mode<synchronous>, transform_indices = @transform_14, window_bounds = array<i64: 1, 8>}, {pipeline_mode = #tpu.pipeline_mode<synchronous>, transform_indices = @transform_15, window_bounds = array<i64: 8, 128>}, {pipeline_mode = #tpu.pipeline_mode<synchronous>, transform_indices = @transform_16, window_bounds = array<i64: 1, 128>}, {pipeline_mode = #tpu.pipeline_mode<synchronous>, transform_indices = @transform_17, window_bounds = array<i64: 128, 8>}, {pipeline_mode = #tpu.pipeline_mode<synchronous>, transform_indices = @transform_18, window_bounds = array<i64: 1, 8>}, {transform_indices = @transform_19, window_bounds = array<i64: 24, 8>}]} {
    %c0 = arith.constant 0 : index
    %c0_0 = arith.constant 0 : index
    %0 = vector.load %arg1[%c0, %c0_0] : memref<864x8xf32, #tpu.memory_space<vmem>>, vector<864x8xf32>
    %c0_1 = arith.constant 0 : index
    %c0_2 = arith.constant 0 : index
    %1 = vector.load %arg2[%c0_1, %c0_2] : memref<8x8xf32, #tpu.memory_space<vmem>>, vector<8x8xf32>
    %cst = arith.constant dense<0.000000e+00> : vector<864x8xf32>
    %2 = tpu.matmul %0, %1, %cst {dimension_numbers = #tpu.dot_dimension_numbers<[1], [0], [0], [1], [0, 0, 1, 1], [], []>} : vector<864x8xf32>, vector<8x8xf32>, vector<864x8xf32> -> vector<864x8xf32>
    %c0_3 = arith.constant 0 : index
    %c0_4 = arith.constant 0 : index
    %3 = vector.load %arg3[%c0_3, %c0_4] : memref<1x8xf32, #tpu.memory_space<vmem>>, vector<1x8xf32>
    %4 = vector.broadcast %3 : vector<1x8xf32> to vector<864x8xf32>
    %5 = arith.addf %2, %4 : vector<864x8xf32>
    %cst_5 = arith.constant 0.000000e+00 : f32
    %6 = vector.broadcast %cst_5 : f32 to vector<864x8xf32>
    %7 = arith.maximumf %5, %6 : vector<864x8xf32>
    %c0_6 = arith.constant 0 : index
    %c0_7 = arith.constant 0 : index
    %8 = vector.load %arg4[%c0_6, %c0_7] : memref<8x128xf32, #tpu.memory_space<vmem>>, vector<8x128xf32>
    %cst_8 = arith.constant dense<0.000000e+00> : vector<864x128xf32>
    %9 = tpu.matmul %7, %8, %cst_8 {dimension_numbers = #tpu.dot_dimension_numbers<[1], [0], [0], [1], [0, 0, 1, 1], [], []>} : vector<864x8xf32>, vector<8x128xf32>, vector<864x128xf32> -> vector<864x128xf32>
    %c0_9 = arith.constant 0 : index
    %c0_10 = arith.constant 0 : index
    %10 = vector.load %arg5[%c0_9, %c0_10] : memref<1x128xf32, #tpu.memory_space<vmem>>, vector<1x128xf32>
    %11 = vector.broadcast %10 : vector<1x128xf32> to vector<864x128xf32>
    %12 = arith.addf %9, %11 : vector<864x128xf32>
    %cst_11 = arith.constant 0.000000e+00 : f32
    %13 = vector.broadcast %cst_11 : f32 to vector<864x128xf32>
    %14 = arith.maximumf %12, %13 : vector<864x128xf32>
    %15 = vector.extract_strided_slice %14 {offsets = [0, 0], sizes = [24, 128], strides = [1, 1]} : vector<864x128xf32> to vector<24x128xf32>
    %16 = vector.extract_strided_slice %14 {offsets = [24, 0], sizes = [24, 128], strides = [1, 1]} : vector<864x128xf32> to vector<24x128xf32>
    %17 = arith.addf %15, %16 : vector<24x128xf32>
    %18 = vector.extract_strided_slice %14 {offsets = [48, 0], sizes = [24, 128], strides = [1, 1]} : vector<864x128xf32> to vector<24x128xf32>
    %19 = arith.addf %17, %18 : vector<24x128xf32>
    %20 = vector.extract_strided_slice %14 {offsets = [72, 0], sizes = [24, 128], strides = [1, 1]} : vector<864x128xf32> to vector<24x128xf32>
    %21 = arith.addf %19, %20 : vector<24x128xf32>
    %22 = vector.extract_strided_slice %14 {offsets = [96, 0], sizes = [24, 128], strides = [1, 1]} : vector<864x128xf32> to vector<24x128xf32>
    %23 = arith.addf %21, %22 : vector<24x128xf32>
    %24 = vector.extract_strided_slice %14 {offsets = [120, 0], sizes = [24, 128], strides = [1, 1]} : vector<864x128xf32> to vector<24x128xf32>
    %25 = arith.addf %23, %24 : vector<24x128xf32>
    %26 = vector.extract_strided_slice %14 {offsets = [144, 0], sizes = [24, 128], strides = [1, 1]} : vector<864x128xf32> to vector<24x128xf32>
    %27 = arith.addf %25, %26 : vector<24x128xf32>
    %28 = vector.extract_strided_slice %14 {offsets = [168, 0], sizes = [24, 128], strides = [1, 1]} : vector<864x128xf32> to vector<24x128xf32>
    %29 = arith.addf %27, %28 : vector<24x128xf32>
    %30 = vector.extract_strided_slice %14 {offsets = [192, 0], sizes = [24, 128], strides = [1, 1]} : vector<864x128xf32> to vector<24x128xf32>
    %31 = arith.addf %29, %30 : vector<24x128xf32>
    %32 = vector.extract_strided_slice %14 {offsets = [216, 0], sizes = [24, 128], strides = [1, 1]} : vector<864x128xf32> to vector<24x128xf32>
    %33 = arith.addf %31, %32 : vector<24x128xf32>
    %34 = vector.extract_strided_slice %14 {offsets = [240, 0], sizes = [24, 128], strides = [1, 1]} : vector<864x128xf32> to vector<24x128xf32>
    %35 = arith.addf %33, %34 : vector<24x128xf32>
    %36 = vector.extract_strided_slice %14 {offsets = [264, 0], sizes = [24, 128], strides = [1, 1]} : vector<864x128xf32> to vector<24x128xf32>
    %37 = arith.addf %35, %36 : vector<24x128xf32>
    %38 = vector.extract_strided_slice %14 {offsets = [288, 0], sizes = [24, 128], strides = [1, 1]} : vector<864x128xf32> to vector<24x128xf32>
    %39 = arith.addf %37, %38 : vector<24x128xf32>
    %40 = vector.extract_strided_slice %14 {offsets = [312, 0], sizes = [24, 128], strides = [1, 1]} : vector<864x128xf32> to vector<24x128xf32>
    %41 = arith.addf %39, %40 : vector<24x128xf32>
    %42 = vector.extract_strided_slice %14 {offsets = [336, 0], sizes = [24, 128], strides = [1, 1]} : vector<864x128xf32> to vector<24x128xf32>
    %43 = arith.addf %41, %42 : vector<24x128xf32>
    %44 = vector.extract_strided_slice %14 {offsets = [360, 0], sizes = [24, 128], strides = [1, 1]} : vector<864x128xf32> to vector<24x128xf32>
    %45 = arith.addf %43, %44 : vector<24x128xf32>
    %46 = vector.extract_strided_slice %14 {offsets = [384, 0], sizes = [24, 128], strides = [1, 1]} : vector<864x128xf32> to vector<24x128xf32>
    %47 = arith.addf %45, %46 : vector<24x128xf32>
    %48 = vector.extract_strided_slice %14 {offsets = [408, 0], sizes = [24, 128], strides = [1, 1]} : vector<864x128xf32> to vector<24x128xf32>
    %49 = arith.addf %47, %48 : vector<24x128xf32>
    %50 = vector.extract_strided_slice %14 {offsets = [432, 0], sizes = [24, 128], strides = [1, 1]} : vector<864x128xf32> to vector<24x128xf32>
    %51 = arith.addf %49, %50 : vector<24x128xf32>
    %52 = vector.extract_strided_slice %14 {offsets = [456, 0], sizes = [24, 128], strides = [1, 1]} : vector<864x128xf32> to vector<24x128xf32>
    %53 = arith.addf %51, %52 : vector<24x128xf32>
    %54 = vector.extract_strided_slice %14 {offsets = [480, 0], sizes = [24, 128], strides = [1, 1]} : vector<864x128xf32> to vector<24x128xf32>
    %55 = arith.addf %53, %54 : vector<24x128xf32>
    %56 = vector.extract_strided_slice %14 {offsets = [504, 0], sizes = [24, 128], strides = [1, 1]} : vector<864x128xf32> to vector<24x128xf32>
    %57 = arith.addf %55, %56 : vector<24x128xf32>
    %58 = vector.extract_strided_slice %14 {offsets = [528, 0], sizes = [24, 128], strides = [1, 1]} : vector<864x128xf32> to vector<24x128xf32>
    %59 = arith.addf %57, %58 : vector<24x128xf32>
    %60 = vector.extract_strided_slice %14 {offsets = [552, 0], sizes = [24, 128], strides = [1, 1]} : vector<864x128xf32> to vector<24x128xf32>
    %61 = arith.addf %59, %60 : vector<24x128xf32>
    %62 = vector.extract_strided_slice %14 {offsets = [576, 0], sizes = [24, 128], strides = [1, 1]} : vector<864x128xf32> to vector<24x128xf32>
    %63 = arith.addf %61, %62 : vector<24x128xf32>
    %64 = vector.extract_strided_slice %14 {offsets = [600, 0], sizes = [24, 128], strides = [1, 1]} : vector<864x128xf32> to vector<24x128xf32>
    %65 = arith.addf %63, %64 : vector<24x128xf32>
    %66 = vector.extract_strided_slice %14 {offsets = [624, 0], sizes = [24, 128], strides = [1, 1]} : vector<864x128xf32> to vector<24x128xf32>
    %67 = arith.addf %65, %66 : vector<24x128xf32>
    %68 = vector.extract_strided_slice %14 {offsets = [648, 0], sizes = [24, 128], strides = [1, 1]} : vector<864x128xf32> to vector<24x128xf32>
    %69 = arith.addf %67, %68 : vector<24x128xf32>
    %70 = vector.extract_strided_slice %14 {offsets = [672, 0], sizes = [24, 128], strides = [1, 1]} : vector<864x128xf32> to vector<24x128xf32>
    %71 = arith.addf %69, %70 : vector<24x128xf32>
    %72 = vector.extract_strided_slice %14 {offsets = [696, 0], sizes = [24, 128], strides = [1, 1]} : vector<864x128xf32> to vector<24x128xf32>
    %73 = arith.addf %71, %72 : vector<24x128xf32>
    %74 = vector.extract_strided_slice %14 {offsets = [720, 0], sizes = [24, 128], strides = [1, 1]} : vector<864x128xf32> to vector<24x128xf32>
    %75 = arith.addf %73, %74 : vector<24x128xf32>
    %76 = vector.extract_strided_slice %14 {offsets = [744, 0], sizes = [24, 128], strides = [1, 1]} : vector<864x128xf32> to vector<24x128xf32>
    %77 = arith.addf %75, %76 : vector<24x128xf32>
    %78 = vector.extract_strided_slice %14 {offsets = [768, 0], sizes = [24, 128], strides = [1, 1]} : vector<864x128xf32> to vector<24x128xf32>
    %79 = arith.addf %77, %78 : vector<24x128xf32>
    %80 = vector.extract_strided_slice %14 {offsets = [792, 0], sizes = [24, 128], strides = [1, 1]} : vector<864x128xf32> to vector<24x128xf32>
    %81 = arith.addf %79, %80 : vector<24x128xf32>
    %82 = vector.extract_strided_slice %14 {offsets = [816, 0], sizes = [24, 128], strides = [1, 1]} : vector<864x128xf32> to vector<24x128xf32>
    %83 = arith.addf %81, %82 : vector<24x128xf32>
    %84 = vector.extract_strided_slice %14 {offsets = [840, 0], sizes = [24, 128], strides = [1, 1]} : vector<864x128xf32> to vector<24x128xf32>
    %85 = arith.addf %83, %84 : vector<24x128xf32>
    %c0_12 = arith.constant 0 : index
    %c0_13 = arith.constant 0 : index
    %86 = vector.load %arg6[%c0_12, %c0_13] : memref<128x8xf32, #tpu.memory_space<vmem>>, vector<128x8xf32>
    %cst_14 = arith.constant dense<0.000000e+00> : vector<24x8xf32>
    %87 = tpu.matmul %85, %86, %cst_14 {dimension_numbers = #tpu.dot_dimension_numbers<[1], [0], [0], [1], [0, 0, 1, 1], [], []>} : vector<24x128xf32>, vector<128x8xf32>, vector<24x8xf32> -> vector<24x8xf32>
    %c0_15 = arith.constant 0 : index
    %c0_16 = arith.constant 0 : index
    %88 = vector.load %arg7[%c0_15, %c0_16] : memref<1x8xf32, #tpu.memory_space<vmem>>, vector<1x8xf32>
    %cst_17 = arith.constant 3.600000e+01 : f32
    %89 = vector.broadcast %cst_17 : f32 to vector<1x8xf32>
    %90 = arith.mulf %89, %88 : vector<1x8xf32>
    %91 = vector.broadcast %90 : vector<1x8xf32> to vector<24x8xf32>
    %92 = arith.addf %87, %91 : vector<24x8xf32>
    %93 = arith.mulf %92, %92 : vector<24x8xf32>
    %cst_18 = arith.constant dense<0.000000e+00> : vector<24xf32>
    %94 = vector.multi_reduction <add>, %93, %cst_18 [1] : vector<24x8xf32> to vector<24xf32>
    %95 = vector.shape_cast %94 : vector<24xf32> to vector<24x1xf32>
    %cst_19 = arith.constant 1.000000e+00 : f32
    %96 = vector.broadcast %cst_19 : f32 to vector<24x1xf32>
    %97 = arith.addf %96, %95 : vector<24x1xf32>
    %98 = tpu.reciprocal %97 {approx = true} : vector<24x1xf32> -> vector<24x1xf32>
    %99 = arith.mulf %95, %98 : vector<24x1xf32>
    %cst_20 = arith.constant 1.000000e-16 : f32
    %100 = vector.broadcast %cst_20 : f32 to vector<24x1xf32>
    %101 = arith.addf %95, %100 : vector<24x1xf32>
    %102 = math.rsqrt %101 : vector<24x1xf32>
    %103 = arith.mulf %99, %102 : vector<24x1xf32>
    %104 = vector.broadcast %103 : vector<24x1xf32> to vector<24x8xf32>
    %105 = arith.mulf %92, %104 : vector<24x8xf32>
    %c0_21 = arith.constant 0 : index
    %c0_22 = arith.constant 0 : index
    %106 = vector.load %arg8[%c0_21, %c0_22] : memref<8x8xf32, #tpu.memory_space<vmem>>, vector<8x8xf32>
    %cst_23 = arith.constant dense<0.000000e+00> : vector<24x8xf32>
    %107 = tpu.matmul %105, %106, %cst_23 {dimension_numbers = #tpu.dot_dimension_numbers<[1], [0], [0], [1], [0, 0, 1, 1], [], []>} : vector<24x8xf32>, vector<8x8xf32>, vector<24x8xf32> -> vector<24x8xf32>
    %c0_24 = arith.constant 0 : index
    %c0_25 = arith.constant 0 : index
    %108 = vector.load %arg9[%c0_24, %c0_25] : memref<1x8xf32, #tpu.memory_space<vmem>>, vector<1x8xf32>
    %109 = vector.broadcast %108 : vector<1x8xf32> to vector<24x8xf32>
    %110 = arith.addf %107, %109 : vector<24x8xf32>
    %cst_26 = arith.constant 0.000000e+00 : f32
    %111 = vector.broadcast %cst_26 : f32 to vector<24x8xf32>
    %112 = arith.maximumf %110, %111 : vector<24x8xf32>
    %c0_27 = arith.constant 0 : index
    %c0_28 = arith.constant 0 : index
    %113 = vector.load %arg10[%c0_27, %c0_28] : memref<8x128xf32, #tpu.memory_space<vmem>>, vector<8x128xf32>
    %cst_29 = arith.constant dense<0.000000e+00> : vector<24x128xf32>
    %114 = tpu.matmul %112, %113, %cst_29 {dimension_numbers = #tpu.dot_dimension_numbers<[1], [0], [0], [1], [0, 0, 1, 1], [], []>} : vector<24x8xf32>, vector<8x128xf32>, vector<24x128xf32> -> vector<24x128xf32>
    %c0_30 = arith.constant 0 : index
    %c0_31 = arith.constant 0 : index
    %115 = vector.load %arg11[%c0_30, %c0_31] : memref<1x128xf32, #tpu.memory_space<vmem>>, vector<1x128xf32>
    %116 = vector.broadcast %115 : vector<1x128xf32> to vector<24x128xf32>
    %117 = arith.addf %114, %116 : vector<24x128xf32>
    %cst_32 = arith.constant 0.000000e+00 : f32
    %118 = vector.broadcast %cst_32 : f32 to vector<24x128xf32>
    %119 = arith.maximumf %117, %118 : vector<24x128xf32>
    %c0_33 = arith.constant 0 : index
    %c0_34 = arith.constant 0 : index
    %120 = vector.load %arg12[%c0_33, %c0_34] : memref<128x8xf32, #tpu.memory_space<vmem>>, vector<128x8xf32>
    %cst_35 = arith.constant dense<0.000000e+00> : vector<24x8xf32>
    %121 = tpu.matmul %119, %120, %cst_35 {dimension_numbers = #tpu.dot_dimension_numbers<[1], [0], [0], [1], [0, 0, 1, 1], [], []>} : vector<24x128xf32>, vector<128x8xf32>, vector<24x8xf32> -> vector<24x8xf32>
    %c0_36 = arith.constant 0 : index
    %c0_37 = arith.constant 0 : index
    %122 = vector.load %arg13[%c0_36, %c0_37] : memref<1x8xf32, #tpu.memory_space<vmem>>, vector<1x8xf32>
    %123 = vector.broadcast %122 : vector<1x8xf32> to vector<24x8xf32>
    %124 = arith.addf %121, %123 : vector<24x8xf32>
    %125 = arith.mulf %124, %124 : vector<24x8xf32>
    %cst_38 = arith.constant dense<0.000000e+00> : vector<24xf32>
    %126 = vector.multi_reduction <add>, %125, %cst_38 [1] : vector<24x8xf32> to vector<24xf32>
    %127 = vector.shape_cast %126 : vector<24xf32> to vector<24x1xf32>
    %cst_39 = arith.constant 1.000000e+00 : f32
    %128 = vector.broadcast %cst_39 : f32 to vector<24x1xf32>
    %129 = arith.addf %128, %127 : vector<24x1xf32>
    %130 = tpu.reciprocal %129 {approx = true} : vector<24x1xf32> -> vector<24x1xf32>
    %131 = arith.mulf %127, %130 : vector<24x1xf32>
    %cst_40 = arith.constant 1.000000e-16 : f32
    %132 = vector.broadcast %cst_40 : f32 to vector<24x1xf32>
    %133 = arith.addf %127, %132 : vector<24x1xf32>
    %134 = math.rsqrt %133 : vector<24x1xf32>
    %135 = arith.mulf %131, %134 : vector<24x1xf32>
    %136 = vector.broadcast %135 : vector<24x1xf32> to vector<24x8xf32>
    %137 = arith.mulf %124, %136 : vector<24x8xf32>
    %c0_41 = arith.constant 0 : index
    %c0_42 = arith.constant 0 : index
    %138 = vector.load %arg14[%c0_41, %c0_42] : memref<8x8xf32, #tpu.memory_space<vmem>>, vector<8x8xf32>
    %cst_43 = arith.constant dense<0.000000e+00> : vector<24x8xf32>
    %139 = tpu.matmul %137, %138, %cst_43 {dimension_numbers = #tpu.dot_dimension_numbers<[1], [0], [0], [1], [0, 0, 1, 1], [], []>} : vector<24x8xf32>, vector<8x8xf32>, vector<24x8xf32> -> vector<24x8xf32>
    %c0_44 = arith.constant 0 : index
    %c0_45 = arith.constant 0 : index
    %140 = vector.load %arg15[%c0_44, %c0_45] : memref<1x8xf32, #tpu.memory_space<vmem>>, vector<1x8xf32>
    %141 = vector.broadcast %140 : vector<1x8xf32> to vector<24x8xf32>
    %142 = arith.addf %139, %141 : vector<24x8xf32>
    %cst_46 = arith.constant 0.000000e+00 : f32
    %143 = vector.broadcast %cst_46 : f32 to vector<24x8xf32>
    %144 = arith.maximumf %142, %143 : vector<24x8xf32>
    %c0_47 = arith.constant 0 : index
    %c0_48 = arith.constant 0 : index
    %145 = vector.load %arg16[%c0_47, %c0_48] : memref<8x128xf32, #tpu.memory_space<vmem>>, vector<8x128xf32>
    %cst_49 = arith.constant dense<0.000000e+00> : vector<24x128xf32>
    %146 = tpu.matmul %144, %145, %cst_49 {dimension_numbers = #tpu.dot_dimension_numbers<[1], [0], [0], [1], [0, 0, 1, 1], [], []>} : vector<24x8xf32>, vector<8x128xf32>, vector<24x128xf32> -> vector<24x128xf32>
    %c0_50 = arith.constant 0 : index
    %c0_51 = arith.constant 0 : index
    %147 = vector.load %arg17[%c0_50, %c0_51] : memref<1x128xf32, #tpu.memory_space<vmem>>, vector<1x128xf32>
    %148 = vector.broadcast %147 : vector<1x128xf32> to vector<24x128xf32>
    %149 = arith.addf %146, %148 : vector<24x128xf32>
    %cst_52 = arith.constant 0.000000e+00 : f32
    %150 = vector.broadcast %cst_52 : f32 to vector<24x128xf32>
    %151 = arith.maximumf %149, %150 : vector<24x128xf32>
    %c0_53 = arith.constant 0 : index
    %c0_54 = arith.constant 0 : index
    %152 = vector.load %arg18[%c0_53, %c0_54] : memref<128x8xf32, #tpu.memory_space<vmem>>, vector<128x8xf32>
    %cst_55 = arith.constant dense<0.000000e+00> : vector<24x8xf32>
    %153 = tpu.matmul %151, %152, %cst_55 {dimension_numbers = #tpu.dot_dimension_numbers<[1], [0], [0], [1], [0, 0, 1, 1], [], []>} : vector<24x128xf32>, vector<128x8xf32>, vector<24x8xf32> -> vector<24x8xf32>
    %c0_56 = arith.constant 0 : index
    %c0_57 = arith.constant 0 : index
    %154 = vector.load %arg19[%c0_56, %c0_57] : memref<1x8xf32, #tpu.memory_space<vmem>>, vector<1x8xf32>
    %155 = vector.broadcast %154 : vector<1x8xf32> to vector<24x8xf32>
    %156 = arith.addf %153, %155 : vector<24x8xf32>
    %157 = arith.mulf %156, %156 : vector<24x8xf32>
    %cst_58 = arith.constant dense<0.000000e+00> : vector<24xf32>
    %158 = vector.multi_reduction <add>, %157, %cst_58 [1] : vector<24x8xf32> to vector<24xf32>
    %159 = vector.shape_cast %158 : vector<24xf32> to vector<24x1xf32>
    %cst_59 = arith.constant 1.000000e+00 : f32
    %160 = vector.broadcast %cst_59 : f32 to vector<24x1xf32>
    %161 = arith.addf %160, %159 : vector<24x1xf32>
    %162 = tpu.reciprocal %161 {approx = true} : vector<24x1xf32> -> vector<24x1xf32>
    %163 = arith.mulf %159, %162 : vector<24x1xf32>
    %cst_60 = arith.constant 1.000000e-16 : f32
    %164 = vector.broadcast %cst_60 : f32 to vector<24x1xf32>
    %165 = arith.addf %159, %164 : vector<24x1xf32>
    %166 = math.rsqrt %165 : vector<24x1xf32>
    %167 = arith.mulf %163, %166 : vector<24x1xf32>
    %168 = vector.broadcast %167 : vector<24x1xf32> to vector<24x8xf32>
    %169 = arith.mulf %156, %168 : vector<24x8xf32>
    %170 = arith.addf %169, %105 : vector<24x8xf32>
    %171 = arith.mulf %170, %170 : vector<24x8xf32>
    %cst_61 = arith.constant dense<0.000000e+00> : vector<24xf32>
    %172 = vector.multi_reduction <add>, %171, %cst_61 [1] : vector<24x8xf32> to vector<24xf32>
    %173 = vector.shape_cast %172 : vector<24xf32> to vector<24x1xf32>
    %cst_62 = arith.constant 1.000000e+00 : f32
    %174 = vector.broadcast %cst_62 : f32 to vector<24x1xf32>
    %175 = arith.addf %174, %173 : vector<24x1xf32>
    %176 = tpu.reciprocal %175 {approx = true} : vector<24x1xf32> -> vector<24x1xf32>
    %177 = arith.mulf %173, %176 : vector<24x1xf32>
    %cst_63 = arith.constant 1.000000e-16 : f32
    %178 = vector.broadcast %cst_63 : f32 to vector<24x1xf32>
    %179 = arith.addf %173, %178 : vector<24x1xf32>
    %180 = math.rsqrt %179 : vector<24x1xf32>
    %181 = arith.mulf %177, %180 : vector<24x1xf32>
    %182 = vector.broadcast %181 : vector<24x1xf32> to vector<24x8xf32>
    %183 = arith.mulf %170, %182 : vector<24x8xf32>
    %c0_64 = arith.constant 0 : index
    %c0_65 = arith.constant 0 : index
    %184 = vector.load %arg20[%c0_64, %c0_65] : memref<24x8xf32, #tpu.memory_space<vmem>>, vector<24x8xf32>
    tpu.vector_store %arg20[%c0_64, %c0_65], %183 {strides = array<i32>} : memref<24x8xf32, #tpu.memory_space<vmem>>, vector<24x8xf32>,
    return
  }
  func.func @transform_0(%arg0: i32) -> (i32, i32) {
    %c0_i32 = arith.constant 0 : i32
    %c0_i32_0 = arith.constant 0 : i32
    return %arg0, %c0_i32 : i32, i32
  }
  func.func @transform_1(%arg0: i32) -> (i32, i32) {
    %c0_i32 = arith.constant 0 : i32
    %c0_i32_0 = arith.constant 0 : i32
    %c0_i32_1 = arith.constant 0 : i32
    return %c0_i32, %c0_i32_0 : i32, i32
  }
  func.func @transform_2(%arg0: i32) -> (i32, i32) {
    %c0_i32 = arith.constant 0 : i32
    %c0_i32_0 = arith.constant 0 : i32
    %c0_i32_1 = arith.constant 0 : i32
    return %c0_i32, %c0_i32_0 : i32, i32
  }
  func.func @transform_3(%arg0: i32) -> (i32, i32) {
    %c0_i32 = arith.constant 0 : i32
    %c0_i32_0 = arith.constant 0 : i32
    %c0_i32_1 = arith.constant 0 : i32
    return %c0_i32, %c0_i32_0 : i32, i32
  }
  func.func @transform_4(%arg0: i32) -> (i32, i32) {
    %c0_i32 = arith.constant 0 : i32
    %c0_i32_0 = arith.constant 0 : i32
    %c0_i32_1 = arith.constant 0 : i32
    return %c0_i32, %c0_i32_0 : i32, i32
  }
  func.func @transform_5(%arg0: i32) -> (i32, i32) {
    %c0_i32 = arith.constant 0 : i32
    %c0_i32_0 = arith.constant 0 : i32
    %c0_i32_1 = arith.constant 0 : i32
    return %c0_i32, %c0_i32_0 : i32, i32
  }
  func.func @transform_6(%arg0: i32) -> (i32, i32) {
    %c0_i32 = arith.constant 0 : i32
    %c0_i32_0 = arith.constant 0 : i32
    %c0_i32_1 = arith.constant 0 : i32
    return %c0_i32, %c0_i32_0 : i32, i32
  }
  func.func @transform_7(%arg0: i32) -> (i32, i32) {
    %c0_i32 = arith.constant 0 : i32
    %c0_i32_0 = arith.constant 0 : i32
    %c0_i32_1 = arith.constant 0 : i32
    return %c0_i32, %c0_i32_0 : i32, i32
  }
  func.func @transform_8(%arg0: i32) -> (i32, i32) {
    %c0_i32 = arith.constant 0 : i32
    %c0_i32_0 = arith.constant 0 : i32
    %c0_i32_1 = arith.constant 0 : i32
    return %c0_i32, %c0_i32_0 : i32, i32
  }
  func.func @transform_9(%arg0: i32) -> (i32, i32) {
    %c0_i32 = arith.constant 0 : i32
    %c0_i32_0 = arith.constant 0 : i32
    %c0_i32_1 = arith.constant 0 : i32
    return %c0_i32, %c0_i32_0 : i32, i32
  }
  func.func @transform_10(%arg0: i32) -> (i32, i32) {
    %c0_i32 = arith.constant 0 : i32
    %c0_i32_0 = arith.constant 0 : i32
    %c0_i32_1 = arith.constant 0 : i32
    return %c0_i32, %c0_i32_0 : i32, i32
  }
  func.func @transform_11(%arg0: i32) -> (i32, i32) {
    %c0_i32 = arith.constant 0 : i32
    %c0_i32_0 = arith.constant 0 : i32
    %c0_i32_1 = arith.constant 0 : i32
    return %c0_i32, %c0_i32_0 : i32, i32
  }
  func.func @transform_12(%arg0: i32) -> (i32, i32) {
    %c0_i32 = arith.constant 0 : i32
    %c0_i32_0 = arith.constant 0 : i32
    %c0_i32_1 = arith.constant 0 : i32
    return %c0_i32, %c0_i32_0 : i32, i32
  }
  func.func @transform_13(%arg0: i32) -> (i32, i32) {
    %c0_i32 = arith.constant 0 : i32
    %c0_i32_0 = arith.constant 0 : i32
    %c0_i32_1 = arith.constant 0 : i32
    return %c0_i32, %c0_i32_0 : i32, i32
  }
  func.func @transform_14(%arg0: i32) -> (i32, i32) {
    %c0_i32 = arith.constant 0 : i32
    %c0_i32_0 = arith.constant 0 : i32
    %c0_i32_1 = arith.constant 0 : i32
    return %c0_i32, %c0_i32_0 : i32, i32
  }
  func.func @transform_15(%arg0: i32) -> (i32, i32) {
    %c0_i32 = arith.constant 0 : i32
    %c0_i32_0 = arith.constant 0 : i32
    %c0_i32_1 = arith.constant 0 : i32
    return %c0_i32, %c0_i32_0 : i32, i32
  }
  func.func @transform_16(%arg0: i32) -> (i32, i32) {
    %c0_i32 = arith.constant 0 : i32
    %c0_i32_0 = arith.constant 0 : i32
    %c0_i32_1 = arith.constant 0 : i32
    return %c0_i32, %c0_i32_0 : i32, i32
  }
  func.func @transform_17(%arg0: i32) -> (i32, i32) {
    %c0_i32 = arith.constant 0 : i32
    %c0_i32_0 = arith.constant 0 : i32
    %c0_i32_1 = arith.constant 0 : i32
    return %c0_i32, %c0_i32_0 : i32, i32
  }
  func.func @transform_18(%arg0: i32) -> (i32, i32) {
    %c0_i32 = arith.constant 0 : i32
    %c0_i32_0 = arith.constant 0 : i32
    %c0_i32_1 = arith.constant 0 : i32
    return %c0_i32, %c0_i32_0 : i32, i32
  }
  func.func @transform_19(%arg0: i32) -> (i32, i32) {
    %c0_i32 = arith.constant 0 : i32
    %c0_i32_0 = arith.constant 0 : i32
    return %arg0, %c0_i32 : i32, i32
  }
}

</mosaic_0001>

<llo_original>
// kernel: residual_block_forward.1
$region0: #{residual_block_forward.1}
  #allocation0 [shape = 'u32[]', space=smem, size = 0x4, offset = 0x4, fixed_abs, tag = 'smem constant byte address 0x4 - core index']
  #allocation1 [shape = 'u32[144,128]{1,0:T(1,128)}', space=vmem, size = 0x12000, scoped, tag = 'internal scratch']
  %s0 = inlined_call_operand.vmem [shape: f32[864,8], index: 0, kind: input, shape index: {}]
  %s1 = inlined_call_operand.vmem [shape: f32[8,8], index: 1, kind: input, shape index: {}]
  %s2 = inlined_call_operand.vmem [shape: f32[1,8], index: 2, kind: input, shape index: {}]
  %s3 = inlined_call_operand.vmem [shape: f32[8,128], index: 3, kind: input, shape index: {}]
  %s4 = inlined_call_operand.vmem [shape: f32[1,128], index: 4, kind: input, shape index: {}]
  %s5 = inlined_call_operand.vmem [shape: f32[128,8], index: 5, kind: input, shape index: {}]
  %s6 = inlined_call_operand.vmem [shape: f32[1,8], index: 6, kind: input, shape index: {}]
  %s7 = inlined_call_operand.vmem [shape: f32[8,8], index: 7, kind: input, shape index: {}]
  %s8 = inlined_call_operand.vmem [shape: f32[1,8], index: 8, kind: input, shape index: {}]
  %s9 = inlined_call_operand.vmem [shape: f32[8,128], index: 9, kind: input, shape index: {}]
  %s10 = inlined_call_operand.vmem [shape: f32[1,128], index: 10, kind: input, shape index: {}]
  %s11 = inlined_call_operand.vmem [shape: f32[128,8], index: 11, kind: input, shape index: {}]
  %s12 = inlined_call_operand.vmem [shape: f32[1,8], index: 12, kind: input, shape index: {}]
  %s13 = inlined_call_operand.vmem [shape: f32[8,8], index: 13, kind: input, shape index: {}]
  %s14 = inlined_call_operand.vmem [shape: f32[1,8], index: 14, kind: input, shape index: {}]
  %s15 = inlined_call_operand.vmem [shape: f32[8,128], index: 15, kind: input, shape index: {}]
  %s16 = inlined_call_operand.vmem [shape: f32[1,128], index: 16, kind: input, shape index: {}]
  %s17 = inlined_call_operand.vmem [shape: f32[128,8], index: 17, kind: input, shape index: {}]
  %s18 = inlined_call_operand.vmem [shape: f32[1,8], index: 18, kind: input, shape index: {}]
  %s19 = inlined_call_operand.vmem [shape: f32[24,8], index: 19, kind: output, shape index: {}]
  %s20 = sld [smem:[#allocation0]]
  $region86: #{residual_block_forward.1} parent=0
    _
  %s22 = ssub.s32 1, %s20
  %s23 = scalar_select 0, %s22, %s20
  // Predicated region
  $region2: #{residual_block_forward.1} parent=0 // pred_check
    _
  $region3: #{residual_block_forward.1} parent=0 // pred_check_branch
    %25 = sbr.rel (0) target = $region5
  $region4: #{residual_block_forward.1} parent=0 // pred_region
    _
  $region5: #{residual_block_forward.1} parent=0 // pred_fallthru
    _
  // Predicated region
  $region6: #{residual_block_forward.1} parent=0 // pred_check
    _
  $region7: #{residual_block_forward.1} parent=0 // pred_check_branch
    %27 = sbr.rel (0) target = $region9
  $region8: #{residual_block_forward.1} parent=0 // pred_region
    _
  $region9: #{residual_block_forward.1} parent=0 // pred_fallthru
    _
  // Predicated region
  $region10: #{residual_block_forward.1} parent=0 // pred_check
    _
  $region11: #{residual_block_forward.1} parent=0 // pred_check_branch
    %29 = sbr.rel (0) target = $region13
  $region12: #{residual_block_forward.1} parent=0 // pred_region
    _
  $region13: #{residual_block_forward.1} parent=0 // pred_fallthru
    _
  // Predicated region
  $region14: #{residual_block_forward.1} parent=0 // pred_check
    _
  $region15: #{residual_block_forward.1} parent=0 // pred_check_branch
    %31 = sbr.rel (0) target = $region17
  $region16: #{residual_block_forward.1} parent=0 // pred_region
    _
  $region17: #{residual_block_forward.1} parent=0 // pred_fallthru
    _
  // Predicated region
  $region18: #{residual_block_forward.1} parent=0 // pred_check
    _
  $region19: #{residual_block_forward.1} parent=0 // pred_check_branch
    %33 = sbr.rel (0) target = $region21
  $region20: #{residual_block_forward.1} parent=0 // pred_region
    _
  $region21: #{residual_block_forward.1} parent=0 // pred_fallthru
    _
  // Predicated region
  $region22: #{residual_block_forward.1} parent=0 // pred_check
    _
  $region23: #{residual_block_forward.1} parent=0 // pred_check_branch
    %35 = sbr.rel (0) target = $region25
  $region24: #{residual_block_forward.1} parent=0 // pred_region
    _
  $region25: #{residual_block_forward.1} parent=0 // pred_fallthru
    _
  // Predicated region
  $region26: #{residual_block_forward.1} parent=0 // pred_check
    _
  $region27: #{residual_block_forward.1} parent=0 // pred_check_branch
    %37 = sbr.rel (0) target = $region29
  $region28: #{residual_block_forward.1} parent=0 // pred_region
    _
  $region29: #{residual_block_forward.1} parent=0 // pred_fallthru
    _
  // Predicated region
  $region30: #{residual_block_forward.1} parent=0 // pred_check
    _
  $region31: #{residual_block_forward.1} parent=0 // pred_check_branch
    %39 = sbr.rel (0) target = $region33
  $region32: #{residual_block_forward.1} parent=0 // pred_region
    _
  $region33: #{residual_block_forward.1} parent=0 // pred_fallthru
    _
  // Predicated region
  $region34: #{residual_block_forward.1} parent=0 // pred_check
    _
  $region35: #{residual_block_forward.1} parent=0 // pred_check_branch
    %41 = sbr.rel (0) target = $region37
  $region36: #{residual_block_forward.1} parent=0 // pred_region
    _
  $region37: #{residual_block_forward.1} parent=0 // pred_fallthru
    _
  // Predicated region
  $region38: #{residual_block_forward.1} parent=0 // pred_check
    _
  $region39: #{residual_block_forward.1} parent=0 // pred_check_branch
    %43 = sbr.rel (0) target = $region41
  $region40: #{residual_block_forward.1} parent=0 // pred_region
    _
  $region41: #{residual_block_forward.1} parent=0 // pred_fallthru
    _
  // Predicated region
  $region42: #{residual_block_forward.1} parent=0 // pred_check
    _
  $region43: #{residual_block_forward.1} parent=0 // pred_check_branch
    %45 = sbr.rel (0) target = $region45
  $region44: #{residual_block_forward.1} parent=0 // pred_region
    _
  $region45: #{residual_block_forward.1} parent=0 // pred_fallthru
    _
  // Predicated region
  $region46: #{residual_block_forward.1} parent=0 // pred_check
    _
  $region47: #{residual_block_forward.1} parent=0 // pred_check_branch
    %47 = sbr.rel (0) target = $region49
  $region48: #{residual_block_forward.1} parent=0 // pred_region
    _
  $region49: #{residual_block_forward.1} parent=0 // pred_fallthru
    _
  // Predicated region
  $region50: #{residual_block_forward.1} parent=0 // pred_check
    _
  $region51: #{residual_block_forward.1} parent=0 // pred_check_branch
    %49 = sbr.rel (0) target = $region53
  $region52: #{residual_block_forward.1} parent=0 // pred_region
    _
  $region53: #{residual_block_forward.1} parent=0 // pred_fallthru
    _
  // Predicated region
  $region54: #{residual_block_forward.1} parent=0 // pred_check
    _
  $region55: #{residual_block_forward.1} parent=0 // pred_check_branch
    %51 = sbr.rel (0) target = $region57
  $region56: #{residual_block_forward.1} parent=0 // pred_region
    _
  $region57: #{residual_block_forward.1} parent=0 // pred_fallthru
    _
  // Predicated region
  $region58: #{residual_block_forward.1} parent=0 // pred_check
    _
  $region59: #{residual_block_forward.1} parent=0 // pred_check_branch
    %53 = sbr.rel (0) target = $region61
  $region60: #{residual_block_forward.1} parent=0 // pred_region
    _
  $region61: #{residual_block_forward.1} parent=0 // pred_fallthru
    _
  // Predicated region
  $region62: #{residual_block_forward.1} parent=0 // pred_check
    _
  $region63: #{residual_block_forward.1} parent=0 // pred_check_branch
    %55 = sbr.rel (0) target = $region65
  $region64: #{residual_block_forward.1} parent=0 // pred_region
    _
  $region65: #{residual_block_forward.1} parent=0 // pred_fallthru
    _
  // Predicated region
  $region66: #{residual_block_forward.1} parent=0 // pred_check
    _
  $region67: #{residual_block_forward.1} parent=0 // pred_check_branch
    %57 = sbr.rel (0) target = $region69
  $region68: #{residual_block_forward.1} parent=0 // pred_region
    _
  $region69: #{residual_block_forward.1} parent=0 // pred_fallthru
    _
  // Predicated region
  $region70: #{residual_block_forward.1} parent=0 // pred_check
    _
  $region71: #{residual_block_forward.1} parent=0 // pred_check_branch
    %59 = sbr.rel (0) target = $region73
  $region72: #{residual_block_forward.1} parent=0 // pred_region
    _
  $region73: #{residual_block_forward.1} parent=0 // pred_fallthru
    _
  // Predicated region
  $region74: #{residual_block_forward.1} parent=0 // pred_check
    _
  $region75: #{residual_block_forward.1} parent=0 // pred_check_branch
    %61 = sbr.rel (0) target = $region77
  $region76: #{residual_block_forward.1} parent=0 // pred_region
    _
  $region77: #{residual_block_forward.1} parent=0 // pred_fallthru
    _
  %v62 = vld [vmem:[%s0] sm:$0xff]
  %v63 = vld [vmem:[%s0 + $0x8] sm:$0xff]
  %v64 = vld [vmem:[%s0 + $0x10] sm:$0xff]
  %v65 = vld [vmem:[%s0 + $0x18] sm:$0xff]
  %v66 = vld [vmem:[%s0 + $0x20] sm:$0xff]
  %v67 = vld [vmem:[%s0 + $0x28] sm:$0xff]
  %v68 = vld [vmem:[%s0 + $0x30] sm:$0xff]
  %v69 = vld [vmem:[%s0 + $0x38] sm:$0xff]
  %v70 = vld [vmem:[%s0 + $0x40] sm:$0xff]
  %v71 = vld [vmem:[%s0 + $0x48] sm:$0xff]
  %v72 = vld [vmem:[%s0 + $0x50] sm:$0xff]
  %v73 = vld [vmem:[%s0 + $0x58] sm:$0xff]
  %v74 = vld [vmem:[%s0 + $0x60] sm:$0xff]
  %v75 = vld [vmem:[%s0 + $0x68] sm:$0xff]
  %v76 = vld [vmem:[%s0 + $0x70] sm:$0xff]
  %v77 = vld [vmem:[%s0 + $0x78] sm:$0xff]
  %v78 = vld [vmem:[%s0 + $0x80] sm:$0xff]
  %v79 = vld [vmem:[%s0 + $0x88] sm:$0xff]
  %v80 = vld [vmem:[%s0 + $0x90] sm:$0xff]
  %v81 = vld [vmem:[%s0 + $0x98] sm:$0xff]
  %v82 = vld [vmem:[%s0 + $0xa0] sm:$0xff]
  %v83 = vld [vmem:[%s0 + $0xa8] sm:$0xff]
  %v84 = vld [vmem:[%s0 + $0xb0] sm:$0xff]
  %v85 = vld [vmem:[%s0 + $0xb8] sm:$0xff]
  %v86 = vld [vmem:[%s0 + $0xc0] sm:$0xff]
  %v87 = vld [vmem:[%s0 + $0xc8] sm:$0xff]
  %v88 = vld [vmem:[%s0 + $0xd0] sm:$0xff]
  %v89 = vld [vmem:[%s0 + $0xd8] sm:$0xff]
  %v90 = vld [vmem:[%s0 + $0xe0] sm:$0xff]
  %v91 = vld [vmem:[%s0 + $0xe8] sm:$0xff]
  %v92 = vld [vmem:[%s0 + $0xf0] sm:$0xff]
  %v93 = vld [vmem:[%s0 + $0xf8] sm:$0xff]
  %v94 = vld [vmem:[%s0 + $0x100] sm:$0xff]
  %v95 = vld [vmem:[%s0 + $0x108] sm:$0xff]
  %v96 = vld [vmem:[%s0 + $0x110] sm:$0xff]
  %v97 = vld [vmem:[%s0 + $0x118] sm:$0xff]
  %v98 = vld [vmem:[%s0 + $0x120] sm:$0xff]
  %v99 = vld [vmem:[%s0 + $0x128] sm:$0xff]
  %v100 = vld [vmem:[%s0 + $0x130] sm:$0xff]
  %v101 = vld [vmem:[%s0 + $0x138] sm:$0xff]
  %v102 = vld [vmem:[%s0 + $0x140] sm:$0xff]
  %v103 = vld [vmem:[%s0 + $0x148] sm:$0xff]
  %v104 = vld [vmem:[%s0 + $0x150] sm:$0xff]
  %v105 = vld [vmem:[%s0 + $0x158] sm:$0xff]
  %v106 = vld [vmem:[%s0 + $0x160] sm:$0xff]
  %v107 = vld [vmem:[%s0 + $0x168] sm:$0xff]
  %v108 = vld [vmem:[%s0 + $0x170] sm:$0xff]
  %v109 = vld [vmem:[%s0 + $0x178] sm:$0xff]
  %v110 = vld [vmem:[%s0 + $0x180] sm:$0xff]
  %v111 = vld [vmem:[%s0 + $0x188] sm:$0xff]
  %v112 = vld [vmem:[%s0 + $0x190] sm:$0xff]
  %v113 = vld [vmem:[%s0 + $0x198] sm:$0xff]
  %v114 = vld [vmem:[%s0 + $0x1a0] sm:$0xff]
  %v115 = vld [vmem:[%s0 + $0x1a8] sm:$0xff]
  %v116 = vld [vmem:[%s0 + $0x1b0] sm:$0xff]
  %v117 = vld [vmem:[%s0 + $0x1b8] sm:$0xff]
  %v118 = vld [vmem:[%s0 + $0x1c0] sm:$0xff]
  %v119 = vld [vmem:[%s0 + $0x1c8] sm:$0xff]
  %v120 = vld [vmem:[%s0 + $0x1d0] sm:$0xff]
  %v121 = vld [vmem:[%s0 + $0x1d8] sm:$0xff]
  %v122 = vld [vmem:[%s0 + $0x1e0] sm:$0xff]
  %v123 = vld [vmem:[%s0 + $0x1e8] sm:$0xff]
  %v124 = vld [vmem:[%s0 + $0x1f0] sm:$0xff]
  %v125 = vld [vmem:[%s0 + $0x1f8] sm:$0xff]
  %v126 = vld [vmem:[%s0 + $0x200] sm:$0xff]
  %v127 = vld [vmem:[%s0 + $0x208] sm:$0xff]
  %v128 = vld [vmem:[%s0 + $0x210] sm:$0xff]
  %v129 = vld [vmem:[%s0 + $0x218] sm:$0xff]
  %v130 = vld [vmem:[%s0 + $0x220] sm:$0xff]
  %v131 = vld [vmem:[%s0 + $0x228] sm:$0xff]
  %v132 = vld [vmem:[%s0 + $0x230] sm:$0xff]
  %v133 = vld [vmem:[%s0 + $0x238] sm:$0xff]
  %v134 = vld [vmem:[%s0 + $0x240] sm:$0xff]
  %v135 = vld [vmem:[%s0 + $0x248] sm:$0xff]
  %v136 = vld [vmem:[%s0 + $0x250] sm:$0xff]
  %v137 = vld [vmem:[%s0 + $0x258] sm:$0xff]
  %v138 = vld [vmem:[%s0 + $0x260] sm:$0xff]
  %v139 = vld [vmem:[%s0 + $0x268] sm:$0xff]
  %v140 = vld [vmem:[%s0 + $0x270] sm:$0xff]
  %v141 = vld [vmem:[%s0 + $0x278] sm:$0xff]
  %v142 = vld [vmem:[%s0 + $0x280] sm:$0xff]
  %v143 = vld [vmem:[%s0 + $0x288] sm:$0xff]
  %v144 = vld [vmem:[%s0 + $0x290] sm:$0xff]
  %v145 = vld [vmem:[%s0 + $0x298] sm:$0xff]
  %v146 = vld [vmem:[%s0 + $0x2a0] sm:$0xff]
  %v147 = vld [vmem:[%s0 + $0x2a8] sm:$0xff]
  %v148 = vld [vmem:[%s0 + $0x2b0] sm:$0xff]
  %v149 = vld [vmem:[%s0 + $0x2b8] sm:$0xff]
  %v150 = vld [vmem:[%s0 + $0x2c0] sm:$0xff]
  %v151 = vld [vmem:[%s0 + $0x2c8] sm:$0xff]
  %v152 = vld [vmem:[%s0 + $0x2d0] sm:$0xff]
  %v153 = vld [vmem:[%s0 + $0x2d8] sm:$0xff]
  %v154 = vld [vmem:[%s0 + $0x2e0] sm:$0xff]
  %v155 = vld [vmem:[%s0 + $0x2e8] sm:$0xff]
  %v156 = vld [vmem:[%s0 + $0x2f0] sm:$0xff]
  %v157 = vld [vmem:[%s0 + $0x2f8] sm:$0xff]
  %v158 = vld [vmem:[%s0 + $0x300] sm:$0xff]
  %v159 = vld [vmem:[%s0 + $0x308] sm:$0xff]
  %v160 = vld [vmem:[%s0 + $0x310] sm:$0xff]
  %v161 = vld [vmem:[%s0 + $0x318] sm:$0xff]
  %v162 = vld [vmem:[%s0 + $0x320] sm:$0xff]
  %v163 = vld [vmem:[%s0 + $0x328] sm:$0xff]
  %v164 = vld [vmem:[%s0 + $0x330] sm:$0xff]
  %v165 = vld [vmem:[%s0 + $0x338] sm:$0xff]
  %v166 = vld [vmem:[%s0 + $0x340] sm:$0xff]
  %v167 = vld [vmem:[%s0 + $0x348] sm:$0xff]
  %v168 = vld [vmem:[%s0 + $0x350] sm:$0xff]
  %v169 = vld [vmem:[%s0 + $0x358] sm:$0xff]
  %v170 = vld [vmem:[%s1] sm:$0xff]
  %v171 = vld [vmem:[%s2] sm:$0x1]
  %v173 = vlaneseq
  %v174 = vshrl.u32 %v173, 7
  %v175 = vsub.s32 0, %v174
  %v176 = vrot.slane %v171, %v175
  %vm178 = vcmask 64512
  %v180 = vsel %vm178, %v62, 0
  %v183 = vsel %vm178, %v63, 0
  %v186 = vsel %vm178, %v64, 0
  %v189 = vsel %vm178, %v65, 0
  %v192 = vsel %vm178, %v66, 0
  %v195 = vsel %vm178, %v67, 0
  %v198 = vsel %vm178, %v68, 0
  %v201 = vsel %vm178, %v69, 0
  %v204 = vsel %vm178, %v70, 0
  %v207 = vsel %vm178, %v71, 0
  %v210 = vsel %vm178, %v72, 0
  %v213 = vsel %vm178, %v73, 0
  %v216 = vsel %vm178, %v74, 0
  %v219 = vsel %vm178, %v75, 0
  %v222 = vsel %vm178, %v76, 0
  %v225 = vsel %vm178, %v77, 0
  %v228 = vsel %vm178, %v78, 0
  %v231 = vsel %vm178, %v79, 0
  %v234 = vsel %vm178, %v80, 0
  %v237 = vsel %vm178, %v81, 0
  %v240 = vsel %vm178, %v82, 0
  %v243 = vsel %vm178, %v83, 0
  %v246 = vsel %vm178, %v84, 0
  %v249 = vsel %vm178, %v85, 0
  %v252 = vsel %vm178, %v86, 0
  %v255 = vsel %vm178, %v87, 0
  %v258 = vsel %vm178, %v88, 0
  %v261 = vsel %vm178, %v89, 0
  %v264 = vsel %vm178, %v90, 0
  %v267 = vsel %vm178, %v91, 0
  %v270 = vsel %vm178, %v92, 0
  %v273 = vsel %vm178, %v93, 0
  %v276 = vsel %vm178, %v94, 0
  %v279 = vsel %vm178, %v95, 0
  %v282 = vsel %vm178, %v96, 0
  %v285 = vsel %vm178, %v97, 0
  %v288 = vsel %vm178, %v98, 0
  %v291 = vsel %vm178, %v99, 0
  %v294 = vsel %vm178, %v100, 0
  %v297 = vsel %vm178, %v101, 0
  %v300 = vsel %vm178, %v102, 0
  %v303 = vsel %vm178, %v103, 0
  %v306 = vsel %vm178, %v104, 0
  %v309 = vsel %vm178, %v105, 0
  %v312 = vsel %vm178, %v106, 0
  %v315 = vsel %vm178, %v107, 0
  %v318 = vsel %vm178, %v108, 0
  %v321 = vsel %vm178, %v109, 0
  %v324 = vsel %vm178, %v110, 0
  %v327 = vsel %vm178, %v111, 0
  %v330 = vsel %vm178, %v112, 0
  %v333 = vsel %vm178, %v113, 0
  %v336 = vsel %vm178, %v114, 0
  %v339 = vsel %vm178, %v115, 0
  %v342 = vsel %vm178, %v116, 0
  %v345 = vsel %vm178, %v117, 0
  %v348 = vsel %vm178, %v118, 0
  %v351 = vsel %vm178, %v119, 0
  %v354 = vsel %vm178, %v120, 0
  %v357 = vsel %vm178, %v121, 0
  %v360 = vsel %vm178, %v122, 0
  %v363 = vsel %vm178, %v123, 0
  %v366 = vsel %vm178, %v124, 0
  %v369 = vsel %vm178, %v125, 0
  %v372 = vsel %vm178, %v126, 0
  %v375 = vsel %vm178, %v127, 0
  %v378 = vsel %vm178, %v128, 0
  %v381 = vsel %vm178, %v129, 0
  %v384 = vsel %vm178, %v130, 0
  %v387 = vsel %vm178, %v131, 0
  %v390 = vsel %vm178, %v132, 0
  %v393 = vsel %vm178, %v133, 0
  %v396 = vsel %vm178, %v134, 0
  %v399 = vsel %vm178, %v135, 0
  %v402 = vsel %vm178, %v136, 0
  %v405 = vsel %vm178, %v137, 0
  %v408 = vsel %vm178, %v138, 0
  %v411 = vsel %vm178, %v139, 0
  %v414 = vsel %vm178, %v140, 0
  %v417 = vsel %vm178, %v141, 0
  %v420 = vsel %vm178, %v142, 0
  %v423 = vsel %vm178, %v143, 0
  %v426 = vsel %vm178, %v144, 0
  %v429 = vsel %vm178, %v145, 0
  %v432 = vsel %vm178, %v146, 0
  %v435 = vsel %vm178, %v147, 0
  %v438 = vsel %vm178, %v148, 0
  %v441 = vsel %vm178, %v149, 0
  %v444 = vsel %vm178, %v150, 0
  %v447 = vsel %vm178, %v151, 0
  %v450 = vsel %vm178, %v152, 0
  %v453 = vsel %vm178, %v153, 0
  %v456 = vsel %vm178, %v154, 0
  %v459 = vsel %vm178, %v155, 0
  %v462 = vsel %vm178, %v156, 0
  %v465 = vsel %vm178, %v157, 0
  %v468 = vsel %vm178, %v158, 0
  %v471 = vsel %vm178, %v159, 0
  %v474 = vsel %vm178, %v160, 0
  %v477 = vsel %vm178, %v161, 0
  %v480 = vsel %vm178, %v162, 0
  %v483 = vsel %vm178, %v163, 0
  %v486 = vsel %vm178, %v164, 0
  %v489 = vsel %vm178, %v165, 0
  %v492 = vsel %vm178, %v166, 0
  %v495 = vsel %vm178, %v167, 0
  %v498 = vsel %vm178, %v168, 0
  %v501 = vsel %vm178, %v169, 0
  %503 = vmatprep.subr.mxu0 0.0
  %504 = vmatpush1.msra.mxu0 %v170
  %505 = vmatprep.subr.mxu0 0.0
  %506 = vmatpush1.msra.mxu0 0.0
  %507 = vmatprep.subr.mxu0 0.0
  %508 = vmatpush1.msra.mxu0 0.0
  %509 = vmatprep.subr.mxu0 0.0
  %510 = vmatpush1.msra.mxu0 0.0
  %511 = vmatprep.subr.mxu0 0.0
  %512 = vmatpush1.msra.mxu0 0.0
  %513 = vmatprep.subr.mxu0 0.0
  %514 = vmatpush1.msra.mxu0 0.0
  %515 = vmatprep.subr.mxu0 0.0
  %516 = vmatpush1.msra.mxu0 0.0
  %517 = vmatprep.subr.mxu0 0.0
  %518 = vmatpush1.msra.mxu0 0.0
  %519 = vmatprep.subr.mxu0 0.0
  %520 = vmatpush1.msra.mxu0 0.0
  %521 = vmatprep.subr.mxu0 0.0
  %522 = vmatpush1.msra.mxu0 0.0
  %523 = vmatprep.subr.mxu0 0.0
  %524 = vmatpush1.msra.mxu0 0.0
  %525 = vmatprep.subr.mxu0 0.0
  %526 = vmatpush1.msra.mxu0 0.0
  %527 = vmatprep.subr.mxu0 0.0
  %528 = vmatpush1.msra.mxu0 0.0
  %529 = vmatprep.subr.mxu0 0.0
  %530 = vmatpush1.msra.mxu0 0.0
  %531 = vmatprep.subr.mxu0 0.0
  %532 = vmatpush1.msra.mxu0 0.0
  %533 = vmatprep.subr.mxu0 0.0
  %534 = vmatpush1.msra.mxu0 0.0
  %535 = vmatprep.subr.mxu0 0.0
  %536 = vmatpush1.msra.mxu0 0.0
  %537 = vmatprep.subr.mxu0 0.0
  %538 = vmatpush1.msra.mxu0 0.0
  %539 = vmatprep.subr.mxu0 0.0
  %540 = vmatpush1.msra.mxu0 0.0
  %541 = vmatprep.subr.mxu0 0.0
  %542 = vmatpush1.msra.mxu0 0.0
  %543 = vmatprep.subr.mxu0 0.0
  %544 = vmatpush1.msra.mxu0 0.0
  %545 = vmatprep.subr.mxu0 0.0
  %546 = vmatpush1.msra.mxu0 0.0
  %547 = vmatprep.subr.mxu0 0.0
  %548 = vmatpush1.msra.mxu0 0.0
  %549 = vmatprep.subr.mxu0 0.0
  %550 = vmatpush1.msra.mxu0 0.0
  %551 = vmatprep.subr.mxu0 0.0
  %552 = vmatpush1.msra.mxu0 0.0
  %553 = vmatprep.subr.mxu0 0.0
  %554 = vmatpush1.msra.mxu0 0.0
  %555 = vmatprep.subr.mxu0 0.0
  %556 = vmatpush1.msra.mxu0 0.0
  %557 = vmatprep.subr.mxu0 0.0
  %558 = vmatpush1.msra.mxu0 0.0
  %559 = vmatprep.subr.mxu0 0.0
  %560 = vmatpush1.msra.mxu0 0.0
  %561 = vmatprep.subr.mxu0 0.0
  %562 = vmatpush1.msra.mxu0 0.0
  %563 = vmatprep.subr.mxu0 0.0
  %564 = vmatpush1.msra.mxu0 0.0
  %565 = vmatprep.subr.mxu0 0.0
  %566 = vmatpush1.msra.mxu0 0.0
  %567 = vmatprep.mubr.f32.mxu0 0.0
  %568 = vmatmul.mubr.f32.gmra.mrb[0].mxu0 %v180
  %v569 = vpop.f32.mrb[0].mxu0
  %v570 = vadd.f32 %v176, %v569
  %v571 = vpop.f32.mrb[0].mxu0
  %572 = vmatprep.mubr.f32.mxu0 0.0
  %573 = vmatmul.mubr.f32.gmra.mrb[0].mxu0 %v183
  %v574 = vpop.f32.mrb[0].mxu0
  %v575 = vadd.f32 %v176, %v574
  %v576 = vpop.f32.mrb[0].mxu0
  %577 = vmatprep.mubr.f32.mxu0 0.0
  %578 = vmatmul.mubr.f32.gmra.mrb[0].mxu0 %v186
  %v579 = vpop.f32.mrb[0].mxu0
  %v580 = vadd.f32 %v176, %v579
  %v581 = vpop.f32.mrb[0].mxu0
  %582 = vmatprep.mubr.f32.mxu0 0.0
  %583 = vmatmul.mubr.f32.gmra.mrb[0].mxu0 %v189
  %v584 = vpop.f32.mrb[0].mxu0
  %v585 = vadd.f32 %v176, %v584
  %v586 = vpop.f32.mrb[0].mxu0
  %587 = vmatprep.mubr.f32.mxu0 0.0
  %588 = vmatmul.mubr.f32.gmra.mrb[0].mxu0 %v192
  %v589 = vpop.f32.mrb[0].mxu0
  %v590 = vadd.f32 %v176, %v589
  %v591 = vpop.f32.mrb[0].mxu0
  %592 = vmatprep.mubr.f32.mxu0 0.0
  %593 = vmatmul.mubr.f32.gmra.mrb[0].mxu0 %v195
  %v594 = vpop.f32.mrb[0].mxu0
  %v595 = vadd.f32 %v176, %v594
  %v596 = vpop.f32.mrb[0].mxu0
  %597 = vmatprep.mubr.f32.mxu0 0.0
  %598 = vmatmul.mubr.f32.gmra.mrb[0].mxu0 %v198
  %v599 = vpop.f32.mrb[0].mxu0
  %v600 = vadd.f32 %v176, %v599
  %v601 = vpop.f32.mrb[0].mxu0
  %602 = vmatprep.mubr.f32.mxu0 0.0
  %603 = vmatmul.mubr.f32.gmra.mrb[0].mxu0 %v201
  %v604 = vpop.f32.mrb[0].mxu0
  %v605 = vadd.f32 %v176, %v604
  %v606 = vpop.f32.mrb[0].mxu0
  %607 = vmatprep.mubr.f32.mxu0 0.0
  %608 = vmatmul.mubr.f32.gmra.mrb[0].mxu0 %v204
  %v609 = vpop.f32.mrb[0].mxu0
  %v610 = vadd.f32 %v176, %v609
  %v611 = vpop.f32.mrb[0].mxu0
  %612 = vmatprep.mubr.f32.mxu0 0.0
  %613 = vmatmul.mubr.f32.gmra.mrb[0].mxu0 %v207
  %v614 = vpop.f32.mrb[0].mxu0
  %v615 = vadd.f32 %v176, %v614
  %v616 = vpop.f32.mrb[0].mxu0
  %617 = vmatprep.mubr.f32.mxu0 0.0
  %618 = vmatmul.mubr.f32.gmra.mrb[0].mxu0 %v210
  %v619 = vpop.f32.mrb[0].mxu0
  %v620 = vadd.f32 %v176, %v619
  %v621 = vpop.f32.mrb[0].mxu0
  %622 = vmatprep.mubr.f32.mxu0 0.0
  %623 = vmatmul.mubr.f32.gmra.mrb[0].mxu0 %v213
  %v624 = vpop.f32.mrb[0].mxu0
  %v625 = vadd.f32 %v176, %v624
  %v626 = vpop.f32.mrb[0].mxu0
  %627 = vmatprep.mubr.f32.mxu0 0.0
  %628 = vmatmul.mubr.f32.gmra.mrb[0].mxu0 %v216
  %v629 = vpop.f32.mrb[0].mxu0
  %v630 = vadd.f32 %v176, %v629
  %v631 = vpop.f32.mrb[0].mxu0
  %632 = vmatprep.mubr.f32.mxu0 0.0
  %633 = vmatmul.mubr.f32.gmra.mrb[0].mxu0 %v219
  %v634 = vpop.f32.mrb[0].mxu0
  %v635 = vadd.f32 %v176, %v634
  %v636 = vpop.f32.mrb[0].mxu0
  %637 = vmatprep.mubr.f32.mxu0 0.0
  %638 = vmatmul.mubr.f32.gmra.mrb[0].mxu0 %v222
  %v639 = vpop.f32.mrb[0].mxu0
  %v640 = vadd.f32 %v176, %v639
  %v641 = vpop.f32.mrb[0].mxu0
  %642 = vmatprep.mubr.f32.mxu0 0.0
  %643 = vmatmul.mubr.f32.gmra.mrb[0].mxu0 %v225
  %v644 = vpop.f32.mrb[0].mxu0
  %v645 = vadd.f32 %v176, %v644
  %v646 = vpop.f32.mrb[0].mxu0
  %647 = vmatprep.mubr.f32.mxu0 0.0
  %648 = vmatmul.mubr.f32.gmra.mrb[0].mxu0 %v228
  %v649 = vpop.f32.mrb[0].mxu0
  %v650 = vadd.f32 %v176, %v649
  %v651 = vpop.f32.mrb[0].mxu0
  %652 = vmatprep.mubr.f32.mxu0 0.0
  %653 = vmatmul.mubr.f32.gmra.mrb[0].mxu0 %v231
  %v654 = vpop.f32.mrb[0].mxu0
  %v655 = vadd.f32 %v176, %v654
  %v656 = vpop.f32.mrb[0].mxu0
  %657 = vmatprep.mubr.f32.mxu0 0.0
  %658 = vmatmul.mubr.f32.gmra.mrb[0].mxu0 %v234
  %v659 = vpop.f32.mrb[0].mxu0
  %v660 = vadd.f32 %v176, %v659
  %v661 = vpop.f32.mrb[0].mxu0
  %662 = vmatprep.mubr.f32.mxu0 0.0
  %663 = vmatmul.mubr.f32.gmra.mrb[0].mxu0 %v237
  %v664 = vpop.f32.mrb[0].mxu0
  %v665 = vadd.f32 %v176, %v664
  %v666 = vpop.f32.mrb[0].mxu0
  %667 = vmatprep.mubr.f32.mxu0 0.0
  %668 = vmatmul.mubr.f32.gmra.mrb[0].mxu0 %v240
  %v669 = vpop.f32.mrb[0].mxu0
  %v670 = vadd.f32 %v176, %v669
  %v671 = vpop.f32.mrb[0].mxu0
  %672 = vmatprep.mubr.f32.mxu0 0.0
  %673 = vmatmul.mubr.f32.gmra.mrb[0].mxu0 %v243
  %v674 = vpop.f32.mrb[0].mxu0
  %v675 = vadd.f32 %v176, %v674
  %v676 = vpop.f32.mrb[0].mxu0
  %677 = vmatprep.mubr.f32.mxu0 0.0
  %678 = vmatmul.mubr.f32.gmra.mrb[0].mxu0 %v246
  %v679 = vpop.f32.mrb[0].mxu0
  %v680 = vadd.f32 %v176, %v679
  %v681 = vpop.f32.mrb[0].mxu0
  %682 = vmatprep.mubr.f32.mxu0 0.0
  %683 = vmatmul.mubr.f32.gmra.mrb[0].mxu0 %v249
  %v684 = vpop.f32.mrb[0].mxu0
  %v685 = vadd.f32 %v176, %v684
  %v686 = vpop.f32.mrb[0].mxu0
  %687 = vmatprep.mubr.f32.mxu0 0.0
  %688 = vmatmul.mubr.f32.gmra.mrb[0].mxu0 %v252
  %v689 = vpop.f32.mrb[0].mxu0
  %v690 = vadd.f32 %v176, %v689
  %v691 = vpop.f32.mrb[0].mxu0
  %692 = vmatprep.mubr.f32.mxu0 0.0
  %693 = vmatmul.mubr.f32.gmra.mrb[0].mxu0 %v255
  %v694 = vpop.f32.mrb[0].mxu0
  %v695 = vadd.f32 %v176, %v694
  %v696 = vpop.f32.mrb[0].mxu0
  %697 = vmatprep.mubr.f32.mxu0 0.0
  %698 = vmatmul.mubr.f32.gmra.mrb[0].mxu0 %v258
  %v699 = vpop.f32.mrb[0].mxu0
  %v700 = vadd.f32 %v176, %v699
  %v701 = vpop.f32.mrb[0].mxu0
  %702 = vmatprep.mubr.f32.mxu0 0.0
  %703 = vmatmul.mubr.f32.gmra.mrb[0].mxu0 %v261
  %v704 = vpop.f32.mrb[0].mxu0
  %v705 = vadd.f32 %v176, %v704
  %v706 = vpop.f32.mrb[0].mxu0
  %707 = vmatprep.mubr.f32.mxu0 0.0
  %708 = vmatmul.mubr.f32.gmra.mrb[0].mxu0 %v264
  %v709 = vpop.f32.mrb[0].mxu0
  %v710 = vadd.f32 %v176, %v709
  %v711 = vpop.f32.mrb[0].mxu0
  %712 = vmatprep.mubr.f32.mxu0 0.0
  %713 = vmatmul.mubr.f32.gmra.mrb[0].mxu0 %v267
  %v714 = vpop.f32.mrb[0].mxu0
  %v715 = vadd.f32 %v176, %v714
  %v716 = vpop.f32.mrb[0].mxu0
  %717 = vmatprep.mubr.f32.mxu0 0.0
  %718 = vmatmul.mubr.f32.gmra.mrb[0].mxu0 %v270
  %v719 = vpop.f32.mrb[0].mxu0
  %v720 = vadd.f32 %v176, %v719
  %v721 = vpop.f32.mrb[0].mxu0
  %722 = vmatprep.mubr.f32.mxu0 0.0
  %723 = vmatmul.mubr.f32.gmra.mrb[0].mxu0 %v273
  %v724 = vpop.f32.mrb[0].mxu0
  %v725 = vadd.f32 %v176, %v724
  %v726 = vpop.f32.mrb[0].mxu0
  %727 = vmatprep.mubr.f32.mxu0 0.0
  %728 = vmatmul.mubr.f32.gmra.mrb[0].mxu0 %v276
  %v729 = vpop.f32.mrb[0].mxu0
  %v730 = vadd.f32 %v176, %v729
  %v731 = vpop.f32.mrb[0].mxu0
  %732 = vmatprep.mubr.f32.mxu0 0.0
  %733 = vmatmul.mubr.f32.gmra.mrb[0].mxu0 %v279
  %v734 = vpop.f32.mrb[0].mxu0
  %v735 = vadd.f32 %v176, %v734
  %v736 = vpop.f32.mrb[0].mxu0
  %737 = vmatprep.mubr.f32.mxu0 0.0
  %738 = vmatmul.mubr.f32.gmra.mrb[0].mxu0 %v282
  %v739 = vpop.f32.mrb[0].mxu0
  %v740 = vadd.f32 %v176, %v739
  %v741 = vpop.f32.mrb[0].mxu0
  %742 = vmatprep.mubr.f32.mxu0 0.0
  %743 = vmatmul.mubr.f32.gmra.mrb[0].mxu0 %v285
  %v744 = vpop.f32.mrb[0].mxu0
  %v745 = vadd.f32 %v176, %v744
  %v746 = vpop.f32.mrb[0].mxu0
  %747 = vmatprep.mubr.f32.mxu0 0.0
  %748 = vmatmul.mubr.f32.gmra.mrb[0].mxu0 %v288
  %v749 = vpop.f32.mrb[0].mxu0
  %v750 = vadd.f32 %v176, %v749
  %v751 = vpop.f32.mrb[0].mxu0
  %752 = vmatprep.mubr.f32.mxu0 0.0
  %753 = vmatmul.mubr.f32.gmra.mrb[0].mxu0 %v291
  %v754 = vpop.f32.mrb[0].mxu0
  %v755 = vadd.f32 %v176, %v754
  %v756 = vpop.f32.mrb[0].mxu0
  %757 = vmatprep.mubr.f32.mxu0 0.0
  %758 = vmatmul.mubr.f32.gmra.mrb[0].mxu0 %v294
  %v759 = vpop.f32.mrb[0].mxu0
  %v760 = vadd.f32 %v176, %v759
  %v761 = vpop.f32.mrb[0].mxu0
  %762 = vmatprep.mubr.f32.mxu0 0.0
  %763 = vmatmul.mubr.f32.gmra.mrb[0].mxu0 %v297
  %v764 = vpop.f32.mrb[0].mxu0
  %v765 = vadd.f32 %v176, %v764
  %v766 = vpop.f32.mrb[0].mxu0
  %767 = vmatprep.mubr.f32.mxu0 0.0
  %768 = vmatmul.mubr.f32.gmra.mrb[0].mxu0 %v300
  %v769 = vpop.f32.mrb[0].mxu0
  %v770 = vadd.f32 %v176, %v769
  %v771 = vpop.f32.mrb[0].mxu0
  %772 = vmatprep.mubr.f32.mxu0 0.0
  %773 = vmatmul.mubr.f32.gmra.mrb[0].mxu0 %v303
  %v774 = vpop.f32.mrb[0].mxu0
  %v775 = vadd.f32 %v176, %v774
  %v776 = vpop.f32.mrb[0].mxu0
  %777 = vmatprep.mubr.f32.mxu0 0.0
  %778 = vmatmul.mubr.f32.gmra.mrb[0].mxu0 %v306
  %v779 = vpop.f32.mrb[0].mxu0
  %v780 = vadd.f32 %v176, %v779
  %v781 = vpop.f32.mrb[0].mxu0
  %782 = vmatprep.mubr.f32.mxu0 0.0
  %783 = vmatmul.mubr.f32.gmra.mrb[0].mxu0 %v309
  %v784 = vpop.f32.mrb[0].mxu0
  %v785 = vadd.f32 %v176, %v784
  %v786 = vpop.f32.mrb[0].mxu0
  %787 = vmatprep.mubr.f32.mxu0 0.0
  %788 = vmatmul.mubr.f32.gmra.mrb[0].mxu0 %v312
  %v789 = vpop.f32.mrb[0].mxu0
  %v790 = vadd.f32 %v176, %v789
  %v791 = vpop.f32.mrb[0].mxu0
  %792 = vmatprep.mubr.f32.mxu0 0.0
  %793 = vmatmul.mubr.f32.gmra.mrb[0].mxu0 %v315
  %v794 = vpop.f32.mrb[0].mxu0
  %v795 = vadd.f32 %v176, %v794
  %v796 = vpop.f32.mrb[0].mxu0
  %797 = vmatprep.mubr.f32.mxu0 0.0
  %798 = vmatmul.mubr.f32.gmra.mrb[0].mxu0 %v318
  %v799 = vpop.f32.mrb[0].mxu0
  %v800 = vadd.f32 %v176, %v799
  %v801 = vpop.f32.mrb[0].mxu0
  %802 = vmatprep.mubr.f32.mxu0 0.0
  %803 = vmatmul.mubr.f32.gmra.mrb[0].mxu0 %v321
  %v804 = vpop.f32.mrb[0].mxu0
  %v805 = vadd.f32 %v176, %v804
  %v806 = vpop.f32.mrb[0].mxu0
  %807 = vmatprep.mubr.f32.mxu0 0.0
  %808 = vmatmul.mubr.f32.gmra.mrb[0].mxu0 %v324
  %v809 = vpop.f32.mrb[0].mxu0
  %v810 = vadd.f32 %v176, %v809
  %v811 = vpop.f32.mrb[0].mxu0
  %812 = vmatprep.mubr.f32.mxu0 0.0
  %813 = vmatmul.mubr.f32.gmra.mrb[0].mxu0 %v327
  %v814 = vpop.f32.mrb[0].mxu0
  %v815 = vadd.f32 %v176, %v814
  %v816 = vpop.f32.mrb[0].mxu0
  %817 = vmatprep.mubr.f32.mxu0 0.0
  %818 = vmatmul.mubr.f32.gmra.mrb[0].mxu0 %v330
  %v819 = vpop.f32.mrb[0].mxu0
  %v820 = vadd.f32 %v176, %v819
  %v821 = vpop.f32.mrb[0].mxu0
  %822 = vmatprep.mubr.f32.mxu0 0.0
  %823 = vmatmul.mubr.f32.gmra.mrb[0].mxu0 %v333
  %v824 = vpop.f32.mrb[0].mxu0
  %v825 = vadd.f32 %v176, %v824
  %v826 = vpop.f32.mrb[0].mxu0
  %827 = vmatprep.mubr.f32.mxu0 0.0
  %828 = vmatmul.mubr.f32.gmra.mrb[0].mxu0 %v336
  %v829 = vpop.f32.mrb[0].mxu0
  %v830 = vadd.f32 %v176, %v829
  %v831 = vpop.f32.mrb[0].mxu0
  %832 = vmatprep.mubr.f32.mxu0 0.0
  %833 = vmatmul.mubr.f32.gmra.mrb[0].mxu0 %v339
  %v834 = vpop.f32.mrb[0].mxu0
  %v835 = vadd.f32 %v176, %v834
  %v836 = vpop.f32.mrb[0].mxu0
  %837 = vmatprep.mubr.f32.mxu0 0.0
  %838 = vmatmul.mubr.f32.gmra.mrb[0].mxu0 %v342
  %v839 = vpop.f32.mrb[0].mxu0
  %v840 = vadd.f32 %v176, %v839
  %v841 = vpop.f32.mrb[0].mxu0
  %842 = vmatprep.mubr.f32.mxu0 0.0
  %843 = vmatmul.mubr.f32.gmra.mrb[0].mxu0 %v345
  %v844 = vpop.f32.mrb[0].mxu0
  %v845 = vadd.f32 %v176, %v844
  %v846 = vpop.f32.mrb[0].mxu0
  %847 = vmatprep.mubr.f32.mxu0 0.0
  %848 = vmatmul.mubr.f32.gmra.mrb[0].mxu0 %v348
  %v849 = vpop.f32.mrb[0].mxu0
  %v850 = vadd.f32 %v176, %v849
  %v851 = vpop.f32.mrb[0].mxu0
  %852 = vmatprep.mubr.f32.mxu0 0.0
  %853 = vmatmul.mubr.f32.gmra.mrb[0].mxu0 %v351
  %v854 = vpop.f32.mrb[0].mxu0
  %v855 = vadd.f32 %v176, %v854
  %v856 = vpop.f32.mrb[0].mxu0
  %857 = vmatprep.mubr.f32.mxu0 0.0
  %858 = vmatmul.mubr.f32.gmra.mrb[0].mxu0 %v354
  %v859 = vpop.f32.mrb[0].mxu0
  %v860 = vadd.f32 %v176, %v859
  %v861 = vpop.f32.mrb[0].mxu0
  %862 = vmatprep.mubr.f32.mxu0 0.0
  %863 = vmatmul.mubr.f32.gmra.mrb[0].mxu0 %v357
  %v864 = vpop.f32.mrb[0].mxu0
  %v865 = vadd.f32 %v176, %v864
  %v866 = vpop.f32.mrb[0].mxu0
  %867 = vmatprep.mubr.f32.mxu0 0.0
  %868 = vmatmul.mubr.f32.gmra.mrb[0].mxu0 %v360
  %v869 = vpop.f32.mrb[0].mxu0
  %v870 = vadd.f32 %v176, %v869
  %v871 = vpop.f32.mrb[0].mxu0
  %872 = vmatprep.mubr.f32.mxu0 0.0
  %873 = vmatmul.mubr.f32.gmra.mrb[0].mxu0 %v363
  %v874 = vpop.f32.mrb[0].mxu0
  %v875 = vadd.f32 %v176, %v874
  %v876 = vpop.f32.mrb[0].mxu0
  %877 = vmatprep.mubr.f32.mxu0 0.0
  %878 = vmatmul.mubr.f32.gmra.mrb[0].mxu0 %v366
  %v879 = vpop.f32.mrb[0].mxu0
  %v880 = vadd.f32 %v176, %v879
  %v881 = vpop.f32.mrb[0].mxu0
  %882 = vmatprep.mubr.f32.mxu0 0.0
  %883 = vmatmul.mubr.f32.gmra.mrb[0].mxu0 %v369
  %v884 = vpop.f32.mrb[0].mxu0
  %v885 = vadd.f32 %v176, %v884
  %v886 = vpop.f32.mrb[0].mxu0
  %887 = vmatprep.mubr.f32.mxu0 0.0
  %888 = vmatmul.mubr.f32.gmra.mrb[0].mxu0 %v372
  %v889 = vpop.f32.mrb[0].mxu0
  %v890 = vadd.f32 %v176, %v889
  %v891 = vpop.f32.mrb[0].mxu0
  %892 = vmatprep.mubr.f32.mxu0 0.0
  %893 = vmatmul.mubr.f32.gmra.mrb[0].mxu0 %v375
  %v894 = vpop.f32.mrb[0].mxu0
  %v895 = vadd.f32 %v176, %v894
  %v896 = vpop.f32.mrb[0].mxu0
  %897 = vmatprep.mubr.f32.mxu0 0.0
  %898 = vmatmul.mubr.f32.gmra.mrb[0].mxu0 %v378
  %v899 = vpop.f32.mrb[0].mxu0
  %v900 = vadd.f32 %v176, %v899
  %v901 = vpop.f32.mrb[0].mxu0
  %902 = vmatprep.mubr.f32.mxu0 0.0
  %903 = vmatmul.mubr.f32.gmra.mrb[0].mxu0 %v381
  %v904 = vpop.f32.mrb[0].mxu0
  %v905 = vadd.f32 %v176, %v904
  %v906 = vpop.f32.mrb[0].mxu0
  %907 = vmatprep.mubr.f32.mxu0 0.0
  %908 = vmatmul.mubr.f32.gmra.mrb[0].mxu0 %v384
  %v909 = vpop.f32.mrb[0].mxu0
  %v910 = vadd.f32 %v176, %v909
  %v911 = vpop.f32.mrb[0].mxu0
  %912 = vmatprep.mubr.f32.mxu0 0.0
  %913 = vmatmul.mubr.f32.gmra.mrb[0].mxu0 %v387
  %v914 = vpop.f32.mrb[0].mxu0
  %v915 = vadd.f32 %v176, %v914
  %v916 = vpop.f32.mrb[0].mxu0
  %917 = vmatprep.mubr.f32.mxu0 0.0
  %918 = vmatmul.mubr.f32.gmra.mrb[0].mxu0 %v390
  %v919 = vpop.f32.mrb[0].mxu0
  %v920 = vadd.f32 %v176, %v919
  %v921 = vpop.f32.mrb[0].mxu0
  %922 = vmatprep.mubr.f32.mxu0 0.0
  %923 = vmatmul.mubr.f32.gmra.mrb[0].mxu0 %v393
  %v924 = vpop.f32.mrb[0].mxu0
  %v925 = vadd.f32 %v176, %v924
  %v926 = vpop.f32.mrb[0].mxu0
  %927 = vmatprep.mubr.f32.mxu0 0.0
  %928 = vmatmul.mubr.f32.gmra.mrb[0].mxu0 %v396
  %v929 = vpop.f32.mrb[0].mxu0
  %v930 = vadd.f32 %v176, %v929
  %v931 = vpop.f32.mrb[0].mxu0
  %932 = vmatprep.mubr.f32.mxu0 0.0
  %933 = vmatmul.mubr.f32.gmra.mrb[0].mxu0 %v399
  %v934 = vpop.f32.mrb[0].mxu0
  %v935 = vadd.f32 %v176, %v934
  %v936 = vpop.f32.mrb[0].mxu0
  %937 = vmatprep.mubr.f32.mxu0 0.0
  %938 = vmatmul.mubr.f32.gmra.mrb[0].mxu0 %v402
  %v939 = vpop.f32.mrb[0].mxu0
  %v940 = vadd.f32 %v176, %v939
  %v941 = vpop.f32.mrb[0].mxu0
  %942 = vmatprep.mubr.f32.mxu0 0.0
  %943 = vmatmul.mubr.f32.gmra.mrb[0].mxu0 %v405
  %v944 = vpop.f32.mrb[0].mxu0
  %v945 = vadd.f32 %v176, %v944
  %v946 = vpop.f32.mrb[0].mxu0
  %947 = vmatprep.mubr.f32.mxu0 0.0
  %948 = vmatmul.mubr.f32.gmra.mrb[0].mxu0 %v408
  %v949 = vpop.f32.mrb[0].mxu0
  %v950 = vadd.f32 %v176, %v949
  %v951 = vpop.f32.mrb[0].mxu0
  %952 = vmatprep.mubr.f32.mxu0 0.0
  %953 = vmatmul.mubr.f32.gmra.mrb[0].mxu0 %v411
  %v954 = vpop.f32.mrb[0].mxu0
  %v955 = vadd.f32 %v176, %v954
  %v956 = vpop.f32.mrb[0].mxu0
  %957 = vmatprep.mubr.f32.mxu0 0.0
  %958 = vmatmul.mubr.f32.gmra.mrb[0].mxu0 %v414
  %v959 = vpop.f32.mrb[0].mxu0
  %v960 = vadd.f32 %v176, %v959
  %v961 = vpop.f32.mrb[0].mxu0
  %962 = vmatprep.mubr.f32.mxu0 0.0
  %963 = vmatmul.mubr.f32.gmra.mrb[0].mxu0 %v417
  %v964 = vpop.f32.mrb[0].mxu0
  %v965 = vadd.f32 %v176, %v964
  %v966 = vpop.f32.mrb[0].mxu0
  %967 = vmatprep.mubr.f32.mxu0 0.0
  %968 = vmatmul.mubr.f32.gmra.mrb[0].mxu0 %v420
  %v969 = vpop.f32.mrb[0].mxu0
  %v970 = vadd.f32 %v176, %v969
  %v971 = vpop.f32.mrb[0].mxu0
  %972 = vmatprep.mubr.f32.mxu0 0.0
  %973 = vmatmul.mubr.f32.gmra.mrb[0].mxu0 %v423
  %v974 = vpop.f32.mrb[0].mxu0
  %v975 = vadd.f32 %v176, %v974
  %v976 = vpop.f32.mrb[0].mxu0
  %977 = vmatprep.mubr.f32.mxu0 0.0
  %978 = vmatmul.mubr.f32.gmra.mrb[0].mxu0 %v426
  %v979 = vpop.f32.mrb[0].mxu0
  %v980 = vadd.f32 %v176, %v979
  %v981 = vpop.f32.mrb[0].mxu0
  %982 = vmatprep.mubr.f32.mxu0 0.0
  %983 = vmatmul.mubr.f32.gmra.mrb[0].mxu0 %v429
  %v984 = vpop.f32.mrb[0].mxu0
  %v985 = vadd.f32 %v176, %v984
  %v986 = vpop.f32.mrb[0].mxu0
  %987 = vmatprep.mubr.f32.mxu0 0.0
  %988 = vmatmul.mubr.f32.gmra.mrb[0].mxu0 %v432
  %v989 = vpop.f32.mrb[0].mxu0
  %v990 = vadd.f32 %v176, %v989
  %v991 = vpop.f32.mrb[0].mxu0
  %992 = vmatprep.mubr.f32.mxu0 0.0
  %993 = vmatmul.mubr.f32.gmra.mrb[0].mxu0 %v435
  %v994 = vpop.f32.mrb[0].mxu0
  %v995 = vadd.f32 %v176, %v994
  %v996 = vpop.f32.mrb[0].mxu0
  %997 = vmatprep.mubr.f32.mxu0 0.0
  %998 = vmatmul.mubr.f32.gmra.mrb[0].mxu0 %v438
  %v999 = vpop.f32.mrb[0].mxu0
  %v1000 = vadd.f32 %v176, %v999
  %v1001 = vpop.f32.mrb[0].mxu0
  %1002 = vmatprep.mubr.f32.mxu0 0.0
  %1003 = vmatmul.mubr.f32.gmra.mrb[0].mxu0 %v441
  %v1004 = vpop.f32.mrb[0].mxu0
  %v1005 = vadd.f32 %v176, %v1004
  %v1006 = vpop.f32.mrb[0].mxu0
  %1007 = vmatprep.mubr.f32.mxu0 0.0
  %1008 = vmatmul.mubr.f32.gmra.mrb[0].mxu0 %v444
  %v1009 = vpop.f32.mrb[0].mxu0
  %v1010 = vadd.f32 %v176, %v1009
  %v1011 = vpop.f32.mrb[0].mxu0
  %1012 = vmatprep.mubr.f32.mxu0 0.0
  %1013 = vmatmul.mubr.f32.gmra.mrb[0].mxu0 %v447
  %v1014 = vpop.f32.mrb[0].mxu0
  %v1015 = vadd.f32 %v176, %v1014
  %v1016 = vpop.f32.mrb[0].mxu0
  %1017 = vmatprep.mubr.f32.mxu0 0.0
  %1018 = vmatmul.mubr.f32.gmra.mrb[0].mxu0 %v450
  %v1019 = vpop.f32.mrb[0].mxu0
  %v1020 = vadd.f32 %v176, %v1019
  %v1021 = vpop.f32.mrb[0].mxu0
  %1022 = vmatprep.mubr.f32.mxu0 0.0
  %1023 = vmatmul.mubr.f32.gmra.mrb[0].mxu0 %v453
  %v1024 = vpop.f32.mrb[0].mxu0
  %v1025 = vadd.f32 %v176, %v1024
  %v1026 = vpop.f32.mrb[0].mxu0
  %1027 = vmatprep.mubr.f32.mxu0 0.0
  %1028 = vmatmul.mubr.f32.gmra.mrb[0].mxu0 %v456
  %v1029 = vpop.f32.mrb[0].mxu0
  %v1030 = vadd.f32 %v176, %v1029
  %v1031 = vpop.f32.mrb[0].mxu0
  %1032 = vmatprep.mubr.f32.mxu0 0.0
  %1033 = vmatmul.mubr.f32.gmra.mrb[0].mxu0 %v459
  %v1034 = vpop.f32.mrb[0].mxu0
  %v1035 = vadd.f32 %v176, %v1034
  %v1036 = vpop.f32.mrb[0].mxu0
  %1037 = vmatprep.mubr.f32.mxu0 0.0
  %1038 = vmatmul.mubr.f32.gmra.mrb[0].mxu0 %v462
  %v1039 = vpop.f32.mrb[0].mxu0
  %v1040 = vadd.f32 %v176, %v1039
  %v1041 = vpop.f32.mrb[0].mxu0
  %1042 = vmatprep.mubr.f32.mxu0 0.0
  %1043 = vmatmul.mubr.f32.gmra.mrb[0].mxu0 %v465
  %v1044 = vpop.f32.mrb[0].mxu0
  %v1045 = vadd.f32 %v176, %v1044
  %v1046 = vpop.f32.mrb[0].mxu0
  %1047 = vmatprep.mubr.f32.mxu0 0.0
  %1048 = vmatmul.mubr.f32.gmra.mrb[0].mxu0 %v468
  %v1049 = vpop.f32.mrb[0].mxu0
  %v1050 = vadd.f32 %v176, %v1049
  %v1051 = vpop.f32.mrb[0].mxu0
  %1052 = vmatprep.mubr.f32.mxu0 0.0
  %1053 = vmatmul.mubr.f32.gmra.mrb[0].mxu0 %v471
  %v1054 = vpop.f32.mrb[0].mxu0
  %v1055 = vadd.f32 %v176, %v1054
  %v1056 = vpop.f32.mrb[0].mxu0
  %1057 = vmatprep.mubr.f32.mxu0 0.0
  %1058 = vmatmul.mubr.f32.gmra.mrb[0].mxu0 %v474
  %v1059 = vpop.f32.mrb[0].mxu0
  %v1060 = vadd.f32 %v176, %v1059
  %v1061 = vpop.f32.mrb[0].mxu0
  %1062 = vmatprep.mubr.f32.mxu0 0.0
  %1063 = vmatmul.mubr.f32.gmra.mrb[0].mxu0 %v477
  %v1064 = vpop.f32.mrb[0].mxu0
  %v1065 = vadd.f32 %v176, %v1064
  %v1066 = vpop.f32.mrb[0].mxu0
  %1067 = vmatprep.mubr.f32.mxu0 0.0
  %1068 = vmatmul.mubr.f32.gmra.mrb[0].mxu0 %v480
  %v1069 = vpop.f32.mrb[0].mxu0
  %v1070 = vadd.f32 %v176, %v1069
  %v1071 = vpop.f32.mrb[0].mxu0
  %1072 = vmatprep.mubr.f32.mxu0 0.0
  %1073 = vmatmul.mubr.f32.gmra.mrb[0].mxu0 %v483
  %v1074 = vpop.f32.mrb[0].mxu0
  %v1075 = vadd.f32 %v176, %v1074
  %v1076 = vpop.f32.mrb[0].mxu0
  %1077 = vmatprep.mubr.f32.mxu0 0.0
  %1078 = vmatmul.mubr.f32.gmra.mrb[0].mxu0 %v486
  %v1079 = vpop.f32.mrb[0].mxu0
  %v1080 = vadd.f32 %v176, %v1079
  %v1081 = vpop.f32.mrb[0].mxu0
  %1082 = vmatprep.mubr.f32.mxu0 0.0
  %1083 = vmatmul.mubr.f32.gmra.mrb[0].mxu0 %v489
  %v1084 = vpop.f32.mrb[0].mxu0
  %v1085 = vadd.f32 %v176, %v1084
  %v1086 = vpop.f32.mrb[0].mxu0
  %1087 = vmatprep.mubr.f32.mxu0 0.0
  %1088 = vmatmul.mubr.f32.gmra.mrb[0].mxu0 %v492
  %v1089 = vpop.f32.mrb[0].mxu0
  %v1090 = vadd.f32 %v176, %v1089
  %v1091 = vpop.f32.mrb[0].mxu0
  %1092 = vmatprep.mubr.f32.mxu0 0.0
  %1093 = vmatmul.mubr.f32.gmra.mrb[0].mxu0 %v495
  %v1094 = vpop.f32.mrb[0].mxu0
  %v1095 = vadd.f32 %v176, %v1094
  %v1096 = vpop.f32.mrb[0].mxu0
  %1097 = vmatprep.mubr.f32.mxu0 0.0
  %1098 = vmatmul.mubr.f32.gmra.mrb[0].mxu0 %v498
  %v1099 = vpop.f32.mrb[0].mxu0
  %v1100 = vadd.f32 %v176, %v1099
  %v1101 = vpop.f32.mrb[0].mxu0
  %1102 = vmatprep.mubr.f32.mxu0 0.0
  %1103 = vmatmul.mubr.f32.gmra.mrb[0].mxu0 %v501
  %v1104 = vpop.f32.mrb[0].mxu0
  %v1105 = vadd.f32 %v176, %v1104
  %v1106 = vpop.f32.mrb[0].mxu0
  %1107 = vdwg.mxu0
  %v1108 = vmax.f32 %v570, 0.0
  %v1109 = vmax.f32 %v575, 0.0
  %v1110 = vmax.f32 %v580, 0.0
  %v1111 = vmax.f32 %v585, 0.0
  %v1112 = vmax.f32 %v590, 0.0
  %v1113 = vmax.f32 %v595, 0.0
  %v1114 = vmax.f32 %v600, 0.0
  %v1115 = vmax.f32 %v605, 0.0
  %v1116 = vmax.f32 %v610, 0.0
  %v1117 = vmax.f32 %v615, 0.0
  %v1118 = vmax.f32 %v620, 0.0
  %v1119 = vmax.f32 %v625, 0.0
  %v1120 = vmax.f32 %v630, 0.0
  %v1121 = vmax.f32 %v635, 0.0
  %v1122 = vmax.f32 %v640, 0.0
  %v1123 = vmax.f32 %v645, 0.0
  %v1124 = vmax.f32 %v650, 0.0
  %v1125 = vmax.f32 %v655, 0.0
  %v1126 = vmax.f32 %v660, 0.0
  %v1127 = vmax.f32 %v665, 0.0
  %v1128 = vmax.f32 %v670, 0.0
  %v1129 = vmax.f32 %v675, 0.0
  %v1130 = vmax.f32 %v680, 0.0
  %v1131 = vmax.f32 %v685, 0.0
  %v1132 = vmax.f32 %v690, 0.0
  %v1133 = vmax.f32 %v695, 0.0
  %v1134 = vmax.f32 %v700, 0.0
  %v1135 = vmax.f32 %v705, 0.0
  %v1136 = vmax.f32 %v710, 0.0
  %v1137 = vmax.f32 %v715, 0.0
  %v1138 = vmax.f32 %v720, 0.0
  %v1139 = vmax.f32 %v725, 0.0
  %v1140 = vmax.f32 %v730, 0.0
  %v1141 = vmax.f32 %v735, 0.0
  %v1142 = vmax.f32 %v740, 0.0
  %v1143 = vmax.f32 %v745, 0.0
  %v1144 = vmax.f32 %v750, 0.0
  %v1145 = vmax.f32 %v755, 0.0
  %v1146 = vmax.f32 %v760, 0.0
  %v1147 = vmax.f32 %v765, 0.0
  %v1148 = vmax.f32 %v770, 0.0
  %v1149 = vmax.f32 %v775, 0.0
  %v1150 = vmax.f32 %v780, 0.0
  %v1151 = vmax.f32 %v785, 0.0
  %v1152 = vmax.f32 %v790, 0.0
  %v1153 = vmax.f32 %v795, 0.0
  %v1154 = vmax.f32 %v800, 0.0
  %v1155 = vmax.f32 %v805, 0.0
  %v1156 = vmax.f32 %v810, 0.0
  %v1157 = vmax.f32 %v815, 0.0
  %v1158 = vmax.f32 %v820, 0.0
  %v1159 = vmax.f32 %v825, 0.0
  %v1160 = vmax.f32 %v830, 0.0
  %v1161 = vmax.f32 %v835, 0.0
  %v1162 = vmax.f32 %v840, 0.0
  %v1163 = vmax.f32 %v845, 0.0
  %v1164 = vmax.f32 %v850, 0.0
  %v1165 = vmax.f32 %v855, 0.0
  %v1166 = vmax.f32 %v860, 0.0
  %v1167 = vmax.f32 %v865, 0.0
  %v1168 = vmax.f32 %v870, 0.0
  %v1169 = vmax.f32 %v875, 0.0
  %v1170 = vmax.f32 %v880, 0.0
  %v1171 = vmax.f32 %v885, 0.0
  %v1172 = vmax.f32 %v890, 0.0
  %v1173 = vmax.f32 %v895, 0.0
  %v1174 = vmax.f32 %v900, 0.0
  %v1175 = vmax.f32 %v905, 0.0
  %v1176 = vmax.f32 %v910, 0.0
  %v1177 = vmax.f32 %v915, 0.0
  %v1178 = vmax.f32 %v920, 0.0
  %v1179 = vmax.f32 %v925, 0.0
  %v1180 = vmax.f32 %v930, 0.0
  %v1181 = vmax.f32 %v935, 0.0
  %v1182 = vmax.f32 %v940, 0.0
  %v1183 = vmax.f32 %v945, 0.0
  %v1184 = vmax.f32 %v950, 0.0
  %v1185 = vmax.f32 %v955, 0.0
  %v1186 = vmax.f32 %v960, 0.0
  %v1187 = vmax.f32 %v965, 0.0
  %v1188 = vmax.f32 %v970, 0.0
  %v1189 = vmax.f32 %v975, 0.0
  %v1190 = vmax.f32 %v980, 0.0
  %v1191 = vmax.f32 %v985, 0.0
  %v1192 = vmax.f32 %v990, 0.0
  %v1193 = vmax.f32 %v995, 0.0
  %v1194 = vmax.f32 %v1000, 0.0
  %v1195 = vmax.f32 %v1005, 0.0
  %v1196 = vmax.f32 %v1010, 0.0
  %v1197 = vmax.f32 %v1015, 0.0
  %v1198 = vmax.f32 %v1020, 0.0
  %v1199 = vmax.f32 %v1025, 0.0
  %v1200 = vmax.f32 %v1030, 0.0
  %v1201 = vmax.f32 %v1035, 0.0
  %v1202 = vmax.f32 %v1040, 0.0
  %v1203 = vmax.f32 %v1045, 0.0
  %v1204 = vmax.f32 %v1050, 0.0
  %v1205 = vmax.f32 %v1055, 0.0
  %v1206 = vmax.f32 %v1060, 0.0
  %v1207 = vmax.f32 %v1065, 0.0
  %v1208 = vmax.f32 %v1070, 0.0
  %v1209 = vmax.f32 %v1075, 0.0
  %v1210 = vmax.f32 %v1080, 0.0
  %v1211 = vmax.f32 %v1085, 0.0
  %v1212 = vmax.f32 %v1090, 0.0
  %v1213 = vmax.f32 %v1095, 0.0
  %v1214 = vmax.f32 %v1100, 0.0
  %v1215 = vmax.f32 %v1105, 0.0
  %v1216 = vld [vmem:[%s3] sm:$0xff]
  %v1217 = vld [vmem:[%s4] sm:$0x1]
  %v1219 = vlaneseq
  %v1220 = vshrl.u32 %v1219, 7
  %v1221 = vsub.s32 0, %v1220
  %v1222 = vrot.slane %v1217, %v1221
  %v1225 = vsel %vm178, %v1108, 0
  %v1228 = vsel %vm178, %v1109, 0
  %v1231 = vsel %vm178, %v1110, 0
  %v1234 = vsel %vm178, %v1111, 0
  %v1237 = vsel %vm178, %v1112, 0
  %v1240 = vsel %vm178, %v1113, 0
  %v1243 = vsel %vm178, %v1114, 0
  %v1246 = vsel %vm178, %v1115, 0
  %v1249 = vsel %vm178, %v1116, 0
  %v1252 = vsel %vm178, %v1117, 0
  %v1255 = vsel %vm178, %v1118, 0
  %v1258 = vsel %vm178, %v1119, 0
  %v1261 = vsel %vm178, %v1120, 0
  %v1264 = vsel %vm178, %v1121, 0
  %v1267 = vsel %vm178, %v1122, 0
  %v1270 = vsel %vm178, %v1123, 0
  %v1273 = vsel %vm178, %v1124, 0
  %v1276 = vsel %vm178, %v1125, 0
  %v1279 = vsel %vm178, %v1126, 0
  %v1282 = vsel %vm178, %v1127, 0
  %v1285 = vsel %vm178, %v1128, 0
  %v1288 = vsel %vm178, %v1129, 0
  %v1291 = vsel %vm178, %v1130, 0
  %v1294 = vsel %vm178, %v1131, 0
  %v1297 = vsel %vm178, %v1132, 0
  %v1300 = vsel %vm178, %v1133, 0
  %v1303 = vsel %vm178, %v1134, 0
  %v1306 = vsel %vm178, %v1135, 0
  %v1309 = vsel %vm178, %v1136, 0
  %v1312 = vsel %vm178, %v1137, 0
  %v1315 = vsel %vm178, %v1138, 0
  %v1318 = vsel %vm178, %v1139, 0
  %v1321 = vsel %vm178, %v1140, 0
  %v1324 = vsel %vm178, %v1141, 0
  %v1327 = vsel %vm178, %v1142, 0
  %v1330 = vsel %vm178, %v1143, 0
  %v1333 = vsel %vm178, %v1144, 0
  %v1336 = vsel %vm178, %v1145, 0
  %v1339 = vsel %vm178, %v1146, 0
  %v1342 = vsel %vm178, %v1147, 0
  %v1345 = vsel %vm178, %v1148, 0
  %v1348 = vsel %vm178, %v1149, 0
  %v1351 = vsel %vm178, %v1150, 0
  %v1354 = vsel %vm178, %v1151, 0
  %v1357 = vsel %vm178, %v1152, 0
  %v1360 = vsel %vm178, %v1153, 0
  %v1363 = vsel %vm178, %v1154, 0
  %v1366 = vsel %vm178, %v1155, 0
  %v1369 = vsel %vm178, %v1156, 0
  %v1372 = vsel %vm178, %v1157, 0
  %v1375 = vsel %vm178, %v1158, 0
  %v1378 = vsel %vm178, %v1159, 0
  %v1381 = vsel %vm178, %v1160, 0
  %v1384 = vsel %vm178, %v1161, 0
  %v1387 = vsel %vm178, %v1162, 0
  %v1390 = vsel %vm178, %v1163, 0
  %v1393 = vsel %vm178, %v1164, 0
  %v1396 = vsel %vm178, %v1165, 0
  %v1399 = vsel %vm178, %v1166, 0
  %v1402 = vsel %vm178, %v1167, 0
  %v1405 = vsel %vm178, %v1168, 0
  %v1408 = vsel %vm178, %v1169, 0
  %v1411 = vsel %vm178, %v1170, 0
  %v1414 = vsel %vm178, %v1171, 0
  %v1417 = vsel %vm178, %v1172, 0
  %v1420 = vsel %vm178, %v1173, 0
  %v1423 = vsel %vm178, %v1174, 0
  %v1426 = vsel %vm178, %v1175, 0
  %v1429 = vsel %vm178, %v1176, 0
  %v1432 = vsel %vm178, %v1177, 0
  %v1435 = vsel %vm178, %v1178, 0
  %v1438 = vsel %vm178, %v1179, 0
  %v1441 = vsel %vm178, %v1180, 0
  %v1444 = vsel %vm178, %v1181, 0
  %v1447 = vsel %vm178, %v1182, 0
  %v1450 = vsel %vm178, %v1183, 0
  %v1453 = vsel %vm178, %v1184, 0
  %v1456 = vsel %vm178, %v1185, 0
  %v1459 = vsel %vm178, %v1186, 0
  %v1462 = vsel %vm178, %v1187, 0
  %v1465 = vsel %vm178, %v1188, 0
  %v1468 = vsel %vm178, %v1189, 0
  %v1471 = vsel %vm178, %v1190, 0
  %v1474 = vsel %vm178, %v1191, 0
  %v1477 = vsel %vm178, %v1192, 0
  %v1480 = vsel %vm178, %v1193, 0
  %v1483 = vsel %vm178, %v1194, 0
  %v1486 = vsel %vm178, %v1195, 0
  %v1489 = vsel %vm178, %v1196, 0
  %v1492 = vsel %vm178, %v1197, 0
  %v1495 = vsel %vm178, %v1198, 0
  %v1498 = vsel %vm178, %v1199, 0
  %v1501 = vsel %vm178, %v1200, 0
  %v1504 = vsel %vm178, %v1201, 0
  %v1507 = vsel %vm178, %v1202, 0
  %v1510 = vsel %vm178, %v1203, 0
  %v1513 = vsel %vm178, %v1204, 0
  %v1516 = vsel %vm178, %v1205, 0
  %v1519 = vsel %vm178, %v1206, 0
  %v1522 = vsel %vm178, %v1207, 0
  %v1525 = vsel %vm178, %v1208, 0
  %v1528 = vsel %vm178, %v1209, 0
  %v1531 = vsel %vm178, %v1210, 0
  %v1534 = vsel %vm178, %v1211, 0
  %v1537 = vsel %vm178, %v1212, 0
  %v1540 = vsel %vm178, %v1213, 0
  %v1543 = vsel %vm178, %v1214, 0
  %v1546 = vsel %vm178, %v1215, 0
  %1548 = vmatprep.subr.mxu0 0.0
  %1549 = vmatpush1.msra.mxu0 %v1216
  %1550 = vmatprep.subr.mxu0 0.0
  %1551 = vmatpush1.msra.mxu0 0.0
  %1552 = vmatprep.subr.mxu0 0.0
  %1553 = vmatpush1.msra.mxu0 0.0
  %1554 = vmatprep.subr.mxu0 0.0
  %1555 = vmatpush1.msra.mxu0 0.0
  %1556 = vmatprep.subr.mxu0 0.0
  %1557 = vmatpush1.msra.mxu0 0.0
  %1558 = vmatprep.subr.mxu0 0.0
  %1559 = vmatpush1.msra.mxu0 0.0
  %1560 = vmatprep.subr.mxu0 0.0
  %1561 = vmatpush1.msra.mxu0 0.0
  %1562 = vmatprep.subr.mxu0 0.0
  %1563 = vmatpush1.msra.mxu0 0.0
  %1564 = vmatprep.subr.mxu0 0.0
  %1565 = vmatpush1.msra.mxu0 0.0
  %1566 = vmatprep.subr.mxu0 0.0
  %1567 = vmatpush1.msra.mxu0 0.0
  %1568 = vmatprep.subr.mxu0 0.0
  %1569 = vmatpush1.msra.mxu0 0.0
  %1570 = vmatprep.subr.mxu0 0.0
  %1571 = vmatpush1.msra.mxu0 0.0
  %1572 = vmatprep.subr.mxu0 0.0
  %1573 = vmatpush1.msra.mxu0 0.0
  %1574 = vmatprep.subr.mxu0 0.0
  %1575 = vmatpush1.msra.mxu0 0.0
  %1576 = vmatprep.subr.mxu0 0.0
  %1577 = vmatpush1.msra.mxu0 0.0
  %1578 = vmatprep.subr.mxu0 0.0
  %1579 = vmatpush1.msra.mxu0 0.0
  %1580 = vmatprep.subr.mxu0 0.0
  %1581 = vmatpush1.msra.mxu0 0.0
  %1582 = vmatprep.subr.mxu0 0.0
  %1583 = vmatpush1.msra.mxu0 0.0
  %1584 = vmatprep.subr.mxu0 0.0
  %1585 = vmatpush1.msra.mxu0 0.0
  %1586 = vmatprep.subr.mxu0 0.0
  %1587 = vmatpush1.msra.mxu0 0.0
  %1588 = vmatprep.subr.mxu0 0.0
  %1589 = vmatpush1.msra.mxu0 0.0
  %1590 = vmatprep.subr.mxu0 0.0
  %1591 = vmatpush1.msra.mxu0 0.0
  %1592 = vmatprep.subr.mxu0 0.0
  %1593 = vmatpush1.msra.mxu0 0.0
  %1594 = vmatprep.subr.mxu0 0.0
  %1595 = vmatpush1.msra.mxu0 0.0
  %1596 = vmatprep.subr.mxu0 0.0
  %1597 = vmatpush1.msra.mxu0 0.0
  %1598 = vmatprep.subr.mxu0 0.0
  %1599 = vmatpush1.msra.mxu0 0.0
  %1600 = vmatprep.subr.mxu0 0.0
  %1601 = vmatpush1.msra.mxu0 0.0
  %1602 = vmatprep.subr.mxu0 0.0
  %1603 = vmatpush1.msra.mxu0 0.0
  %1604 = vmatprep.subr.mxu0 0.0
  %1605 = vmatpush1.msra.mxu0 0.0
  %1606 = vmatprep.subr.mxu0 0.0
  %1607 = vmatpush1.msra.mxu0 0.0
  %1608 = vmatprep.subr.mxu0 0.0
  %1609 = vmatpush1.msra.mxu0 0.0
  %1610 = vmatprep.subr.mxu0 0.0
  %1611 = vmatpush1.msra.mxu0 0.0
  %1612 = vmatprep.mubr.f32.mxu0 0.0
  %1613 = vmatmul.mubr.f32.gmra.mrb[0].mxu0 %v1225
  %v1614 = vpop.f32.mrb[0].mxu0
  %v1615 = vadd.f32 %v1222, %v1614
  %v1616 = vpop.f32.mrb[0].mxu0
  %1617 = vmatprep.mubr.f32.mxu0 0.0
  %1618 = vmatmul.mubr.f32.gmra.mrb[0].mxu0 %v1228
  %v1619 = vpop.f32.mrb[0].mxu0
  %v1620 = vadd.f32 %v1222, %v1619
  %v1621 = vpop.f32.mrb[0].mxu0
  %1622 = vmatprep.mubr.f32.mxu0 0.0
  %1623 = vmatmul.mubr.f32.gmra.mrb[0].mxu0 %v1231
  %v1624 = vpop.f32.mrb[0].mxu0
  %v1625 = vadd.f32 %v1222, %v1624
  %v1626 = vpop.f32.mrb[0].mxu0
  %1627 = vmatprep.mubr.f32.mxu0 0.0
  %1628 = vmatmul.mubr.f32.gmra.mrb[0].mxu0 %v1234
  %v1629 = vpop.f32.mrb[0].mxu0
  %v1630 = vadd.f32 %v1222, %v1629
  %v1631 = vpop.f32.mrb[0].mxu0
  %1632 = vmatprep.mubr.f32.mxu0 0.0
  %1633 = vmatmul.mubr.f32.gmra.mrb[0].mxu0 %v1237
  %v1634 = vpop.f32.mrb[0].mxu0
  %v1635 = vadd.f32 %v1222, %v1634
  %v1636 = vpop.f32.mrb[0].mxu0
  %1637 = vmatprep.mubr.f32.mxu0 0.0
  %1638 = vmatmul.mubr.f32.gmra.mrb[0].mxu0 %v1240
  %v1639 = vpop.f32.mrb[0].mxu0
  %v1640 = vadd.f32 %v1222, %v1639
  %v1641 = vpop.f32.mrb[0].mxu0
  %1642 = vmatprep.mubr.f32.mxu0 0.0
  %1643 = vmatmul.mubr.f32.gmra.mrb[0].mxu0 %v1243
  %v1644 = vpop.f32.mrb[0].mxu0
  %v1645 = vadd.f32 %v1222, %v1644
  %v1646 = vpop.f32.mrb[0].mxu0
  %1647 = vmatprep.mubr.f32.mxu0 0.0
  %1648 = vmatmul.mubr.f32.gmra.mrb[0].mxu0 %v1246
  %v1649 = vpop.f32.mrb[0].mxu0
  %v1650 = vadd.f32 %v1222, %v1649
  %v1651 = vpop.f32.mrb[0].mxu0
  %1652 = vmatprep.mubr.f32.mxu0 0.0
  %1653 = vmatmul.mubr.f32.gmra.mrb[0].mxu0 %v1249
  %v1654 = vpop.f32.mrb[0].mxu0
  %v1655 = vadd.f32 %v1222, %v1654
  %v1656 = vpop.f32.mrb[0].mxu0
  %1657 = vmatprep.mubr.f32.mxu0 0.0
  %1658 = vmatmul.mubr.f32.gmra.mrb[0].mxu0 %v1252
  %v1659 = vpop.f32.mrb[0].mxu0
  %v1660 = vadd.f32 %v1222, %v1659
  %v1661 = vpop.f32.mrb[0].mxu0
  %1662 = vmatprep.mubr.f32.mxu0 0.0
  %1663 = vmatmul.mubr.f32.gmra.mrb[0].mxu0 %v1255
  %v1664 = vpop.f32.mrb[0].mxu0
  %v1665 = vadd.f32 %v1222, %v1664
  %v1666 = vpop.f32.mrb[0].mxu0
  %1667 = vmatprep.mubr.f32.mxu0 0.0
  %1668 = vmatmul.mubr.f32.gmra.mrb[0].mxu0 %v1258
  %v1669 = vpop.f32.mrb[0].mxu0
  %v1670 = vadd.f32 %v1222, %v1669
  %v1671 = vpop.f32.mrb[0].mxu0
  %1672 = vmatprep.mubr.f32.mxu0 0.0
  %1673 = vmatmul.mubr.f32.gmra.mrb[0].mxu0 %v1261
  %v1674 = vpop.f32.mrb[0].mxu0
  %v1675 = vadd.f32 %v1222, %v1674
  %v1676 = vpop.f32.mrb[0].mxu0
  %1677 = vmatprep.mubr.f32.mxu0 0.0
  %1678 = vmatmul.mubr.f32.gmra.mrb[0].mxu0 %v1264
  %v1679 = vpop.f32.mrb[0].mxu0
  %v1680 = vadd.f32 %v1222, %v1679
  %v1681 = vpop.f32.mrb[0].mxu0
  %1682 = vmatprep.mubr.f32.mxu0 0.0
  %1683 = vmatmul.mubr.f32.gmra.mrb[0].mxu0 %v1267
  %v1684 = vpop.f32.mrb[0].mxu0
  %v1685 = vadd.f32 %v1222, %v1684
  %v1686 = vpop.f32.mrb[0].mxu0
  %1687 = vmatprep.mubr.f32.mxu0 0.0
  %1688 = vmatmul.mubr.f32.gmra.mrb[0].mxu0 %v1270
  %v1689 = vpop.f32.mrb[0].mxu0
  %v1690 = vadd.f32 %v1222, %v1689
  %v1691 = vpop.f32.mrb[0].mxu0
  %1692 = vmatprep.mubr.f32.mxu0 0.0
  %1693 = vmatmul.mubr.f32.gmra.mrb[0].mxu0 %v1273
  %v1694 = vpop.f32.mrb[0].mxu0
  %v1695 = vadd.f32 %v1222, %v1694
  %v1696 = vpop.f32.mrb[0].mxu0
  %1697 = vmatprep.mubr.f32.mxu0 0.0
  %1698 = vmatmul.mubr.f32.gmra.mrb[0].mxu0 %v1276
  %v1699 = vpop.f32.mrb[0].mxu0
  %v1700 = vadd.f32 %v1222, %v1699
  %v1701 = vpop.f32.mrb[0].mxu0
  %1702 = vmatprep.mubr.f32.mxu0 0.0
  %1703 = vmatmul.mubr.f32.gmra.mrb[0].mxu0 %v1279
  %v1704 = vpop.f32.mrb[0].mxu0
  %v1705 = vadd.f32 %v1222, %v1704
  %v1706 = vpop.f32.mrb[0].mxu0
  %1707 = vmatprep.mubr.f32.mxu0 0.0
  %1708 = vmatmul.mubr.f32.gmra.mrb[0].mxu0 %v1282
  %v1709 = vpop.f32.mrb[0].mxu0
  %v1710 = vadd.f32 %v1222, %v1709
  %v1711 = vpop.f32.mrb[0].mxu0
  %1712 = vmatprep.mubr.f32.mxu0 0.0
  %1713 = vmatmul.mubr.f32.gmra.mrb[0].mxu0 %v1285
  %v1714 = vpop.f32.mrb[0].mxu0
  %v1715 = vadd.f32 %v1222, %v1714
  %v1716 = vpop.f32.mrb[0].mxu0
  %1717 = vmatprep.mubr.f32.mxu0 0.0
  %1718 = vmatmul.mubr.f32.gmra.mrb[0].mxu0 %v1288
  %v1719 = vpop.f32.mrb[0].mxu0
  %v1720 = vadd.f32 %v1222, %v1719
  %v1721 = vpop.f32.mrb[0].mxu0
  %1722 = vmatprep.mubr.f32.mxu0 0.0
  %1723 = vmatmul.mubr.f32.gmra.mrb[0].mxu0 %v1291
  %v1724 = vpop.f32.mrb[0].mxu0
  %v1725 = vadd.f32 %v1222, %v1724
  %v1726 = vpop.f32.mrb[0].mxu0
  %1727 = vmatprep.mubr.f32.mxu0 0.0
  %1728 = vmatmul.mubr.f32.gmra.mrb[0].mxu0 %v1294
  %v1729 = vpop.f32.mrb[0].mxu0
  %v1730 = vadd.f32 %v1222, %v1729
  %v1731 = vpop.f32.mrb[0].mxu0
  %1732 = vmatprep.mubr.f32.mxu0 0.0
  %1733 = vmatmul.mubr.f32.gmra.mrb[0].mxu0 %v1297
  %v1734 = vpop.f32.mrb[0].mxu0
  %v1735 = vadd.f32 %v1222, %v1734
  %v1736 = vpop.f32.mrb[0].mxu0
  %1737 = vmatprep.mubr.f32.mxu0 0.0
  %1738 = vmatmul.mubr.f32.gmra.mrb[0].mxu0 %v1300
  %v1739 = vpop.f32.mrb[0].mxu0
  %v1740 = vadd.f32 %v1222, %v1739
  %v1741 = vpop.f32.mrb[0].mxu0
  %1742 = vmatprep.mubr.f32.mxu0 0.0
  %1743 = vmatmul.mubr.f32.gmra.mrb[0].mxu0 %v1303
  %v1744 = vpop.f32.mrb[0].mxu0
  %v1745 = vadd.f32 %v1222, %v1744
  %v1746 = vpop.f32.mrb[0].mxu0
  %1747 = vmatprep.mubr.f32.mxu0 0.0
  %1748 = vmatmul.mubr.f32.gmra.mrb[0].mxu0 %v1306
  %v1749 = vpop.f32.mrb[0].mxu0
  %v1750 = vadd.f32 %v1222, %v1749
  %v1751 = vpop.f32.mrb[0].mxu0
  %1752 = vmatprep.mubr.f32.mxu0 0.0
  %1753 = vmatmul.mubr.f32.gmra.mrb[0].mxu0 %v1309
  %v1754 = vpop.f32.mrb[0].mxu0
  %v1755 = vadd.f32 %v1222, %v1754
  %v1756 = vpop.f32.mrb[0].mxu0
  %1757 = vmatprep.mubr.f32.mxu0 0.0
  %1758 = vmatmul.mubr.f32.gmra.mrb[0].mxu0 %v1312
  %v1759 = vpop.f32.mrb[0].mxu0
  %v1760 = vadd.f32 %v1222, %v1759
  %v1761 = vpop.f32.mrb[0].mxu0
  %1762 = vmatprep.mubr.f32.mxu0 0.0
  %1763 = vmatmul.mubr.f32.gmra.mrb[0].mxu0 %v1315
  %v1764 = vpop.f32.mrb[0].mxu0
  %v1765 = vadd.f32 %v1222, %v1764
  %v1766 = vpop.f32.mrb[0].mxu0
  %1767 = vmatprep.mubr.f32.mxu0 0.0
  %1768 = vmatmul.mubr.f32.gmra.mrb[0].mxu0 %v1318
  %v1769 = vpop.f32.mrb[0].mxu0
  %v1770 = vadd.f32 %v1222, %v1769
  %v1771 = vpop.f32.mrb[0].mxu0
  %1772 = vmatprep.mubr.f32.mxu0 0.0
  %1773 = vmatmul.mubr.f32.gmra.mrb[0].mxu0 %v1321
  %v1774 = vpop.f32.mrb[0].mxu0
  %v1775 = vadd.f32 %v1222, %v1774
  %v1776 = vpop.f32.mrb[0].mxu0
  %1777 = vmatprep.mubr.f32.mxu0 0.0
  %1778 = vmatmul.mubr.f32.gmra.mrb[0].mxu0 %v1324
  %v1779 = vpop.f32.mrb[0].mxu0
  %v1780 = vadd.f32 %v1222, %v1779
  %v1781 = vpop.f32.mrb[0].mxu0
  %1782 = vmatprep.mubr.f32.mxu0 0.0
  %1783 = vmatmul.mubr.f32.gmra.mrb[0].mxu0 %v1327
  %v1784 = vpop.f32.mrb[0].mxu0
  %v1785 = vadd.f32 %v1222, %v1784
  %v1786 = vpop.f32.mrb[0].mxu0
  %1787 = vmatprep.mubr.f32.mxu0 0.0
  %1788 = vmatmul.mubr.f32.gmra.mrb[0].mxu0 %v1330
  %v1789 = vpop.f32.mrb[0].mxu0
  %v1790 = vadd.f32 %v1222, %v1789
  %v1791 = vpop.f32.mrb[0].mxu0
  %1792 = vmatprep.mubr.f32.mxu0 0.0
  %1793 = vmatmul.mubr.f32.gmra.mrb[0].mxu0 %v1333
  %v1794 = vpop.f32.mrb[0].mxu0
  %v1795 = vadd.f32 %v1222, %v1794
  %v1796 = vpop.f32.mrb[0].mxu0
  %1797 = vmatprep.mubr.f32.mxu0 0.0
  %1798 = vmatmul.mubr.f32.gmra.mrb[0].mxu0 %v1336
  %v1799 = vpop.f32.mrb[0].mxu0
  %v1800 = vadd.f32 %v1222, %v1799
  %v1801 = vpop.f32.mrb[0].mxu0
  %1802 = vmatprep.mubr.f32.mxu0 0.0
  %1803 = vmatmul.mubr.f32.gmra.mrb[0].mxu0 %v1339
  %v1804 = vpop.f32.mrb[0].mxu0
  %v1805 = vadd.f32 %v1222, %v1804
  %v1806 = vpop.f32.mrb[0].mxu0
  %1807 = vmatprep.mubr.f32.mxu0 0.0
  %1808 = vmatmul.mubr.f32.gmra.mrb[0].mxu0 %v1342
  %v1809 = vpop.f32.mrb[0].mxu0
  %v1810 = vadd.f32 %v1222, %v1809
  %v1811 = vpop.f32.mrb[0].mxu0
  %1812 = vmatprep.mubr.f32.mxu0 0.0
  %1813 = vmatmul.mubr.f32.gmra.mrb[0].mxu0 %v1345
  %v1814 = vpop.f32.mrb[0].mxu0
  %v1815 = vadd.f32 %v1222, %v1814
  %v1816 = vpop.f32.mrb[0].mxu0
  %1817 = vmatprep.mubr.f32.mxu0 0.0
  %1818 = vmatmul.mubr.f32.gmra.mrb[0].mxu0 %v1348
  %v1819 = vpop.f32.mrb[0].mxu0
  %v1820 = vadd.f32 %v1222, %v1819
  %v1821 = vpop.f32.mrb[0].mxu0
  %1822 = vmatprep.mubr.f32.mxu0 0.0
  %1823 = vmatmul.mubr.f32.gmra.mrb[0].mxu0 %v1351
  %v1824 = vpop.f32.mrb[0].mxu0
  %v1825 = vadd.f32 %v1222, %v1824
  %v1826 = vpop.f32.mrb[0].mxu0
  %1827 = vmatprep.mubr.f32.mxu0 0.0
  %1828 = vmatmul.mubr.f32.gmra.mrb[0].mxu0 %v1354
  %v1829 = vpop.f32.mrb[0].mxu0
  %v1830 = vadd.f32 %v1222, %v1829
  %v1831 = vpop.f32.mrb[0].mxu0
  %1832 = vmatprep.mubr.f32.mxu0 0.0
  %1833 = vmatmul.mubr.f32.gmra.mrb[0].mxu0 %v1357
  %v1834 = vpop.f32.mrb[0].mxu0
  %v1835 = vadd.f32 %v1222, %v1834
  %v1836 = vpop.f32.mrb[0].mxu0
  %1837 = vmatprep.mubr.f32.mxu0 0.0
  %1838 = vmatmul.mubr.f32.gmra.mrb[0].mxu0 %v1360
  %v1839 = vpop.f32.mrb[0].mxu0
  %v1840 = vadd.f32 %v1222, %v1839
  %v1841 = vpop.f32.mrb[0].mxu0
  %1842 = vmatprep.mubr.f32.mxu0 0.0
  %1843 = vmatmul.mubr.f32.gmra.mrb[0].mxu0 %v1363
  %v1844 = vpop.f32.mrb[0].mxu0
  %v1845 = vadd.f32 %v1222, %v1844
  %v1846 = vpop.f32.mrb[0].mxu0
  %1847 = vmatprep.mubr.f32.mxu0 0.0
  %1848 = vmatmul.mubr.f32.gmra.mrb[0].mxu0 %v1366
  %v1849 = vpop.f32.mrb[0].mxu0
  %v1850 = vadd.f32 %v1222, %v1849
  %v1851 = vpop.f32.mrb[0].mxu0
  %1852 = vmatprep.mubr.f32.mxu0 0.0
  %1853 = vmatmul.mubr.f32.gmra.mrb[0].mxu0 %v1369
  %v1854 = vpop.f32.mrb[0].mxu0
  %v1855 = vadd.f32 %v1222, %v1854
  %v1856 = vpop.f32.mrb[0].mxu0
  %1857 = vmatprep.mubr.f32.mxu0 0.0
  %1858 = vmatmul.mubr.f32.gmra.mrb[0].mxu0 %v1372
  %v1859 = vpop.f32.mrb[0].mxu0
  %v1860 = vadd.f32 %v1222, %v1859
  %v1861 = vpop.f32.mrb[0].mxu0
  %1862 = vmatprep.mubr.f32.mxu0 0.0
  %1863 = vmatmul.mubr.f32.gmra.mrb[0].mxu0 %v1375
  %v1864 = vpop.f32.mrb[0].mxu0
  %v1865 = vadd.f32 %v1222, %v1864
  %v1866 = vpop.f32.mrb[0].mxu0
  %1867 = vmatprep.mubr.f32.mxu0 0.0
  %1868 = vmatmul.mubr.f32.gmra.mrb[0].mxu0 %v1378
  %v1869 = vpop.f32.mrb[0].mxu0
  %v1870 = vadd.f32 %v1222, %v1869
  %v1871 = vpop.f32.mrb[0].mxu0
  %1872 = vmatprep.mubr.f32.mxu0 0.0
  %1873 = vmatmul.mubr.f32.gmra.mrb[0].mxu0 %v1381
  %v1874 = vpop.f32.mrb[0].mxu0
  %v1875 = vadd.f32 %v1222, %v1874
  %v1876 = vpop.f32.mrb[0].mxu0
  %1877 = vmatprep.mubr.f32.mxu0 0.0
  %1878 = vmatmul.mubr.f32.gmra.mrb[0].mxu0 %v1384
  %v1879 = vpop.f32.mrb[0].mxu0
  %v1880 = vadd.f32 %v1222, %v1879
  %v1881 = vpop.f32.mrb[0].mxu0
  %1882 = vmatprep.mubr.f32.mxu0 0.0
  %1883 = vmatmul.mubr.f32.gmra.mrb[0].mxu0 %v1387
  %v1884 = vpop.f32.mrb[0].mxu0
  %v1885 = vadd.f32 %v1222, %v1884
  %v1886 = vpop.f32.mrb[0].mxu0
  %1887 = vmatprep.mubr.f32.mxu0 0.0
  %1888 = vmatmul.mubr.f32.gmra.mrb[0].mxu0 %v1390
  %v1889 = vpop.f32.mrb[0].mxu0
  %v1890 = vadd.f32 %v1222, %v1889
  %v1891 = vpop.f32.mrb[0].mxu0
  %1892 = vmatprep.mubr.f32.mxu0 0.0
  %1893 = vmatmul.mubr.f32.gmra.mrb[0].mxu0 %v1393
  %v1894 = vpop.f32.mrb[0].mxu0
  %v1895 = vadd.f32 %v1222, %v1894
  %v1896 = vpop.f32.mrb[0].mxu0
  %1897 = vmatprep.mubr.f32.mxu0 0.0
  %1898 = vmatmul.mubr.f32.gmra.mrb[0].mxu0 %v1396
  %v1899 = vpop.f32.mrb[0].mxu0
  %v1900 = vadd.f32 %v1222, %v1899
  %v1901 = vpop.f32.mrb[0].mxu0
  %1902 = vmatprep.mubr.f32.mxu0 0.0
  %1903 = vmatmul.mubr.f32.gmra.mrb[0].mxu0 %v1399
  %v1904 = vpop.f32.mrb[0].mxu0
  %v1905 = vadd.f32 %v1222, %v1904
  %v1906 = vpop.f32.mrb[0].mxu0
  %1907 = vmatprep.mubr.f32.mxu0 0.0
  %1908 = vmatmul.mubr.f32.gmra.mrb[0].mxu0 %v1402
  %v1909 = vpop.f32.mrb[0].mxu0
  %v1910 = vadd.f32 %v1222, %v1909
  %v1911 = vpop.f32.mrb[0].mxu0
  %1912 = vmatprep.mubr.f32.mxu0 0.0
  %1913 = vmatmul.mubr.f32.gmra.mrb[0].mxu0 %v1405
  %v1914 = vpop.f32.mrb[0].mxu0
  %v1915 = vadd.f32 %v1222, %v1914
  %v1916 = vpop.f32.mrb[0].mxu0
  %1917 = vmatprep.mubr.f32.mxu0 0.0
  %1918 = vmatmul.mubr.f32.gmra.mrb[0].mxu0 %v1408
  %v1919 = vpop.f32.mrb[0].mxu0
  %v1920 = vadd.f32 %v1222, %v1919
  %v1921 = vpop.f32.mrb[0].mxu0
  %1922 = vmatprep.mubr.f32.mxu0 0.0
  %1923 = vmatmul.mubr.f32.gmra.mrb[0].mxu0 %v1411
  %v1924 = vpop.f32.mrb[0].mxu0
  %v1925 = vadd.f32 %v1222, %v1924
  %v1926 = vpop.f32.mrb[0].mxu0
  %1927 = vmatprep.mubr.f32.mxu0 0.0
  %1928 = vmatmul.mubr.f32.gmra.mrb[0].mxu0 %v1414
  %v1929 = vpop.f32.mrb[0].mxu0
  %v1930 = vadd.f32 %v1222, %v1929
  %v1931 = vpop.f32.mrb[0].mxu0
  %1932 = vmatprep.mubr.f32.mxu0 0.0
  %1933 = vmatmul.mubr.f32.gmra.mrb[0].mxu0 %v1417
  %v1934 = vpop.f32.mrb[0].mxu0
  %v1935 = vadd.f32 %v1222, %v1934
  %v1936 = vpop.f32.mrb[0].mxu0
  %1937 = vmatprep.mubr.f32.mxu0 0.0
  %1938 = vmatmul.mubr.f32.gmra.mrb[0].mxu0 %v1420
  %v1939 = vpop.f32.mrb[0].mxu0
  %v1940 = vadd.f32 %v1222, %v1939
  %v1941 = vpop.f32.mrb[0].mxu0
  %1942 = vmatprep.mubr.f32.mxu0 0.0
  %1943 = vmatmul.mubr.f32.gmra.mrb[0].mxu0 %v1423
  %v1944 = vpop.f32.mrb[0].mxu0
  %v1945 = vadd.f32 %v1222, %v1944
  %v1946 = vpop.f32.mrb[0].mxu0
  %1947 = vmatprep.mubr.f32.mxu0 0.0
  %1948 = vmatmul.mubr.f32.gmra.mrb[0].mxu0 %v1426
  %v1949 = vpop.f32.mrb[0].mxu0
  %v1950 = vadd.f32 %v1222, %v1949
  %v1951 = vpop.f32.mrb[0].mxu0
  %1952 = vmatprep.mubr.f32.mxu0 0.0
  %1953 = vmatmul.mubr.f32.gmra.mrb[0].mxu0 %v1429
  %v1954 = vpop.f32.mrb[0].mxu0
  %v1955 = vadd.f32 %v1222, %v1954
  %v1956 = vpop.f32.mrb[0].mxu0
  %1957 = vmatprep.mubr.f32.mxu0 0.0
  %1958 = vmatmul.mubr.f32.gmra.mrb[0].mxu0 %v1432
  %v1959 = vpop.f32.mrb[0].mxu0
  %v1960 = vadd.f32 %v1222, %v1959
  %v1961 = vpop.f32.mrb[0].mxu0
  %1962 = vmatprep.mubr.f32.mxu0 0.0
  %1963 = vmatmul.mubr.f32.gmra.mrb[0].mxu0 %v1435
  %v1964 = vpop.f32.mrb[0].mxu0
  %v1965 = vadd.f32 %v1222, %v1964
  %v1966 = vpop.f32.mrb[0].mxu0
  %1967 = vmatprep.mubr.f32.mxu0 0.0
  %1968 = vmatmul.mubr.f32.gmra.mrb[0].mxu0 %v1438
  %v1969 = vpop.f32.mrb[0].mxu0
  %v1970 = vadd.f32 %v1222, %v1969
  %v1971 = vpop.f32.mrb[0].mxu0
  %1972 = vmatprep.mubr.f32.mxu0 0.0
  %1973 = vmatmul.mubr.f32.gmra.mrb[0].mxu0 %v1441
  %v1974 = vpop.f32.mrb[0].mxu0
  %v1975 = vadd.f32 %v1222, %v1974
  %v1976 = vpop.f32.mrb[0].mxu0
  %1977 = vmatprep.mubr.f32.mxu0 0.0
  %1978 = vmatmul.mubr.f32.gmra.mrb[0].mxu0 %v1444
  %v1979 = vpop.f32.mrb[0].mxu0
  %v1980 = vadd.f32 %v1222, %v1979
  %v1981 = vpop.f32.mrb[0].mxu0
  %1982 = vmatprep.mubr.f32.mxu0 0.0
  %1983 = vmatmul.mubr.f32.gmra.mrb[0].mxu0 %v1447
  %v1984 = vpop.f32.mrb[0].mxu0
  %v1985 = vadd.f32 %v1222, %v1984
  %v1986 = vpop.f32.mrb[0].mxu0
  %1987 = vmatprep.mubr.f32.mxu0 0.0
  %1988 = vmatmul.mubr.f32.gmra.mrb[0].mxu0 %v1450
  %v1989 = vpop.f32.mrb[0].mxu0
  %v1990 = vadd.f32 %v1222, %v1989
  %v1991 = vpop.f32.mrb[0].mxu0
  %1992 = vmatprep.mubr.f32.mxu0 0.0
  %1993 = vmatmul.mubr.f32.gmra.mrb[0].mxu0 %v1453
  %v1994 = vpop.f32.mrb[0].mxu0
  %v1995 = vadd.f32 %v1222, %v1994
  %v1996 = vpop.f32.mrb[0].mxu0
  %1997 = vmatprep.mubr.f32.mxu0 0.0
  %1998 = vmatmul.mubr.f32.gmra.mrb[0].mxu0 %v1456
  %v1999 = vpop.f32.mrb[0].mxu0
  %v2000 = vadd.f32 %v1222, %v1999
  %v2001 = vpop.f32.mrb[0].mxu0
  %2002 = vmatprep.mubr.f32.mxu0 0.0
  %2003 = vmatmul.mubr.f32.gmra.mrb[0].mxu0 %v1459
  %v2004 = vpop.f32.mrb[0].mxu0
  %v2005 = vadd.f32 %v1222, %v2004
  %v2006 = vpop.f32.mrb[0].mxu0
  %2007 = vmatprep.mubr.f32.mxu0 0.0
  %2008 = vmatmul.mubr.f32.gmra.mrb[0].mxu0 %v1462
  %v2009 = vpop.f32.mrb[0].mxu0
  %v2010 = vadd.f32 %v1222, %v2009
  %v2011 = vpop.f32.mrb[0].mxu0
  %2012 = vmatprep.mubr.f32.mxu0 0.0
  %2013 = vmatmul.mubr.f32.gmra.mrb[0].mxu0 %v1465
  %v2014 = vpop.f32.mrb[0].mxu0
  %v2015 = vadd.f32 %v1222, %v2014
  %v2016 = vpop.f32.mrb[0].mxu0
  %2017 = vmatprep.mubr.f32.mxu0 0.0
  %2018 = vmatmul.mubr.f32.gmra.mrb[0].mxu0 %v1468
  %v2019 = vpop.f32.mrb[0].mxu0
  %v2020 = vadd.f32 %v1222, %v2019
  %v2021 = vpop.f32.mrb[0].mxu0
  %2022 = vmatprep.mubr.f32.mxu0 0.0
  %2023 = vmatmul.mubr.f32.gmra.mrb[0].mxu0 %v1471
  %v2024 = vpop.f32.mrb[0].mxu0
  %v2025 = vadd.f32 %v1222, %v2024
  %v2026 = vpop.f32.mrb[0].mxu0
  %2027 = vmatprep.mubr.f32.mxu0 0.0
  %2028 = vmatmul.mubr.f32.gmra.mrb[0].mxu0 %v1474
  %v2029 = vpop.f32.mrb[0].mxu0
  %v2030 = vadd.f32 %v1222, %v2029
  %v2031 = vpop.f32.mrb[0].mxu0
  %2032 = vmatprep.mubr.f32.mxu0 0.0
  %2033 = vmatmul.mubr.f32.gmra.mrb[0].mxu0 %v1477
  %v2034 = vpop.f32.mrb[0].mxu0
  %v2035 = vadd.f32 %v1222, %v2034
  %v2036 = vpop.f32.mrb[0].mxu0
  %2037 = vmatprep.mubr.f32.mxu0 0.0
  %2038 = vmatmul.mubr.f32.gmra.mrb[0].mxu0 %v1480
  %v2039 = vpop.f32.mrb[0].mxu0
  %v2040 = vadd.f32 %v1222, %v2039
  %v2041 = vpop.f32.mrb[0].mxu0
  %2042 = vmatprep.mubr.f32.mxu0 0.0
  %2043 = vmatmul.mubr.f32.gmra.mrb[0].mxu0 %v1483
  %v2044 = vpop.f32.mrb[0].mxu0
  %v2045 = vadd.f32 %v1222, %v2044
  %v2046 = vpop.f32.mrb[0].mxu0
  %2047 = vmatprep.mubr.f32.mxu0 0.0
  %2048 = vmatmul.mubr.f32.gmra.mrb[0].mxu0 %v1486
  %v2049 = vpop.f32.mrb[0].mxu0
  %v2050 = vadd.f32 %v1222, %v2049
  %v2051 = vpop.f32.mrb[0].mxu0
  %2052 = vmatprep.mubr.f32.mxu0 0.0
  %2053 = vmatmul.mubr.f32.gmra.mrb[0].mxu0 %v1489
  %v2054 = vpop.f32.mrb[0].mxu0
  %v2055 = vadd.f32 %v1222, %v2054
  %v2056 = vpop.f32.mrb[0].mxu0
  %2057 = vmatprep.mubr.f32.mxu0 0.0
  %2058 = vmatmul.mubr.f32.gmra.mrb[0].mxu0 %v1492
  %v2059 = vpop.f32.mrb[0].mxu0
  %v2060 = vadd.f32 %v1222, %v2059
  %v2061 = vpop.f32.mrb[0].mxu0
  %2062 = vmatprep.mubr.f32.mxu0 0.0
  %2063 = vmatmul.mubr.f32.gmra.mrb[0].mxu0 %v1495
  %v2064 = vpop.f32.mrb[0].mxu0
  %v2065 = vadd.f32 %v1222, %v2064
  %v2066 = vpop.f32.mrb[0].mxu0
  %2067 = vmatprep.mubr.f32.mxu0 0.0
  %2068 = vmatmul.mubr.f32.gmra.mrb[0].mxu0 %v1498
  %v2069 = vpop.f32.mrb[0].mxu0
  %v2070 = vadd.f32 %v1222, %v2069
  %v2071 = vpop.f32.mrb[0].mxu0
  %2072 = vmatprep.mubr.f32.mxu0 0.0
  %2073 = vmatmul.mubr.f32.gmra.mrb[0].mxu0 %v1501
  %v2074 = vpop.f32.mrb[0].mxu0
  %v2075 = vadd.f32 %v1222, %v2074
  %v2076 = vpop.f32.mrb[0].mxu0
  %2077 = vmatprep.mubr.f32.mxu0 0.0
  %2078 = vmatmul.mubr.f32.gmra.mrb[0].mxu0 %v1504
  %v2079 = vpop.f32.mrb[0].mxu0
  %v2080 = vadd.f32 %v1222, %v2079
  %v2081 = vpop.f32.mrb[0].mxu0
  %2082 = vmatprep.mubr.f32.mxu0 0.0
  %2083 = vmatmul.mubr.f32.gmra.mrb[0].mxu0 %v1507
  %v2084 = vpop.f32.mrb[0].mxu0
  %v2085 = vadd.f32 %v1222, %v2084
  %v2086 = vpop.f32.mrb[0].mxu0
  %2087 = vmatprep.mubr.f32.mxu0 0.0
  %2088 = vmatmul.mubr.f32.gmra.mrb[0].mxu0 %v1510
  %v2089 = vpop.f32.mrb[0].mxu0
  %v2090 = vadd.f32 %v1222, %v2089
  %v2091 = vpop.f32.mrb[0].mxu0
  %2092 = vmatprep.mubr.f32.mxu0 0.0
  %2093 = vmatmul.mubr.f32.gmra.mrb[0].mxu0 %v1513
  %v2094 = vpop.f32.mrb[0].mxu0
  %v2095 = vadd.f32 %v1222, %v2094
  %v2096 = vpop.f32.mrb[0].mxu0
  %2097 = vmatprep.mubr.f32.mxu0 0.0
  %2098 = vmatmul.mubr.f32.gmra.mrb[0].mxu0 %v1516
  %v2099 = vpop.f32.mrb[0].mxu0
  %v2100 = vadd.f32 %v1222, %v2099
  %v2101 = vpop.f32.mrb[0].mxu0
  %2102 = vmatprep.mubr.f32.mxu0 0.0
  %2103 = vmatmul.mubr.f32.gmra.mrb[0].mxu0 %v1519
  %v2104 = vpop.f32.mrb[0].mxu0
  %v2105 = vadd.f32 %v1222, %v2104
  %v2106 = vpop.f32.mrb[0].mxu0
  %2107 = vmatprep.mubr.f32.mxu0 0.0
  %2108 = vmatmul.mubr.f32.gmra.mrb[0].mxu0 %v1522
  %v2109 = vpop.f32.mrb[0].mxu0
  %v2110 = vadd.f32 %v1222, %v2109
  %v2111 = vpop.f32.mrb[0].mxu0
  %2112 = vmatprep.mubr.f32.mxu0 0.0
  %2113 = vmatmul.mubr.f32.gmra.mrb[0].mxu0 %v1525
  %v2114 = vpop.f32.mrb[0].mxu0
  %v2115 = vadd.f32 %v1222, %v2114
  %v2116 = vpop.f32.mrb[0].mxu0
  %2117 = vmatprep.mubr.f32.mxu0 0.0
  %2118 = vmatmul.mubr.f32.gmra.mrb[0].mxu0 %v1528
  %v2119 = vpop.f32.mrb[0].mxu0
  %v2120 = vadd.f32 %v1222, %v2119
  %v2121 = vpop.f32.mrb[0].mxu0
  %2122 = vmatprep.mubr.f32.mxu0 0.0
  %2123 = vmatmul.mubr.f32.gmra.mrb[0].mxu0 %v1531
  %v2124 = vpop.f32.mrb[0].mxu0
  %v2125 = vadd.f32 %v1222, %v2124
  %v2126 = vpop.f32.mrb[0].mxu0
  %2127 = vmatprep.mubr.f32.mxu0 0.0
  %2128 = vmatmul.mubr.f32.gmra.mrb[0].mxu0 %v1534
  %v2129 = vpop.f32.mrb[0].mxu0
  %v2130 = vadd.f32 %v1222, %v2129
  %v2131 = vpop.f32.mrb[0].mxu0
  %2132 = vmatprep.mubr.f32.mxu0 0.0
  %2133 = vmatmul.mubr.f32.gmra.mrb[0].mxu0 %v1537
  %v2134 = vpop.f32.mrb[0].mxu0
  %v2135 = vadd.f32 %v1222, %v2134
  %v2136 = vpop.f32.mrb[0].mxu0
  %2137 = vmatprep.mubr.f32.mxu0 0.0
  %2138 = vmatmul.mubr.f32.gmra.mrb[0].mxu0 %v1540
  %v2139 = vpop.f32.mrb[0].mxu0
  %v2140 = vadd.f32 %v1222, %v2139
  %v2141 = vpop.f32.mrb[0].mxu0
  %2142 = vmatprep.mubr.f32.mxu0 0.0
  %2143 = vmatmul.mubr.f32.gmra.mrb[0].mxu0 %v1543
  %v2144 = vpop.f32.mrb[0].mxu0
  %v2145 = vadd.f32 %v1222, %v2144
  %v2146 = vpop.f32.mrb[0].mxu0
  %2147 = vmatprep.mubr.f32.mxu0 0.0
  %2148 = vmatmul.mubr.f32.gmra.mrb[0].mxu0 %v1546
  %v2149 = vpop.f32.mrb[0].mxu0
  %v2150 = vadd.f32 %v1222, %v2149
  %v2151 = vpop.f32.mrb[0].mxu0
  %2152 = vdwg.mxu0
  %v2153 = vmax.f32 %v1615, 0.0
  %v2154 = vmax.f32 %v1620, 0.0
  %v2155 = vmax.f32 %v1625, 0.0
  %v2156 = vmax.f32 %v1630, 0.0
  %v2157 = vmax.f32 %v1635, 0.0
  %v2158 = vmax.f32 %v1640, 0.0
  %v2159 = vmax.f32 %v1645, 0.0
  %v2160 = vmax.f32 %v1650, 0.0
  %v2161 = vmax.f32 %v1655, 0.0
  %v2162 = vmax.f32 %v1660, 0.0
  %v2163 = vmax.f32 %v1665, 0.0
  %v2164 = vmax.f32 %v1670, 0.0
  %v2165 = vmax.f32 %v1675, 0.0
  %v2166 = vmax.f32 %v1680, 0.0
  %v2167 = vmax.f32 %v1685, 0.0
  %v2168 = vmax.f32 %v1690, 0.0
  %v2169 = vmax.f32 %v1695, 0.0
  %v2170 = vmax.f32 %v1700, 0.0
  %v2171 = vmax.f32 %v1705, 0.0
  %v2172 = vmax.f32 %v1710, 0.0
  %v2173 = vmax.f32 %v1715, 0.0
  %v2174 = vmax.f32 %v1720, 0.0
  %v2175 = vmax.f32 %v1725, 0.0
  %v2176 = vmax.f32 %v1730, 0.0
  %v2177 = vmax.f32 %v1735, 0.0
  %v2178 = vmax.f32 %v1740, 0.0
  %v2179 = vmax.f32 %v1745, 0.0
  %v2180 = vmax.f32 %v1750, 0.0
  %v2181 = vmax.f32 %v1755, 0.0
  %v2182 = vmax.f32 %v1760, 0.0
  %v2183 = vmax.f32 %v1765, 0.0
  %v2184 = vmax.f32 %v1770, 0.0
  %v2185 = vmax.f32 %v1775, 0.0
  %v2186 = vmax.f32 %v1780, 0.0
  %v2187 = vmax.f32 %v1785, 0.0
  %v2188 = vmax.f32 %v1790, 0.0
  %v2189 = vmax.f32 %v1795, 0.0
  %v2190 = vmax.f32 %v1800, 0.0
  %v2191 = vmax.f32 %v1805, 0.0
  %v2192 = vmax.f32 %v1810, 0.0
  %v2193 = vmax.f32 %v1815, 0.0
  %v2194 = vmax.f32 %v1820, 0.0
  %v2195 = vmax.f32 %v1825, 0.0
  %v2196 = vmax.f32 %v1830, 0.0
  %v2197 = vmax.f32 %v1835, 0.0
  %v2198 = vmax.f32 %v1840, 0.0
  %v2199 = vmax.f32 %v1845, 0.0
  %v2200 = vmax.f32 %v1850, 0.0
  %v2201 = vmax.f32 %v1855, 0.0
  %v2202 = vmax.f32 %v1860, 0.0
  %v2203 = vmax.f32 %v1865, 0.0
  %v2204 = vmax.f32 %v1870, 0.0
  %v2205 = vmax.f32 %v1875, 0.0
  %v2206 = vmax.f32 %v1880, 0.0
  %v2207 = vmax.f32 %v1885, 0.0
  %v2208 = vmax.f32 %v1890, 0.0
  %v2209 = vmax.f32 %v1895, 0.0
  %v2210 = vmax.f32 %v1900, 0.0
  %v2211 = vmax.f32 %v1905, 0.0
  %v2212 = vmax.f32 %v1910, 0.0
  %v2213 = vmax.f32 %v1915, 0.0
  %v2214 = vmax.f32 %v1920, 0.0
  %v2215 = vmax.f32 %v1925, 0.0
  %v2216 = vmax.f32 %v1930, 0.0
  %v2217 = vmax.f32 %v1935, 0.0
  %v2218 = vmax.f32 %v1940, 0.0
  %v2219 = vmax.f32 %v1945, 0.0
  %v2220 = vmax.f32 %v1950, 0.0
  %v2221 = vmax.f32 %v1955, 0.0
  %v2222 = vmax.f32 %v1960, 0.0
  %v2223 = vmax.f32 %v1965, 0.0
  %v2224 = vmax.f32 %v1970, 0.0
  %v2225 = vmax.f32 %v1975, 0.0
  %v2226 = vmax.f32 %v1980, 0.0
  %v2227 = vmax.f32 %v1985, 0.0
  %v2228 = vmax.f32 %v1990, 0.0
  %v2229 = vmax.f32 %v1995, 0.0
  %v2230 = vmax.f32 %v2000, 0.0
  %v2231 = vmax.f32 %v2005, 0.0
  %v2232 = vmax.f32 %v2010, 0.0
  %v2233 = vmax.f32 %v2015, 0.0
  %v2234 = vmax.f32 %v2020, 0.0
  %v2235 = vmax.f32 %v2025, 0.0
  %v2236 = vmax.f32 %v2030, 0.0
  %v2237 = vmax.f32 %v2035, 0.0
  %v2238 = vmax.f32 %v2040, 0.0
  %v2239 = vmax.f32 %v2045, 0.0
  %v2240 = vmax.f32 %v2050, 0.0
  %v2241 = vmax.f32 %v2055, 0.0
  %v2242 = vmax.f32 %v2060, 0.0
  %v2243 = vmax.f32 %v2065, 0.0
  %v2244 = vmax.f32 %v2070, 0.0
  %v2245 = vmax.f32 %v2075, 0.0
  %v2246 = vmax.f32 %v2080, 0.0
  %v2247 = vmax.f32 %v2085, 0.0
  %v2248 = vmax.f32 %v2090, 0.0
  %v2249 = vmax.f32 %v2095, 0.0
  %v2250 = vmax.f32 %v2100, 0.0
  %v2251 = vmax.f32 %v2105, 0.0
  %v2252 = vmax.f32 %v2110, 0.0
  %v2253 = vmax.f32 %v2115, 0.0
  %v2254 = vmax.f32 %v2120, 0.0
  %v2255 = vmax.f32 %v2125, 0.0
  %v2256 = vmax.f32 %v2130, 0.0
  %v2257 = vmax.f32 %v2135, 0.0
  %v2258 = vmax.f32 %v2140, 0.0
  %v2259 = vmax.f32 %v2145, 0.0
  %v2260 = vmax.f32 %v2150, 0.0
  %v2261 = vadd.f32 %v2153, %v2156
  %v2262 = vadd.f32 %v2154, %v2157
  %v2263 = vadd.f32 %v2155, %v2158
  %v2264 = vadd.f32 %v2261, %v2159
  %v2265 = vadd.f32 %v2262, %v2160
  %v2266 = vadd.f32 %v2263, %v2161
  %v2267 = vadd.f32 %v2264, %v2162
  %v2268 = vadd.f32 %v2265, %v2163
  %v2269 = vadd.f32 %v2266, %v2164
  %v2270 = vadd.f32 %v2267, %v2165
  %v2271 = vadd.f32 %v2268, %v2166
  %v2272 = vadd.f32 %v2269, %v2167
  %v2273 = vadd.f32 %v2270, %v2168
  %v2274 = vadd.f32 %v2271, %v2169
  %v2275 = vadd.f32 %v2272, %v2170
  %v2276 = vadd.f32 %v2273, %v2171
  %v2277 = vadd.f32 %v2274, %v2172
  %v2278 = vadd.f32 %v2275, %v2173
  %v2279 = vadd.f32 %v2276, %v2174
  %v2280 = vadd.f32 %v2277, %v2175
  %v2281 = vadd.f32 %v2278, %v2176
  %v2282 = vadd.f32 %v2279, %v2177
  %v2283 = vadd.f32 %v2280, %v2178
  %v2284 = vadd.f32 %v2281, %v2179
  %v2285 = vadd.f32 %v2282, %v2180
  %v2286 = vadd.f32 %v2283, %v2181
  %v2287 = vadd.f32 %v2284, %v2182
  %v2288 = vadd.f32 %v2285, %v2183
  %v2289 = vadd.f32 %v2286, %v2184
  %v2290 = vadd.f32 %v2287, %v2185
  %v2291 = vadd.f32 %v2288, %v2186
  %v2292 = vadd.f32 %v2289, %v2187
  %v2293 = vadd.f32 %v2290, %v2188
  %v2294 = vadd.f32 %v2291, %v2189
  %v2295 = vadd.f32 %v2292, %v2190
  %v2296 = vadd.f32 %v2293, %v2191
  %v2297 = vadd.f32 %v2294, %v2192
  %v2298 = vadd.f32 %v2295, %v2193
  %v2299 = vadd.f32 %v2296, %v2194
  %v2300 = vadd.f32 %v2297, %v2195
  %v2301 = vadd.f32 %v2298, %v2196
  %v2302 = vadd.f32 %v2299, %v2197
  %v2303 = vadd.f32 %v2300, %v2198
  %v2304 = vadd.f32 %v2301, %v2199
  %v2305 = vadd.f32 %v2302, %v2200
  %v2306 = vadd.f32 %v2303, %v2201
  %v2307 = vadd.f32 %v2304, %v2202
  %v2308 = vadd.f32 %v2305, %v2203
  %v2309 = vadd.f32 %v2306, %v2204
  %v2310 = vadd.f32 %v2307, %v2205
  %v2311 = vadd.f32 %v2308, %v2206
  %v2312 = vadd.f32 %v2309, %v2207
  %v2313 = vadd.f32 %v2310, %v2208
  %v2314 = vadd.f32 %v2311, %v2209
  %v2315 = vadd.f32 %v2312, %v2210
  %v2316 = vadd.f32 %v2313, %v2211
  %v2317 = vadd.f32 %v2314, %v2212
  %v2318 = vadd.f32 %v2315, %v2213
  %v2319 = vadd.f32 %v2316, %v2214
  %v2320 = vadd.f32 %v2317, %v2215
  %v2321 = vadd.f32 %v2318, %v2216
  %v2322 = vadd.f32 %v2319, %v2217
  %v2323 = vadd.f32 %v2320, %v2218
  %v2324 = vadd.f32 %v2321, %v2219
  %v2325 = vadd.f32 %v2322, %v2220
  %v2326 = vadd.f32 %v2323, %v2221
  %v2327 = vadd.f32 %v2324, %v2222
  %v2328 = vadd.f32 %v2325, %v2223
  %v2329 = vadd.f32 %v2326, %v2224
  %v2330 = vadd.f32 %v2327, %v2225
  %v2331 = vadd.f32 %v2328, %v2226
  %v2332 = vadd.f32 %v2329, %v2227
  %v2333 = vadd.f32 %v2330, %v2228
  %v2334 = vadd.f32 %v2331, %v2229
  %v2335 = vadd.f32 %v2332, %v2230
  %v2336 = vadd.f32 %v2333, %v2231
  %v2337 = vadd.f32 %v2334, %v2232
  %v2338 = vadd.f32 %v2335, %v2233
  %v2339 = vadd.f32 %v2336, %v2234
  %v2340 = vadd.f32 %v2337, %v2235
  %v2341 = vadd.f32 %v2338, %v2236
  %v2342 = vadd.f32 %v2339, %v2237
  %v2343 = vadd.f32 %v2340, %v2238
  %v2344 = vadd.f32 %v2341, %v2239
  %v2345 = vadd.f32 %v2342, %v2240
  %v2346 = vadd.f32 %v2343, %v2241
  %v2347 = vadd.f32 %v2344, %v2242
  %v2348 = vadd.f32 %v2345, %v2243
  %v2349 = vadd.f32 %v2346, %v2244
  %v2350 = vadd.f32 %v2347, %v2245
  %v2351 = vadd.f32 %v2348, %v2246
  %v2352 = vadd.f32 %v2349, %v2247
  %v2353 = vadd.f32 %v2350, %v2248
  %v2354 = vadd.f32 %v2351, %v2249
  %v2355 = vadd.f32 %v2352, %v2250
  %v2356 = vadd.f32 %v2353, %v2251
  %v2357 = vadd.f32 %v2354, %v2252
  %v2358 = vadd.f32 %v2355, %v2253
  %v2359 = vadd.f32 %v2356, %v2254
  %v2360 = vadd.f32 %v2357, %v2255
  %v2361 = vadd.f32 %v2358, %v2256
  %v2362 = vadd.f32 %v2359, %v2257
  %v2363 = vadd.f32 %v2360, %v2258
  %v2364 = vadd.f32 %v2361, %v2259
  %v2365 = vadd.f32 %v2362, %v2260
  %v2366 = vld [vmem:[%s5] sm:$0xff]
  %v2367 = vld [vmem:[%s5 + $0x8] sm:$0xff]
  %v2368 = vld [vmem:[%s5 + $0x10] sm:$0xff]
  %v2369 = vld [vmem:[%s5 + $0x18] sm:$0xff]
  %v2370 = vld [vmem:[%s5 + $0x20] sm:$0xff]
  %v2371 = vld [vmem:[%s5 + $0x28] sm:$0xff]
  %v2372 = vld [vmem:[%s5 + $0x30] sm:$0xff]
  %v2373 = vld [vmem:[%s5 + $0x38] sm:$0xff]
  %v2374 = vld [vmem:[%s5 + $0x40] sm:$0xff]
  %v2375 = vld [vmem:[%s5 + $0x48] sm:$0xff]
  %v2376 = vld [vmem:[%s5 + $0x50] sm:$0xff]
  %v2377 = vld [vmem:[%s5 + $0x58] sm:$0xff]
  %v2378 = vld [vmem:[%s5 + $0x60] sm:$0xff]
  %v2379 = vld [vmem:[%s5 + $0x68] sm:$0xff]
  %v2380 = vld [vmem:[%s5 + $0x70] sm:$0xff]
  %v2381 = vld [vmem:[%s5 + $0x78] sm:$0xff]
  %v2382 = vld [vmem:[%s6] sm:$0x1]
  %v2383 = vmul.f32 %v2382, 36.0
  %v2385 = vlaneseq
  %v2386 = vshrl.u32 %v2385, 7
  %v2387 = vsub.s32 0, %v2386
  %v2388 = vrot.slane %v2383, %v2387
  %2390 = vmatprep.subr.mxu0 0.0
  %2391 = vmatpush1.msra.mxu0 %v2366
  %2392 = vmatprep.subr.mxu0 0.0
  %2393 = vmatpush1.msra.mxu0 %v2367
  %2394 = vmatprep.subr.mxu0 0.0
  %2395 = vmatpush1.msra.mxu0 %v2368
  %2396 = vmatprep.subr.mxu0 0.0
  %2397 = vmatpush1.msra.mxu0 %v2369
  %2398 = vmatprep.subr.mxu0 0.0
  %2399 = vmatpush1.msra.mxu0 %v2370
  %2400 = vmatprep.subr.mxu0 0.0
  %2401 = vmatpush1.msra.mxu0 %v2371
  %2402 = vmatprep.subr.mxu0 0.0
  %2403 = vmatpush1.msra.mxu0 %v2372
  %2404 = vmatprep.subr.mxu0 0.0
  %2405 = vmatpush1.msra.mxu0 %v2373
  %2406 = vmatprep.subr.mxu0 0.0
  %2407 = vmatpush1.msra.mxu0 %v2374
  %2408 = vmatprep.subr.mxu0 0.0
  %2409 = vmatpush1.msra.mxu0 %v2375
  %2410 = vmatprep.subr.mxu0 0.0
  %2411 = vmatpush1.msra.mxu0 %v2376
  %2412 = vmatprep.subr.mxu0 0.0
  %2413 = vmatpush1.msra.mxu0 %v2377
  %2414 = vmatprep.subr.mxu0 0.0
  %2415 = vmatpush1.msra.mxu0 %v2378
  %2416 = vmatprep.subr.mxu0 0.0
  %2417 = vmatpush1.msra.mxu0 %v2379
  %2418 = vmatprep.subr.mxu0 0.0
  %2419 = vmatpush1.msra.mxu0 %v2380
  %2420 = vmatprep.subr.mxu0 0.0
  %2421 = vmatpush1.msra.mxu0 %v2381
  %2422 = vmatprep.subr.mxu0 0.0
  %2423 = vmatpush1.msra.mxu0 0.0
  %2424 = vmatprep.subr.mxu0 0.0
  %2425 = vmatpush1.msra.mxu0 0.0
  %2426 = vmatprep.subr.mxu0 0.0
  %2427 = vmatpush1.msra.mxu0 0.0
  %2428 = vmatprep.subr.mxu0 0.0
  %2429 = vmatpush1.msra.mxu0 0.0
  %2430 = vmatprep.subr.mxu0 0.0
  %2431 = vmatpush1.msra.mxu0 0.0
  %2432 = vmatprep.subr.mxu0 0.0
  %2433 = vmatpush1.msra.mxu0 0.0
  %2434 = vmatprep.subr.mxu0 0.0
  %2435 = vmatpush1.msra.mxu0 0.0
  %2436 = vmatprep.subr.mxu0 0.0
  %2437 = vmatpush1.msra.mxu0 0.0
  %2438 = vmatprep.subr.mxu0 0.0
  %2439 = vmatpush1.msra.mxu0 0.0
  %2440 = vmatprep.subr.mxu0 0.0
  %2441 = vmatpush1.msra.mxu0 0.0
  %2442 = vmatprep.subr.mxu0 0.0
  %2443 = vmatpush1.msra.mxu0 0.0
  %2444 = vmatprep.subr.mxu0 0.0
  %2445 = vmatpush1.msra.mxu0 0.0
  %2446 = vmatprep.subr.mxu0 0.0
  %2447 = vmatpush1.msra.mxu0 0.0
  %2448 = vmatprep.subr.mxu0 0.0
  %2449 = vmatpush1.msra.mxu0 0.0
  %2450 = vmatprep.subr.mxu0 0.0
  %2451 = vmatpush1.msra.mxu0 0.0
  %2452 = vmatprep.subr.mxu0 0.0
  %2453 = vmatpush1.msra.mxu0 0.0
  %2454 = vmatprep.mubr.f32.mxu0 0.0
  %2455 = vmatmul.mubr.f32.gmra.mrb[0].mxu0 %v2363
  %v2456 = vpop.f32.mrb[0].mxu0
  %v2457 = vadd.f32 %v2388, %v2456
  %v2458 = vpop.f32.mrb[0].mxu0
  %2459 = vmatprep.mubr.f32.mxu0 0.0
  %2460 = vmatmul.mubr.f32.gmra.mrb[0].mxu0 %v2364
  %v2461 = vpop.f32.mrb[0].mxu0
  %v2462 = vadd.f32 %v2388, %v2461
  %v2463 = vpop.f32.mrb[0].mxu0
  %2464 = vmatprep.mubr.f32.mxu0 0.0
  %2465 = vmatmul.mubr.f32.gmra.mrb[0].mxu0 %v2365
  %v2466 = vpop.f32.mrb[0].mxu0
  %v2467 = vadd.f32 %v2388, %v2466
  %v2468 = vpop.f32.mrb[0].mxu0
  %2469 = vdwg.mxu0
  %v2470 = vmul.f32 %v2457, %v2457
  %v2471 = vmul.f32 %v2462, %v2462
  %v2472 = vmul.f32 %v2467, %v2467
  %v2473 = vsel %vm178, %v2470, 0.0
  %2474 = vadd.xlane.f32.xlu0 %v2473
  %v2475 = vpop.xlane.xlu0 %2474
  %v2476 = vsel %vm178, %v2471, 0.0
  %2477 = vadd.xlane.f32.xlu0 %v2476
  %v2478 = vpop.xlane.xlu0 %2477
  %v2479 = vsel %vm178, %v2472, 0.0
  %2480 = vadd.xlane.f32.xlu0 %v2479
  %v2481 = vpop.xlane.xlu0 %2480
  %v2482 = vadd.f32 %v2475, 1.0
  %v2483 = vadd.f32 %v2478, 1.0
  %v2484 = vadd.f32 %v2481, 1.0
  %v2485 = vrcp.pop %v2482
  %v2486 = vrcp.pop %v2483
  %v2487 = vrcp.pop %v2484
  %v2488 = vmul.f32 %v2475, %v2485
  %v2489 = vmul.f32 %v2478, %v2486
  %v2490 = vmul.f32 %v2481, %v2487
  %v2491 = vadd.f32 %v2475, 1e-16
  %v2492 = vadd.f32 %v2478, 1e-16
  %v2493 = vadd.f32 %v2481, 1e-16
  %v2494 = vrsqrt.pop %v2491
  %v2495 = vrsqrt.pop %v2492
  %v2496 = vrsqrt.pop %v2493
  %v2497 = vmul.f32 %v2488, %v2494
  %v2498 = vmul.f32 %v2489, %v2495
  %v2499 = vmul.f32 %v2490, %v2496
  %v2500 = vmul.f32 %v2457, %v2497
  %v2501 = vmul.f32 %v2462, %v2498
  %v2502 = vmul.f32 %v2467, %v2499
  %v2503 = vld [vmem:[%s7] sm:$0xff]
  %v2504 = vld [vmem:[%s8] sm:$0x1]
  %v2506 = vlaneseq
  %v2507 = vshrl.u32 %v2506, 7
  %v2508 = vsub.s32 0, %v2507
  %v2509 = vrot.slane %v2504, %v2508
  %v2512 = vsel %vm178, %v2500, 0
  %v2515 = vsel %vm178, %v2501, 0
  %v2518 = vsel %vm178, %v2502, 0
  %2520 = vmatprep.subr.mxu0 0.0
  %2521 = vmatpush1.msra.mxu0 %v2503
  %2522 = vmatprep.subr.mxu0 0.0
  %2523 = vmatpush1.msra.mxu0 0.0
  %2524 = vmatprep.subr.mxu0 0.0
  %2525 = vmatpush1.msra.mxu0 0.0
  %2526 = vmatprep.subr.mxu0 0.0
  %2527 = vmatpush1.msra.mxu0 0.0
  %2528 = vmatprep.subr.mxu0 0.0
  %2529 = vmatpush1.msra.mxu0 0.0
  %2530 = vmatprep.subr.mxu0 0.0
  %2531 = vmatpush1.msra.mxu0 0.0
  %2532 = vmatprep.subr.mxu0 0.0
  %2533 = vmatpush1.msra.mxu0 0.0
  %2534 = vmatprep.subr.mxu0 0.0
  %2535 = vmatpush1.msra.mxu0 0.0
  %2536 = vmatprep.subr.mxu0 0.0
  %2537 = vmatpush1.msra.mxu0 0.0
  %2538 = vmatprep.subr.mxu0 0.0
  %2539 = vmatpush1.msra.mxu0 0.0
  %2540 = vmatprep.subr.mxu0 0.0
  %2541 = vmatpush1.msra.mxu0 0.0
  %2542 = vmatprep.subr.mxu0 0.0
  %2543 = vmatpush1.msra.mxu0 0.0
  %2544 = vmatprep.subr.mxu0 0.0
  %2545 = vmatpush1.msra.mxu0 0.0
  %2546 = vmatprep.subr.mxu0 0.0
  %2547 = vmatpush1.msra.mxu0 0.0
  %2548 = vmatprep.subr.mxu0 0.0
  %2549 = vmatpush1.msra.mxu0 0.0
  %2550 = vmatprep.subr.mxu0 0.0
  %2551 = vmatpush1.msra.mxu0 0.0
  %2552 = vmatprep.subr.mxu0 0.0
  %2553 = vmatpush1.msra.mxu0 0.0
  %2554 = vmatprep.subr.mxu0 0.0
  %2555 = vmatpush1.msra.mxu0 0.0
  %2556 = vmatprep.subr.mxu0 0.0
  %2557 = vmatpush1.msra.mxu0 0.0
  %2558 = vmatprep.subr.mxu0 0.0
  %2559 = vmatpush1.msra.mxu0 0.0
  %2560 = vmatprep.subr.mxu0 0.0
  %2561 = vmatpush1.msra.mxu0 0.0
  %2562 = vmatprep.subr.mxu0 0.0
  %2563 = vmatpush1.msra.mxu0 0.0
  %2564 = vmatprep.subr.mxu0 0.0
  %2565 = vmatpush1.msra.mxu0 0.0
  %2566 = vmatprep.subr.mxu0 0.0
  %2567 = vmatpush1.msra.mxu0 0.0
  %2568 = vmatprep.subr.mxu0 0.0
  %2569 = vmatpush1.msra.mxu0 0.0
  %2570 = vmatprep.subr.mxu0 0.0
  %2571 = vmatpush1.msra.mxu0 0.0
  %2572 = vmatprep.subr.mxu0 0.0
  %2573 = vmatpush1.msra.mxu0 0.0
  %2574 = vmatprep.subr.mxu0 0.0
  %2575 = vmatpush1.msra.mxu0 0.0
  %2576 = vmatprep.subr.mxu0 0.0
  %2577 = vmatpush1.msra.mxu0 0.0
  %2578 = vmatprep.subr.mxu0 0.0
  %2579 = vmatpush1.msra.mxu0 0.0
  %2580 = vmatprep.subr.mxu0 0.0
  %2581 = vmatpush1.msra.mxu0 0.0
  %2582 = vmatprep.subr.mxu0 0.0
  %2583 = vmatpush1.msra.mxu0 0.0
  %2584 = vmatprep.mubr.f32.mxu0 0.0
  %2585 = vmatmul.mubr.f32.gmra.mrb[0].mxu0 %v2512
  %v2586 = vpop.f32.mrb[0].mxu0
  %v2587 = vadd.f32 %v2509, %v2586
  %v2588 = vpop.f32.mrb[0].mxu0
  %2589 = vmatprep.mubr.f32.mxu0 0.0
  %2590 = vmatmul.mubr.f32.gmra.mrb[0].mxu0 %v2515
  %v2591 = vpop.f32.mrb[0].mxu0
  %v2592 = vadd.f32 %v2509, %v2591
  %v2593 = vpop.f32.mrb[0].mxu0
  %2594 = vmatprep.mubr.f32.mxu0 0.0
  %2595 = vmatmul.mubr.f32.gmra.mrb[0].mxu0 %v2518
  %v2596 = vpop.f32.mrb[0].mxu0
  %v2597 = vadd.f32 %v2509, %v2596
  %v2598 = vpop.f32.mrb[0].mxu0
  %2599 = vdwg.mxu0
  %v2600 = vmax.f32 %v2587, 0.0
  %v2601 = vmax.f32 %v2592, 0.0
  %v2602 = vmax.f32 %v2597, 0.0
  %v2603 = vld [vmem:[%s9] sm:$0xff]
  %v2604 = vld [vmem:[%s10] sm:$0x1]
  %v2606 = vlaneseq
  %v2607 = vshrl.u32 %v2606, 7
  %v2608 = vsub.s32 0, %v2607
  %v2609 = vrot.slane %v2604, %v2608
  %v2612 = vsel %vm178, %v2600, 0
  %v2615 = vsel %vm178, %v2601, 0
  %v2618 = vsel %vm178, %v2602, 0
  %2620 = vmatprep.subr.mxu0 0.0
  %2621 = vmatpush1.msra.mxu0 %v2603
  %2622 = vmatprep.subr.mxu0 0.0
  %2623 = vmatpush1.msra.mxu0 0.0
  %2624 = vmatprep.subr.mxu0 0.0
  %2625 = vmatpush1.msra.mxu0 0.0
  %2626 = vmatprep.subr.mxu0 0.0
  %2627 = vmatpush1.msra.mxu0 0.0
  %2628 = vmatprep.subr.mxu0 0.0
  %2629 = vmatpush1.msra.mxu0 0.0
  %2630 = vmatprep.subr.mxu0 0.0
  %2631 = vmatpush1.msra.mxu0 0.0
  %2632 = vmatprep.subr.mxu0 0.0
  %2633 = vmatpush1.msra.mxu0 0.0
  %2634 = vmatprep.subr.mxu0 0.0
  %2635 = vmatpush1.msra.mxu0 0.0
  %2636 = vmatprep.subr.mxu0 0.0
  %2637 = vmatpush1.msra.mxu0 0.0
  %2638 = vmatprep.subr.mxu0 0.0
  %2639 = vmatpush1.msra.mxu0 0.0
  %2640 = vmatprep.subr.mxu0 0.0
  %2641 = vmatpush1.msra.mxu0 0.0
  %2642 = vmatprep.subr.mxu0 0.0
  %2643 = vmatpush1.msra.mxu0 0.0
  %2644 = vmatprep.subr.mxu0 0.0
  %2645 = vmatpush1.msra.mxu0 0.0
  %2646 = vmatprep.subr.mxu0 0.0
  %2647 = vmatpush1.msra.mxu0 0.0
  %2648 = vmatprep.subr.mxu0 0.0
  %2649 = vmatpush1.msra.mxu0 0.0
  %2650 = vmatprep.subr.mxu0 0.0
  %2651 = vmatpush1.msra.mxu0 0.0
  %2652 = vmatprep.subr.mxu0 0.0
  %2653 = vmatpush1.msra.mxu0 0.0
  %2654 = vmatprep.subr.mxu0 0.0
  %2655 = vmatpush1.msra.mxu0 0.0
  %2656 = vmatprep.subr.mxu0 0.0
  %2657 = vmatpush1.msra.mxu0 0.0
  %2658 = vmatprep.subr.mxu0 0.0
  %2659 = vmatpush1.msra.mxu0 0.0
  %2660 = vmatprep.subr.mxu0 0.0
  %2661 = vmatpush1.msra.mxu0 0.0
  %2662 = vmatprep.subr.mxu0 0.0
  %2663 = vmatpush1.msra.mxu0 0.0
  %2664 = vmatprep.subr.mxu0 0.0
  %2665 = vmatpush1.msra.mxu0 0.0
  %2666 = vmatprep.subr.mxu0 0.0
  %2667 = vmatpush1.msra.mxu0 0.0
  %2668 = vmatprep.subr.mxu0 0.0
  %2669 = vmatpush1.msra.mxu0 0.0
  %2670 = vmatprep.subr.mxu0 0.0
  %2671 = vmatpush1.msra.mxu0 0.0
  %2672 = vmatprep.subr.mxu0 0.0
  %2673 = vmatpush1.msra.mxu0 0.0
  %2674 = vmatprep.subr.mxu0 0.0
  %2675 = vmatpush1.msra.mxu0 0.0
  %2676 = vmatprep.subr.mxu0 0.0
  %2677 = vmatpush1.msra.mxu0 0.0
  %2678 = vmatprep.subr.mxu0 0.0
  %2679 = vmatpush1.msra.mxu0 0.0
  %2680 = vmatprep.subr.mxu0 0.0
  %2681 = vmatpush1.msra.mxu0 0.0
  %2682 = vmatprep.subr.mxu0 0.0
  %2683 = vmatpush1.msra.mxu0 0.0
  %2684 = vmatprep.mubr.f32.mxu0 0.0
  %2685 = vmatmul.mubr.f32.gmra.mrb[0].mxu0 %v2612
  %v2686 = vpop.f32.mrb[0].mxu0
  %v2687 = vadd.f32 %v2609, %v2686
  %v2688 = vpop.f32.mrb[0].mxu0
  %2689 = vmatprep.mubr.f32.mxu0 0.0
  %2690 = vmatmul.mubr.f32.gmra.mrb[0].mxu0 %v2615
  %v2691 = vpop.f32.mrb[0].mxu0
  %v2692 = vadd.f32 %v2609, %v2691
  %v2693 = vpop.f32.mrb[0].mxu0
  %2694 = vmatprep.mubr.f32.mxu0 0.0
  %2695 = vmatmul.mubr.f32.gmra.mrb[0].mxu0 %v2618
  %v2696 = vpop.f32.mrb[0].mxu0
  %v2697 = vadd.f32 %v2609, %v2696
  %v2698 = vpop.f32.mrb[0].mxu0
  %2699 = vdwg.mxu0
  %v2700 = vmax.f32 %v2687, 0.0
  %v2701 = vmax.f32 %v2692, 0.0
  %v2702 = vmax.f32 %v2697, 0.0
  %v2703 = vld [vmem:[%s11] sm:$0xff]
  %v2704 = vld [vmem:[%s11 + $0x8] sm:$0xff]
  %v2705 = vld [vmem:[%s11 + $0x10] sm:$0xff]
  %v2706 = vld [vmem:[%s11 + $0x18] sm:$0xff]
  %v2707 = vld [vmem:[%s11 + $0x20] sm:$0xff]
  %v2708 = vld [vmem:[%s11 + $0x28] sm:$0xff]
  %v2709 = vld [vmem:[%s11 + $0x30] sm:$0xff]
  %v2710 = vld [vmem:[%s11 + $0x38] sm:$0xff]
  %v2711 = vld [vmem:[%s11 + $0x40] sm:$0xff]
  %v2712 = vld [vmem:[%s11 + $0x48] sm:$0xff]
  %v2713 = vld [vmem:[%s11 + $0x50] sm:$0xff]
  %v2714 = vld [vmem:[%s11 + $0x58] sm:$0xff]
  %v2715 = vld [vmem:[%s11 + $0x60] sm:$0xff]
  %v2716 = vld [vmem:[%s11 + $0x68] sm:$0xff]
  %v2717 = vld [vmem:[%s11 + $0x70] sm:$0xff]
  %v2718 = vld [vmem:[%s11 + $0x78] sm:$0xff]
  %v2719 = vld [vmem:[%s12] sm:$0x1]
  %v2721 = vlaneseq
  %v2722 = vshrl.u32 %v2721, 7
  %v2723 = vsub.s32 0, %v2722
  %v2724 = vrot.slane %v2719, %v2723
  %2726 = vmatprep.subr.mxu0 0.0
  %2727 = vmatpush1.msra.mxu0 %v2703
  %2728 = vmatprep.subr.mxu0 0.0
  %2729 = vmatpush1.msra.mxu0 %v2704
  %2730 = vmatprep.subr.mxu0 0.0
  %2731 = vmatpush1.msra.mxu0 %v2705
  %2732 = vmatprep.subr.mxu0 0.0
  %2733 = vmatpush1.msra.mxu0 %v2706
  %2734 = vmatprep.subr.mxu0 0.0
  %2735 = vmatpush1.msra.mxu0 %v2707
  %2736 = vmatprep.subr.mxu0 0.0
  %2737 = vmatpush1.msra.mxu0 %v2708
  %2738 = vmatprep.subr.mxu0 0.0
  %2739 = vmatpush1.msra.mxu0 %v2709
  %2740 = vmatprep.subr.mxu0 0.0
  %2741 = vmatpush1.msra.mxu0 %v2710
  %2742 = vmatprep.subr.mxu0 0.0
  %2743 = vmatpush1.msra.mxu0 %v2711
  %2744 = vmatprep.subr.mxu0 0.0
  %2745 = vmatpush1.msra.mxu0 %v2712
  %2746 = vmatprep.subr.mxu0 0.0
  %2747 = vmatpush1.msra.mxu0 %v2713
  %2748 = vmatprep.subr.mxu0 0.0
  %2749 = vmatpush1.msra.mxu0 %v2714
  %2750 = vmatprep.subr.mxu0 0.0
  %2751 = vmatpush1.msra.mxu0 %v2715
  %2752 = vmatprep.subr.mxu0 0.0
  %2753 = vmatpush1.msra.mxu0 %v2716
  %2754 = vmatprep.subr.mxu0 0.0
  %2755 = vmatpush1.msra.mxu0 %v2717
  %2756 = vmatprep.subr.mxu0 0.0
  %2757 = vmatpush1.msra.mxu0 %v2718
  %2758 = vmatprep.subr.mxu0 0.0
  %2759 = vmatpush1.msra.mxu0 0.0
  %2760 = vmatprep.subr.mxu0 0.0
  %2761 = vmatpush1.msra.mxu0 0.0
  %2762 = vmatprep.subr.mxu0 0.0
  %2763 = vmatpush1.msra.mxu0 0.0
  %2764 = vmatprep.subr.mxu0 0.0
  %2765 = vmatpush1.msra.mxu0 0.0
  %2766 = vmatprep.subr.mxu0 0.0
  %2767 = vmatpush1.msra.mxu0 0.0
  %2768 = vmatprep.subr.mxu0 0.0
  %2769 = vmatpush1.msra.mxu0 0.0
  %2770 = vmatprep.subr.mxu0 0.0
  %2771 = vmatpush1.msra.mxu0 0.0
  %2772 = vmatprep.subr.mxu0 0.0
  %2773 = vmatpush1.msra.mxu0 0.0
  %2774 = vmatprep.subr.mxu0 0.0
  %2775 = vmatpush1.msra.mxu0 0.0
  %2776 = vmatprep.subr.mxu0 0.0
  %2777 = vmatpush1.msra.mxu0 0.0
  %2778 = vmatprep.subr.mxu0 0.0
  %2779 = vmatpush1.msra.mxu0 0.0
  %2780 = vmatprep.subr.mxu0 0.0
  %2781 = vmatpush1.msra.mxu0 0.0
  %2782 = vmatprep.subr.mxu0 0.0
  %2783 = vmatpush1.msra.mxu0 0.0
  %2784 = vmatprep.subr.mxu0 0.0
  %2785 = vmatpush1.msra.mxu0 0.0
  %2786 = vmatprep.subr.mxu0 0.0
  %2787 = vmatpush1.msra.mxu0 0.0
  %2788 = vmatprep.subr.mxu0 0.0
  %2789 = vmatpush1.msra.mxu0 0.0
  %2790 = vmatprep.mubr.f32.mxu0 0.0
  %2791 = vmatmul.mubr.f32.gmra.mrb[0].mxu0 %v2700
  %v2792 = vpop.f32.mrb[0].mxu0
  %v2793 = vadd.f32 %v2724, %v2792
  %v2794 = vpop.f32.mrb[0].mxu0
  %2795 = vmatprep.mubr.f32.mxu0 0.0
  %2796 = vmatmul.mubr.f32.gmra.mrb[0].mxu0 %v2701
  %v2797 = vpop.f32.mrb[0].mxu0
  %v2798 = vadd.f32 %v2724, %v2797
  %v2799 = vpop.f32.mrb[0].mxu0
  %2800 = vmatprep.mubr.f32.mxu0 0.0
  %2801 = vmatmul.mubr.f32.gmra.mrb[0].mxu0 %v2702
  %v2802 = vpop.f32.mrb[0].mxu0
  %v2803 = vadd.f32 %v2724, %v2802
  %v2804 = vpop.f32.mrb[0].mxu0
  %2805 = vdwg.mxu0
  %v2806 = vmul.f32 %v2793, %v2793
  %v2807 = vmul.f32 %v2798, %v2798
  %v2808 = vmul.f32 %v2803, %v2803
  %v2809 = vsel %vm178, %v2806, 0.0
  %2810 = vadd.xlane.f32.xlu0 %v2809
  %v2811 = vpop.xlane.xlu0 %2810
  %v2812 = vsel %vm178, %v2807, 0.0
  %2813 = vadd.xlane.f32.xlu0 %v2812
  %v2814 = vpop.xlane.xlu0 %2813
  %v2815 = vsel %vm178, %v2808, 0.0
  %2816 = vadd.xlane.f32.xlu0 %v2815
  %v2817 = vpop.xlane.xlu0 %2816
  %v2818 = vadd.f32 %v2811, 1.0
  %v2819 = vadd.f32 %v2814, 1.0
  %v2820 = vadd.f32 %v2817, 1.0
  %v2821 = vrcp.pop %v2818
  %v2822 = vrcp.pop %v2819
  %v2823 = vrcp.pop %v2820
  %v2824 = vmul.f32 %v2811, %v2821
  %v2825 = vmul.f32 %v2814, %v2822
  %v2826 = vmul.f32 %v2817, %v2823
  %v2827 = vadd.f32 %v2811, 1e-16
  %v2828 = vadd.f32 %v2814, 1e-16
  %v2829 = vadd.f32 %v2817, 1e-16
  %v2830 = vrsqrt.pop %v2827
  %v2831 = vrsqrt.pop %v2828
  %v2832 = vrsqrt.pop %v2829
  %v2833 = vmul.f32 %v2824, %v2830
  %v2834 = vmul.f32 %v2825, %v2831
  %v2835 = vmul.f32 %v2826, %v2832
  %v2836 = vmul.f32 %v2793, %v2833
  %v2837 = vmul.f32 %v2798, %v2834
  %v2838 = vmul.f32 %v2803, %v2835
  %v2839 = vld [vmem:[%s13] sm:$0xff]
  %v2840 = vld [vmem:[%s14] sm:$0x1]
  %v2842 = vlaneseq
  %v2843 = vshrl.u32 %v2842, 7
  %v2844 = vsub.s32 0, %v2843
  %v2845 = vrot.slane %v2840, %v2844
  %v2848 = vsel %vm178, %v2836, 0
  %v2851 = vsel %vm178, %v2837, 0
  %v2854 = vsel %vm178, %v2838, 0
  %2856 = vmatprep.subr.mxu0 0.0
  %2857 = vmatpush1.msra.mxu0 %v2839
  %2858 = vmatprep.subr.mxu0 0.0
  %2859 = vmatpush1.msra.mxu0 0.0
  %2860 = vmatprep.subr.mxu0 0.0
  %2861 = vmatpush1.msra.mxu0 0.0
  %2862 = vmatprep.subr.mxu0 0.0
  %2863 = vmatpush1.msra.mxu0 0.0
  %2864 = vmatprep.subr.mxu0 0.0
  %2865 = vmatpush1.msra.mxu0 0.0
  %2866 = vmatprep.subr.mxu0 0.0
  %2867 = vmatpush1.msra.mxu0 0.0
  %2868 = vmatprep.subr.mxu0 0.0
  %2869 = vmatpush1.msra.mxu0 0.0
  %2870 = vmatprep.subr.mxu0 0.0
  %2871 = vmatpush1.msra.mxu0 0.0
  %2872 = vmatprep.subr.mxu0 0.0
  %2873 = vmatpush1.msra.mxu0 0.0
  %2874 = vmatprep.subr.mxu0 0.0
  %2875 = vmatpush1.msra.mxu0 0.0
  %2876 = vmatprep.subr.mxu0 0.0
  %2877 = vmatpush1.msra.mxu0 0.0
  %2878 = vmatprep.subr.mxu0 0.0
  %2879 = vmatpush1.msra.mxu0 0.0
  %2880 = vmatprep.subr.mxu0 0.0
  %2881 = vmatpush1.msra.mxu0 0.0
  %2882 = vmatprep.subr.mxu0 0.0
  %2883 = vmatpush1.msra.mxu0 0.0
  %2884 = vmatprep.subr.mxu0 0.0
  %2885 = vmatpush1.msra.mxu0 0.0
  %2886 = vmatprep.subr.mxu0 0.0
  %2887 = vmatpush1.msra.mxu0 0.0
  %2888 = vmatprep.subr.mxu0 0.0
  %2889 = vmatpush1.msra.mxu0 0.0
  %2890 = vmatprep.subr.mxu0 0.0
  %2891 = vmatpush1.msra.mxu0 0.0
  %2892 = vmatprep.subr.mxu0 0.0
  %2893 = vmatpush1.msra.mxu0 0.0
  %2894 = vmatprep.subr.mxu0 0.0
  %2895 = vmatpush1.msra.mxu0 0.0
  %2896 = vmatprep.subr.mxu0 0.0
  %2897 = vmatpush1.msra.mxu0 0.0
  %2898 = vmatprep.subr.mxu0 0.0
  %2899 = vmatpush1.msra.mxu0 0.0
  %2900 = vmatprep.subr.mxu0 0.0
  %2901 = vmatpush1.msra.mxu0 0.0
  %2902 = vmatprep.subr.mxu0 0.0
  %2903 = vmatpush1.msra.mxu0 0.0
  %2904 = vmatprep.subr.mxu0 0.0
  %2905 = vmatpush1.msra.mxu0 0.0
  %2906 = vmatprep.subr.mxu0 0.0
  %2907 = vmatpush1.msra.mxu0 0.0
  %2908 = vmatprep.subr.mxu0 0.0
  %2909 = vmatpush1.msra.mxu0 0.0
  %2910 = vmatprep.subr.mxu0 0.0
  %2911 = vmatpush1.msra.mxu0 0.0
  %2912 = vmatprep.subr.mxu0 0.0
  %2913 = vmatpush1.msra.mxu0 0.0
  %2914 = vmatprep.subr.mxu0 0.0
  %2915 = vmatpush1.msra.mxu0 0.0
  %2916 = vmatprep.subr.mxu0 0.0
  %2917 = vmatpush1.msra.mxu0 0.0
  %2918 = vmatprep.subr.mxu0 0.0
  %2919 = vmatpush1.msra.mxu0 0.0
  %2920 = vmatprep.mubr.f32.mxu0 0.0
  %2921 = vmatmul.mubr.f32.gmra.mrb[0].mxu0 %v2848
  %v2922 = vpop.f32.mrb[0].mxu0
  %v2923 = vadd.f32 %v2845, %v2922
  %v2924 = vpop.f32.mrb[0].mxu0
  %2925 = vmatprep.mubr.f32.mxu0 0.0
  %2926 = vmatmul.mubr.f32.gmra.mrb[0].mxu0 %v2851
  %v2927 = vpop.f32.mrb[0].mxu0
  %v2928 = vadd.f32 %v2845, %v2927
  %v2929 = vpop.f32.mrb[0].mxu0
  %2930 = vmatprep.mubr.f32.mxu0 0.0
  %2931 = vmatmul.mubr.f32.gmra.mrb[0].mxu0 %v2854
  %v2932 = vpop.f32.mrb[0].mxu0
  %v2933 = vadd.f32 %v2845, %v2932
  %v2934 = vpop.f32.mrb[0].mxu0
  %2935 = vdwg.mxu0
  %v2936 = vmax.f32 %v2923, 0.0
  %v2937 = vmax.f32 %v2928, 0.0
  %v2938 = vmax.f32 %v2933, 0.0
  %v2939 = vld [vmem:[%s15] sm:$0xff]
  %v2940 = vld [vmem:[%s16] sm:$0x1]
  %v2942 = vlaneseq
  %v2943 = vshrl.u32 %v2942, 7
  %v2944 = vsub.s32 0, %v2943
  %v2945 = vrot.slane %v2940, %v2944
  %v2948 = vsel %vm178, %v2936, 0
  %v2951 = vsel %vm178, %v2937, 0
  %v2954 = vsel %vm178, %v2938, 0
  %2956 = vmatprep.subr.mxu0 0.0
  %2957 = vmatpush1.msra.mxu0 %v2939
  %2958 = vmatprep.subr.mxu0 0.0
  %2959 = vmatpush1.msra.mxu0 0.0
  %2960 = vmatprep.subr.mxu0 0.0
  %2961 = vmatpush1.msra.mxu0 0.0
  %2962 = vmatprep.subr.mxu0 0.0
  %2963 = vmatpush1.msra.mxu0 0.0
  %2964 = vmatprep.subr.mxu0 0.0
  %2965 = vmatpush1.msra.mxu0 0.0
  %2966 = vmatprep.subr.mxu0 0.0
  %2967 = vmatpush1.msra.mxu0 0.0
  %2968 = vmatprep.subr.mxu0 0.0
  %2969 = vmatpush1.msra.mxu0 0.0
  %2970 = vmatprep.subr.mxu0 0.0
  %2971 = vmatpush1.msra.mxu0 0.0
  %2972 = vmatprep.subr.mxu0 0.0
  %2973 = vmatpush1.msra.mxu0 0.0
  %2974 = vmatprep.subr.mxu0 0.0
  %2975 = vmatpush1.msra.mxu0 0.0
  %2976 = vmatprep.subr.mxu0 0.0
  %2977 = vmatpush1.msra.mxu0 0.0
  %2978 = vmatprep.subr.mxu0 0.0
  %2979 = vmatpush1.msra.mxu0 0.0
  %2980 = vmatprep.subr.mxu0 0.0
  %2981 = vmatpush1.msra.mxu0 0.0
  %2982 = vmatprep.subr.mxu0 0.0
  %2983 = vmatpush1.msra.mxu0 0.0
  %2984 = vmatprep.subr.mxu0 0.0
  %2985 = vmatpush1.msra.mxu0 0.0
  %2986 = vmatprep.subr.mxu0 0.0
  %2987 = vmatpush1.msra.mxu0 0.0
  %2988 = vmatprep.subr.mxu0 0.0
  %2989 = vmatpush1.msra.mxu0 0.0
  %2990 = vmatprep.subr.mxu0 0.0
  %2991 = vmatpush1.msra.mxu0 0.0
  %2992 = vmatprep.subr.mxu0 0.0
  %2993 = vmatpush1.msra.mxu0 0.0
  %2994 = vmatprep.subr.mxu0 0.0
  %2995 = vmatpush1.msra.mxu0 0.0
  %2996 = vmatprep.subr.mxu0 0.0
  %2997 = vmatpush1.msra.mxu0 0.0
  %2998 = vmatprep.subr.mxu0 0.0
  %2999 = vmatpush1.msra.mxu0 0.0
  %3000 = vmatprep.subr.mxu0 0.0
  %3001 = vmatpush1.msra.mxu0 0.0
  %3002 = vmatprep.subr.mxu0 0.0
  %3003 = vmatpush1.msra.mxu0 0.0
  %3004 = vmatprep.subr.mxu0 0.0
  %3005 = vmatpush1.msra.mxu0 0.0
  %3006 = vmatprep.subr.mxu0 0.0
  %3007 = vmatpush1.msra.mxu0 0.0
  %3008 = vmatprep.subr.mxu0 0.0
  %3009 = vmatpush1.msra.mxu0 0.0
  %3010 = vmatprep.subr.mxu0 0.0
  %3011 = vmatpush1.msra.mxu0 0.0
  %3012 = vmatprep.subr.mxu0 0.0
  %3013 = vmatpush1.msra.mxu0 0.0
  %3014 = vmatprep.subr.mxu0 0.0
  %3015 = vmatpush1.msra.mxu0 0.0
  %3016 = vmatprep.subr.mxu0 0.0
  %3017 = vmatpush1.msra.mxu0 0.0
  %3018 = vmatprep.subr.mxu0 0.0
  %3019 = vmatpush1.msra.mxu0 0.0
  %3020 = vmatprep.mubr.f32.mxu0 0.0
  %3021 = vmatmul.mubr.f32.gmra.mrb[0].mxu0 %v2948
  %v3022 = vpop.f32.mrb[0].mxu0
  %v3023 = vadd.f32 %v2945, %v3022
  %v3024 = vpop.f32.mrb[0].mxu0
  %3025 = vmatprep.mubr.f32.mxu0 0.0
  %3026 = vmatmul.mubr.f32.gmra.mrb[0].mxu0 %v2951
  %v3027 = vpop.f32.mrb[0].mxu0
  %v3028 = vadd.f32 %v2945, %v3027
  %v3029 = vpop.f32.mrb[0].mxu0
  %3030 = vmatprep.mubr.f32.mxu0 0.0
  %3031 = vmatmul.mubr.f32.gmra.mrb[0].mxu0 %v2954
  %v3032 = vpop.f32.mrb[0].mxu0
  %v3033 = vadd.f32 %v2945, %v3032
  %v3034 = vpop.f32.mrb[0].mxu0
  %3035 = vdwg.mxu0
  %v3036 = vmax.f32 %v3023, 0.0
  %v3037 = vmax.f32 %v3028, 0.0
  %v3038 = vmax.f32 %v3033, 0.0
  %v3039 = vld [vmem:[%s17] sm:$0xff]
  %v3040 = vld [vmem:[%s17 + $0x8] sm:$0xff]
  %v3041 = vld [vmem:[%s17 + $0x10] sm:$0xff]
  %v3042 = vld [vmem:[%s17 + $0x18] sm:$0xff]
  %v3043 = vld [vmem:[%s17 + $0x20] sm:$0xff]
  %v3044 = vld [vmem:[%s17 + $0x28] sm:$0xff]
  %v3045 = vld [vmem:[%s17 + $0x30] sm:$0xff]
  %v3046 = vld [vmem:[%s17 + $0x38] sm:$0xff]
  %v3047 = vld [vmem:[%s17 + $0x40] sm:$0xff]
  %v3048 = vld [vmem:[%s17 + $0x48] sm:$0xff]
  %v3049 = vld [vmem:[%s17 + $0x50] sm:$0xff]
  %v3050 = vld [vmem:[%s17 + $0x58] sm:$0xff]
  %v3051 = vld [vmem:[%s17 + $0x60] sm:$0xff]
  %v3052 = vld [vmem:[%s17 + $0x68] sm:$0xff]
  %v3053 = vld [vmem:[%s17 + $0x70] sm:$0xff]
  %v3054 = vld [vmem:[%s17 + $0x78] sm:$0xff]
  %v3055 = vld [vmem:[%s18] sm:$0x1]
  %v3057 = vlaneseq
  %v3058 = vshrl.u32 %v3057, 7
  %v3059 = vsub.s32 0, %v3058
  %v3060 = vrot.slane %v3055, %v3059
  %3062 = vmatprep.subr.mxu0 0.0
  %3063 = vmatpush1.msra.mxu0 %v3039
  %3064 = vmatprep.subr.mxu0 0.0
  %3065 = vmatpush1.msra.mxu0 %v3040
  %3066 = vmatprep.subr.mxu0 0.0
  %3067 = vmatpush1.msra.mxu0 %v3041
  %3068 = vmatprep.subr.mxu0 0.0
  %3069 = vmatpush1.msra.mxu0 %v3042
  %3070 = vmatprep.subr.mxu0 0.0
  %3071 = vmatpush1.msra.mxu0 %v3043
  %3072 = vmatprep.subr.mxu0 0.0
  %3073 = vmatpush1.msra.mxu0 %v3044
  %3074 = vmatprep.subr.mxu0 0.0
  %3075 = vmatpush1.msra.mxu0 %v3045
  %3076 = vmatprep.subr.mxu0 0.0
  %3077 = vmatpush1.msra.mxu0 %v3046
  %3078 = vmatprep.subr.mxu0 0.0
  %3079 = vmatpush1.msra.mxu0 %v3047
  %3080 = vmatprep.subr.mxu0 0.0
  %3081 = vmatpush1.msra.mxu0 %v3048
  %3082 = vmatprep.subr.mxu0 0.0
  %3083 = vmatpush1.msra.mxu0 %v3049
  %3084 = vmatprep.subr.mxu0 0.0
  %3085 = vmatpush1.msra.mxu0 %v3050
  %3086 = vmatprep.subr.mxu0 0.0
  %3087 = vmatpush1.msra.mxu0 %v3051
  %3088 = vmatprep.subr.mxu0 0.0
  %3089 = vmatpush1.msra.mxu0 %v3052
  %3090 = vmatprep.subr.mxu0 0.0
  %3091 = vmatpush1.msra.mxu0 %v3053
  %3092 = vmatprep.subr.mxu0 0.0
  %3093 = vmatpush1.msra.mxu0 %v3054
  %3094 = vmatprep.subr.mxu0 0.0
  %3095 = vmatpush1.msra.mxu0 0.0
  %3096 = vmatprep.subr.mxu0 0.0
  %3097 = vmatpush1.msra.mxu0 0.0
  %3098 = vmatprep.subr.mxu0 0.0
  %3099 = vmatpush1.msra.mxu0 0.0
  %3100 = vmatprep.subr.mxu0 0.0
  %3101 = vmatpush1.msra.mxu0 0.0
  %3102 = vmatprep.subr.mxu0 0.0
  %3103 = vmatpush1.msra.mxu0 0.0
  %3104 = vmatprep.subr.mxu0 0.0
  %3105 = vmatpush1.msra.mxu0 0.0
  %3106 = vmatprep.subr.mxu0 0.0
  %3107 = vmatpush1.msra.mxu0 0.0
  %3108 = vmatprep.subr.mxu0 0.0
  %3109 = vmatpush1.msra.mxu0 0.0
  %3110 = vmatprep.subr.mxu0 0.0
  %3111 = vmatpush1.msra.mxu0 0.0
  %3112 = vmatprep.subr.mxu0 0.0
  %3113 = vmatpush1.msra.mxu0 0.0
  %3114 = vmatprep.subr.mxu0 0.0
  %3115 = vmatpush1.msra.mxu0 0.0
  %3116 = vmatprep.subr.mxu0 0.0
  %3117 = vmatpush1.msra.mxu0 0.0
  %3118 = vmatprep.subr.mxu0 0.0
  %3119 = vmatpush1.msra.mxu0 0.0
  %3120 = vmatprep.subr.mxu0 0.0
  %3121 = vmatpush1.msra.mxu0 0.0
  %3122 = vmatprep.subr.mxu0 0.0
  %3123 = vmatpush1.msra.mxu0 0.0
  %3124 = vmatprep.subr.mxu0 0.0
  %3125 = vmatpush1.msra.mxu0 0.0
  %3126 = vmatprep.mubr.f32.mxu0 0.0
  %3127 = vmatmul.mubr.f32.gmra.mrb[0].mxu0 %v3036
  %v3128 = vpop.f32.mrb[0].mxu0
  %v3129 = vadd.f32 %v3060, %v3128
  %v3130 = vpop.f32.mrb[0].mxu0
  %3131 = vmatprep.mubr.f32.mxu0 0.0
  %3132 = vmatmul.mubr.f32.gmra.mrb[0].mxu0 %v3037
  %v3133 = vpop.f32.mrb[0].mxu0
  %v3134 = vadd.f32 %v3060, %v3133
  %v3135 = vpop.f32.mrb[0].mxu0
  %3136 = vmatprep.mubr.f32.mxu0 0.0
  %3137 = vmatmul.mubr.f32.gmra.mrb[0].mxu0 %v3038
  %v3138 = vpop.f32.mrb[0].mxu0
  %v3139 = vadd.f32 %v3060, %v3138
  %v3140 = vpop.f32.mrb[0].mxu0
  %3141 = vdwg.mxu0
  %v3142 = vmul.f32 %v3129, %v3129
  %v3143 = vmul.f32 %v3134, %v3134
  %v3144 = vmul.f32 %v3139, %v3139
  %v3145 = vsel %vm178, %v3142, 0.0
  %3146 = vadd.xlane.f32.xlu0 %v3145
  %v3147 = vpop.xlane.xlu0 %3146
  %v3148 = vsel %vm178, %v3143, 0.0
  %3149 = vadd.xlane.f32.xlu0 %v3148
  %v3150 = vpop.xlane.xlu0 %3149
  %v3151 = vsel %vm178, %v3144, 0.0
  %3152 = vadd.xlane.f32.xlu0 %v3151
  %v3153 = vpop.xlane.xlu0 %3152
  %v3154 = vadd.f32 %v3147, 1.0
  %v3155 = vadd.f32 %v3150, 1.0
  %v3156 = vadd.f32 %v3153, 1.0
  %v3157 = vrcp.pop %v3154
  %v3158 = vrcp.pop %v3155
  %v3159 = vrcp.pop %v3156
  %v3160 = vmul.f32 %v3147, %v3157
  %v3161 = vmul.f32 %v3150, %v3158
  %v3162 = vmul.f32 %v3153, %v3159
  %v3163 = vadd.f32 %v3147, 1e-16
  %v3164 = vadd.f32 %v3150, 1e-16
  %v3165 = vadd.f32 %v3153, 1e-16
  %v3166 = vrsqrt.pop %v3163
  %v3167 = vrsqrt.pop %v3164
  %v3168 = vrsqrt.pop %v3165
  %v3169 = vmul.f32 %v3160, %v3166
  %v3170 = vmul.f32 %v3161, %v3167
  %v3171 = vmul.f32 %v3162, %v3168
  %v3172 = vmul.f32 %v3129, %v3169
  %v3173 = vmul.f32 %v3134, %v3170
  %v3174 = vmul.f32 %v3139, %v3171
  %v3175 = vadd.f32 %v3172, %v2500
  %v3176 = vadd.f32 %v3173, %v2501
  %v3177 = vadd.f32 %v3174, %v2502
  %v3178 = vmul.f32 %v3175, %v3175
  %v3179 = vmul.f32 %v3176, %v3176
  %v3180 = vmul.f32 %v3177, %v3177
  %v3181 = vsel %vm178, %v3178, 0.0
  %3182 = vadd.xlane.f32.xlu0 %v3181
  %v3183 = vpop.xlane.xlu0 %3182
  %v3184 = vsel %vm178, %v3179, 0.0
  %3185 = vadd.xlane.f32.xlu0 %v3184
  %v3186 = vpop.xlane.xlu0 %3185
  %v3187 = vsel %vm178, %v3180, 0.0
  %3188 = vadd.xlane.f32.xlu0 %v3187
  %v3189 = vpop.xlane.xlu0 %3188
  %v3190 = vadd.f32 %v3183, 1.0
  %v3191 = vadd.f32 %v3186, 1.0
  %v3192 = vadd.f32 %v3189, 1.0
  %v3193 = vrcp.pop %v3190
  %v3194 = vrcp.pop %v3191
  %v3195 = vrcp.pop %v3192
  %v3196 = vmul.f32 %v3183, %v3193
  %v3197 = vmul.f32 %v3186, %v3194
  %v3198 = vmul.f32 %v3189, %v3195
  %v3199 = vadd.f32 %v3183, 1e-16
  %v3200 = vadd.f32 %v3186, 1e-16
  %v3201 = vadd.f32 %v3189, 1e-16
  %v3202 = vrsqrt.pop %v3199
  %v3203 = vrsqrt.pop %v3200
  %v3204 = vrsqrt.pop %v3201
  %v3205 = vmul.f32 %v3196, %v3202
  %v3206 = vmul.f32 %v3197, %v3203
  %v3207 = vmul.f32 %v3198, %v3204
  %v3208 = vmul.f32 %v3175, %v3205
  %v3209 = vmul.f32 %v3176, %v3206
  %v3210 = vmul.f32 %v3177, %v3207
  %3211 = vst.msk [vmem:[%s19] sm:$0xff] %vm178, %v3208
  %3212 = vst.msk [vmem:[%s19 + $0x8] sm:$0xff] %vm178, %v3209
  %3213 = vst.msk [vmem:[%s19 + $0x10] sm:$0xff] %vm178, %v3210
  // Predicated region
  $region78: #{residual_block_forward.1} parent=0 // pred_check
    _
  $region79: #{residual_block_forward.1} parent=0 // pred_check_branch
    %3215 = sbr.rel (0) target = $region81
  $region80: #{residual_block_forward.1} parent=0 // pred_region
    _
  $region81: #{residual_block_forward.1} parent=0 // pred_fallthru
    _
  // Predicated region
  $region82: #{residual_block_forward.1} parent=0 // pred_check
    _
  $region83: #{residual_block_forward.1} parent=0 // pred_check_branch
    %3217 = sbr.rel (0) target = $region85
  $region84: #{residual_block_forward.1} parent=0 // pred_region
    _
  $region85: #{residual_block_forward.1} parent=0 // pred_fallthru
    _

</llo_original>
